<compile_context>
chip_gen: v7x
topology: tpu7x:2x2x1
jax: 0.10.0
libtpu: 0.0.40
codegen_flags: <defaults>
</compile_context>

<pallas_src>
import functools

import jax
import jax.numpy as jnp
from jax.experimental import pallas as pl
from jax.experimental.pallas import tpu as pltpu


# (name, C_in, C_out, is_transposed_conv, fused_relu, post-op)
_LAYERS = (
    ("conv1",      2, 64, False, True,  "pool"),
    ("conv2",     64, 32, False, True,  "pool"),
    ("conv3",     32,  4, False, True,  "pool"),
    ("conv4",      4,  2, False, True,  "pool"),
    ("inv_conv1",  2,  2, True,  True,  "up"),
    ("inv_conv2",  2,  4, True,  True,  "up"),
    ("inv_conv3",  4, 32, True,  True,  "up"),
    ("inv_conv4", 32, 64, True,  True,  "up"),
    ("inv_conv5", 64,  2, True,  False, None),
)

_ZERO_PAD = 4                      # nn.ZeroPad2d((4, 4, 0, 0)) -> fused into conv1 padding
_SLICE_LO, _SLICE_HI = 4, 11004    # x[:, :, 4:11004]
_VPU_MAX_FAN = 16                  # C_in*C_out <= this -> VPU FMAs instead of MXU


# ----------------------------------------------------------------------------
# In-kernel building blocks (traced inside the fused kernel body)
# ----------------------------------------------------------------------------
def _conv_bias_relu(x, w_stacked, b, *, c_in, c_out, K, pad, relu):
    """Cross-correlation Conv1d on a (C_in, L) slab -> (C_out, L_out), f32."""
    L = x.shape[1]
    L_out = L + 2 * pad - K + 1
    if pad > 0:
        z = jnp.zeros((c_in, pad), jnp.float32)
        xp = jnp.concatenate([z, x, z], axis=-1)          # (C_in, L + 2*pad)
    else:
        xp = x
    taps = [xp[:, k:k + L_out] for k in range(K)]         # K shifted views

    if c_in * c_out <= _VPU_MAX_FAN:
        # Tiny layer: broadcast-FMA on the VPU, keep the MXU/vex slot free.
        acc = jnp.zeros((c_out, L_out), jnp.float32)
        for k in range(K):
            for ci in range(c_in):
                j = k * c_in + ci
                w_col = w_stacked[:, j:j + 1]              # (C_out, 1)
                acc = acc + w_col * taps[k][ci:ci + 1, :]  # bcast -> (C_out, L_out)
        y = acc + b
    else:
        # One stacked matmul: contraction K*C_in instead of K small dots.
        cols = jnp.concatenate(taps, axis=0)               # (K*C_in, L_out)
        y = jnp.dot(w_stacked, cols,
                    preferred_element_type=jnp.float32) + b
    if relu:
        y = jnp.maximum(y, 0.0)
    return y


def _avg_pool2(x):
    """F.avg_pool2d(..., kernel_size=(1, 2)) on a (C, L) slab -> (C, L//2)."""
    L = x.shape[1]
    L_out = L // 2
    r = jax.lax.broadcasted_iota(jnp.int32, (L, L_out), 0)
    c = jax.lax.broadcasted_iota(jnp.int32, (L, L_out), 1)
    sel = jnp.logical_or(r == 2 * c, r == 2 * c + 1)       # r // 2 == c
    P = jnp.where(sel, jnp.float32(0.5), jnp.float32(0.0))
    return jnp.dot(x, P, preferred_element_type=jnp.float32)


def _upsample2(x):
    """nn.Upsample(scale_factor=2) (nearest) on a (C, L) slab -> (C, 2L)."""
    L = x.shape[1]
    L_out = 2 * L
    r = jax.lax.broadcasted_iota(jnp.int32, (L, L_out), 0)
    c = jax.lax.broadcasted_iota(jnp.int32, (L, L_out), 1)
    sel = jnp.logical_or(c == 2 * r, c == 2 * r + 1)       # c // 2 == r
    U = jnp.where(sel, jnp.float32(1.0), jnp.float32(0.0))
    return jnp.dot(x, U, preferred_element_type=jnp.float32)


# ----------------------------------------------------------------------------
# Fused forward kernel: one grid step = one batch element, all layers in VMEM.
# ----------------------------------------------------------------------------
def _fused_forward_kernel(x_ref, *refs, K, padding, L_final):
    o_ref = refs[-1]
    wb = refs[:-1]                                          # (w1, b1, ..., w9, b9)

    x = x_ref[0].astype(jnp.float32)                        # (2, L_in)
    for li, (_, c_in, c_out, transposed, relu, post) in enumerate(_LAYERS):
        w = wb[2 * li][...]                                 # (C_out, K*C_in)
        b = wb[2 * li + 1][...]                             # (C_out, 1)
        pad = (K - 1 - padding) if transposed else padding
        if li == 0:
            pad += _ZERO_PAD                                # fold ZeroPad2d((4,4,0,0))
        x = _conv_bias_relu(x, w, b, c_in=c_in, c_out=c_out, K=K,
                            pad=pad, relu=relu)
        if post == "pool":
            x = _avg_pool2(x)
        elif post == "up":
            x = _upsample2(x)

    o_ref[0] = x[:, _SLICE_LO:_SLICE_LO + L_final].astype(o_ref.dtype)


def autoencoder_1d_forward(x, packed_params, *, kernel_size, padding):
    """x: (B, 2, L_in) f32; packed_params: flat list [w1, b1, ..., w9, b9]."""
    B, c_in0, L_in = x.shape
    K, p = kernel_size, padding
    assert c_in0 == _LAYERS[0][1]
    assert 0 <= p <= K - 1, "ConvTranspose1d-as-conv mapping requires padding <= K-1"

    # Static length bookkeeping (trace time only).
    L = L_in + 2 * _ZERO_PAD
    for _, _, _, transposed, _, post in _LAYERS:
        pad = (K - 1 - p) if transposed else p
        L = L + 2 * pad - K + 1
        assert L > 0, "spatial length collapsed; adjust kernel_size/padding/L_in"
        if post == "pool":
            L //= 2
        elif post == "up":
            L *= 2
    L_final = min(L, _SLICE_HI) - _SLICE_LO
    assert L_final > 0, "decoder output too short for x[:, :, 4:11004]"

    kernel = functools.partial(_fused_forward_kernel, K=K, padding=p,
                               L_final=L_final)

    in_specs = [pl.BlockSpec((1, c_in0, L_in), lambda bi: (bi, 0, 0))]
    for w, b in zip(packed_params[0::2], packed_params[1::2]):
        in_specs.append(pl.BlockSpec(w.shape, lambda bi: (0, 0)))
        in_specs.append(pl.BlockSpec(b.shape, lambda bi: (0, 0)))

    c_out_final = _LAYERS[-1][2]
    return pl.pallas_call(
        kernel,
        out_shape=jax.ShapeDtypeStruct((B, c_out_final, L_final), jnp.float32),
        grid_spec=pltpu.PrefetchScalarGridSpec(
            num_scalar_prefetch=0,
            grid=(B,),
            in_specs=in_specs,
            out_specs=pl.BlockSpec((1, c_out_final, L_final),
                                   lambda bi: (bi, 0, 0)),
        ),
        compiler_params=pltpu.CompilerParams(
            dimension_semantics=("parallel",),        # v7x: one batch elem per TC
            vmem_limit_bytes=32 * 1024 * 1024,        # explicit, safe on v5e/v6e/v7x
        ),
    )(x, *packed_params)


# ----------------------------------------------------------------------------
# Parameters: deterministic PyTorch-style init + one-time packing (hoisted
# weight preprocessing: transpose / K-flip / bias reshape out of the hot path).
# ----------------------------------------------------------------------------
def init_params(key, kernel_size):
    K = kernel_size

    def conv_init(k, c_out, c_in):
        k1, k2 = jax.random.split(k)
        bound = 1.0 / (c_in * K) ** 0.5
        w = jax.random.uniform(k1, (c_out, c_in, K), jnp.float32, -bound, bound)
        b = jax.random.uniform(k2, (c_out,), jnp.float32, -bound, bound)
        return w, b

    def tconv_init(k, c_in, c_out):
        k1, k2 = jax.random.split(k)
        bound = 1.0 / (c_in * K) ** 0.5
        w = jax.random.uniform(k1, (c_in, c_out, K), jnp.float32, -bound, bound)
        b = jax.random.uniform(k2, (c_out,), jnp.float32, -bound, bound)
        return w, b

    keys = jax.random.split(key, len(_LAYERS))
    params = {}
    for kk, (name, c_in, c_out, transposed, _, _) in zip(keys, _LAYERS):
        params[name] = (tconv_init(kk, c_in, c_out) if transposed
                        else conv_init(kk, c_out, c_in))
    return params


def pack_params(params, kernel_size):
    """PyTorch layouts -> kernel-ready layouts (done ONCE, not per forward)."""
    K = kernel_size
    packed = []
    for name, c_in, c_out, transposed, _, _ in _LAYERS:
        w, b = params[name]
        if transposed:
            # ConvTranspose1d (stride=1) == cross-correlation with channel-swapped,
            # K-flipped weights and padding K-1-p.
            w = jnp.flip(jnp.transpose(w, (1, 0, 2)), axis=-1)   # (C_out, C_in, K)
        # (C_out, C_in, K) -> (C_out, K*C_in); column index = k*C_in + ci,
        # matching the in-kernel im2col row order.
        w_stacked = jnp.transpose(w, (0, 2, 1)).reshape(c_out, K * c_in)
        packed.append(jnp.asarray(w_stacked, jnp.float32))
        packed.append(jnp.asarray(b, jnp.float32).reshape(c_out, 1))
    return packed


# ----------------------------------------------------------------------------
if __name__ == "__main__":
    kernel_size = 3
    padding = 1   # "same"-style convs; lengths only change via pad/pool/upsample

    # Small shapes: batch=2, 2 input channels (stereo audio), length=24.
    # (24 + 8 zero-pad = 32, divisible by 2^4 for the four avg-pools.)
    key = jax.random.PRNGKey(0)
    x = jax.random.normal(key, (2, 2, 24), dtype=jnp.float32)

    raw_params = init_params(jax.random.PRNGKey(42), kernel_size)
    packed = pack_params(raw_params, kernel_size)

    fwd = jax.jit(functools.partial(autoencoder_1d_forward,
                                    kernel_size=kernel_size, padding=padding))
    out = jax.block_until_ready(fwd(x, packed))

    # decoder output length 32, slice [4:11004] clamps -> 28
    assert out.shape == (2, 2, 28), out.shape
    assert out.dtype == jnp.float32
    assert bool(jnp.isfinite(out).all())
    print("KERNEL_OK")
</pallas_src>

<mosaic_0001>
module attributes {stable_mosaic.version = 11 : i64} {
  func.func @_fused_forward_kernel(%arg0: i32, %arg1: memref<1x2x24xf32, #tpu.memory_space<vmem>>, %arg2: memref<64x6xf32, #tpu.memory_space<vmem>>, %arg3: memref<64x1xf32, #tpu.memory_space<vmem>>, %arg4: memref<32x192xf32, #tpu.memory_space<vmem>>, %arg5: memref<32x1xf32, #tpu.memory_space<vmem>>, %arg6: memref<4x96xf32, #tpu.memory_space<vmem>>, %arg7: memref<4x1xf32, #tpu.memory_space<vmem>>, %arg8: memref<2x12xf32, #tpu.memory_space<vmem>>, %arg9: memref<2x1xf32, #tpu.memory_space<vmem>>, %arg10: memref<2x6xf32, #tpu.memory_space<vmem>>, %arg11: memref<2x1xf32, #tpu.memory_space<vmem>>, %arg12: memref<4x6xf32, #tpu.memory_space<vmem>>, %arg13: memref<4x1xf32, #tpu.memory_space<vmem>>, %arg14: memref<32x12xf32, #tpu.memory_space<vmem>>, %arg15: memref<32x1xf32, #tpu.memory_space<vmem>>, %arg16: memref<64x96xf32, #tpu.memory_space<vmem>>, %arg17: memref<64x1xf32, #tpu.memory_space<vmem>>, %arg18: memref<2x192xf32, #tpu.memory_space<vmem>>, %arg19: memref<2x1xf32, #tpu.memory_space<vmem>>, %arg20: memref<1x2x28xf32, #tpu.memory_space<vmem>>) attributes {dimension_semantics = [#tpu.dimension_semantics<parallel>], iteration_bounds = array<i64: 2>, scalar_prefetch = 0 : i64, scratch_operands = 0 : i64, tpu.core_type = #tpu.core_type<tc>, window_params = [{transform_indices = @transform_0, window_bounds = array<i64: 1, 2, 24>}, {pipeline_mode = #tpu.pipeline_mode<synchronous>, transform_indices = @transform_1, window_bounds = array<i64: 64, 6>}, {pipeline_mode = #tpu.pipeline_mode<synchronous>, transform_indices = @transform_2, window_bounds = array<i64: 64, 1>}, {pipeline_mode = #tpu.pipeline_mode<synchronous>, transform_indices = @transform_3, window_bounds = array<i64: 32, 192>}, {pipeline_mode = #tpu.pipeline_mode<synchronous>, transform_indices = @transform_4, window_bounds = array<i64: 32, 1>}, {pipeline_mode = #tpu.pipeline_mode<synchronous>, transform_indices = @transform_5, window_bounds = array<i64: 4, 96>}, {pipeline_mode = #tpu.pipeline_mode<synchronous>, transform_indices = @transform_6, window_bounds = array<i64: 4, 1>}, {pipeline_mode = #tpu.pipeline_mode<synchronous>, transform_indices = @transform_7, window_bounds = array<i64: 2, 12>}, {pipeline_mode = #tpu.pipeline_mode<synchronous>, transform_indices = @transform_8, window_bounds = array<i64: 2, 1>}, {pipeline_mode = #tpu.pipeline_mode<synchronous>, transform_indices = @transform_9, window_bounds = array<i64: 2, 6>}, {pipeline_mode = #tpu.pipeline_mode<synchronous>, transform_indices = @transform_10, window_bounds = array<i64: 2, 1>}, {pipeline_mode = #tpu.pipeline_mode<synchronous>, transform_indices = @transform_11, window_bounds = array<i64: 4, 6>}, {pipeline_mode = #tpu.pipeline_mode<synchronous>, transform_indices = @transform_12, window_bounds = array<i64: 4, 1>}, {pipeline_mode = #tpu.pipeline_mode<synchronous>, transform_indices = @transform_13, window_bounds = array<i64: 32, 12>}, {pipeline_mode = #tpu.pipeline_mode<synchronous>, transform_indices = @transform_14, window_bounds = array<i64: 32, 1>}, {pipeline_mode = #tpu.pipeline_mode<synchronous>, transform_indices = @transform_15, window_bounds = array<i64: 64, 96>}, {pipeline_mode = #tpu.pipeline_mode<synchronous>, transform_indices = @transform_16, window_bounds = array<i64: 64, 1>}, {pipeline_mode = #tpu.pipeline_mode<synchronous>, transform_indices = @transform_17, window_bounds = array<i64: 2, 192>}, {pipeline_mode = #tpu.pipeline_mode<synchronous>, transform_indices = @transform_18, window_bounds = array<i64: 2, 1>}, {transform_indices = @transform_19, window_bounds = array<i64: 1, 2, 28>}]} {
    %c0 = arith.constant 0 : index
    %c0_0 = arith.constant 0 : index
    %c0_1 = arith.constant 0 : index
    %0 = vector.load %arg1[%c0, %c0_0, %c0_1] : memref<1x2x24xf32, #tpu.memory_space<vmem>>, vector<1x2x24xf32>
    %1 = vector.shape_cast %0 : vector<1x2x24xf32> to vector<2x24xf32>
    %c0_2 = arith.constant 0 : index
    %c0_3 = arith.constant 0 : index
    %2 = vector.load %arg2[%c0_2, %c0_3] : memref<64x6xf32, #tpu.memory_space<vmem>>, vector<64x6xf32>
    %c0_4 = arith.constant 0 : index
    %c0_5 = arith.constant 0 : index
    %3 = vector.load %arg3[%c0_4, %c0_5] : memref<64x1xf32, #tpu.memory_space<vmem>>, vector<64x1xf32>
    %cst = arith.constant 0.000000e+00 : f32
    %4 = vector.broadcast %cst : f32 to vector<2x5xf32>
    %5 = tpu.concatenate %4, %1, %4 in 1 : vector<2x5xf32>, vector<2x24xf32>, vector<2x5xf32> -> vector<2x34xf32>
    %6 = vector.extract_strided_slice %5 {offsets = [0, 0], sizes = [2, 32], strides = [1, 1]} : vector<2x34xf32> to vector<2x32xf32>
    %7 = vector.extract_strided_slice %5 {offsets = [0, 1], sizes = [2, 32], strides = [1, 1]} : vector<2x34xf32> to vector<2x32xf32>
    %8 = vector.extract_strided_slice %5 {offsets = [0, 2], sizes = [2, 32], strides = [1, 1]} : vector<2x34xf32> to vector<2x32xf32>
    %9 = tpu.concatenate %6, %7, %8 in 0 : vector<2x32xf32>, vector<2x32xf32>, vector<2x32xf32> -> vector<6x32xf32>
    %cst_6 = arith.constant dense<0.000000e+00> : vector<64x32xf32>
    %10 = tpu.matmul %2, %9, %cst_6 {dimension_numbers = #tpu.dot_dimension_numbers<[1], [0], [0], [1], [0, 0, 1, 1], [], []>} : vector<64x6xf32>, vector<6x32xf32>, vector<64x32xf32> -> vector<64x32xf32>
    %11 = vector.broadcast %3 : vector<64x1xf32> to vector<64x32xf32>
    %12 = arith.addf %10, %11 : vector<64x32xf32>
    %cst_7 = arith.constant 0.000000e+00 : f32
    %13 = vector.broadcast %cst_7 : f32 to vector<64x32xf32>
    %14 = arith.maximumf %12, %13 : vector<64x32xf32>
    %15 = tpu.iota {dimensions = array<i32: 0>} : vector<32x16xi32>
    %16 = tpu.iota {dimensions = array<i32: 1>} : vector<32x16xi32>
    %c2_i32 = arith.constant 2 : i32
    %17 = vector.broadcast %c2_i32 : i32 to vector<32x16xi32>
    %18 = arith.muli %17, %16 : vector<32x16xi32>
    %19 = arith.cmpi eq, %15, %18 : vector<32x16xi32>
    %c2_i32_8 = arith.constant 2 : i32
    %20 = vector.broadcast %c2_i32_8 : i32 to vector<32x16xi32>
    %21 = arith.muli %20, %16 : vector<32x16xi32>
    %c1_i32 = arith.constant 1 : i32
    %22 = vector.broadcast %c1_i32 : i32 to vector<32x16xi32>
    %23 = arith.addi %21, %22 : vector<32x16xi32>
    %24 = arith.cmpi eq, %15, %23 : vector<32x16xi32>
    %25 = arith.ori %19, %24 : vector<32x16xi1>
    %cst_9 = arith.constant 5.000000e-01 : f32
    %cst_10 = arith.constant 0.000000e+00 : f32
    %26 = vector.broadcast %cst_9 : f32 to vector<32x16xf32>
    %27 = vector.broadcast %cst_10 : f32 to vector<32x16xf32>
    %28 = arith.select %25, %26, %27 : vector<32x16xi1>, vector<32x16xf32>
    %cst_11 = arith.constant dense<0.000000e+00> : vector<64x16xf32>
    %29 = tpu.matmul %14, %28, %cst_11 {dimension_numbers = #tpu.dot_dimension_numbers<[1], [0], [0], [1], [0, 0, 1, 1], [], []>} : vector<64x32xf32>, vector<32x16xf32>, vector<64x16xf32> -> vector<64x16xf32>
    %c0_12 = arith.constant 0 : index
    %c0_13 = arith.constant 0 : index
    %30 = vector.load %arg4[%c0_12, %c0_13] : memref<32x192xf32, #tpu.memory_space<vmem>>, vector<32x192xf32>
    %c0_14 = arith.constant 0 : index
    %c0_15 = arith.constant 0 : index
    %31 = vector.load %arg5[%c0_14, %c0_15] : memref<32x1xf32, #tpu.memory_space<vmem>>, vector<32x1xf32>
    %cst_16 = arith.constant 0.000000e+00 : f32
    %32 = vector.broadcast %cst_16 : f32 to vector<64x1xf32>
    %33 = tpu.concatenate %32, %29, %32 in 1 : vector<64x1xf32>, vector<64x16xf32>, vector<64x1xf32> -> vector<64x18xf32>
    %34 = vector.extract_strided_slice %33 {offsets = [0, 0], sizes = [64, 16], strides = [1, 1]} : vector<64x18xf32> to vector<64x16xf32>
    %35 = vector.extract_strided_slice %33 {offsets = [0, 1], sizes = [64, 16], strides = [1, 1]} : vector<64x18xf32> to vector<64x16xf32>
    %36 = vector.extract_strided_slice %33 {offsets = [0, 2], sizes = [64, 16], strides = [1, 1]} : vector<64x18xf32> to vector<64x16xf32>
    %37 = tpu.concatenate %34, %35, %36 in 0 : vector<64x16xf32>, vector<64x16xf32>, vector<64x16xf32> -> vector<192x16xf32>
    %cst_17 = arith.constant dense<0.000000e+00> : vector<32x16xf32>
    %38 = tpu.matmul %30, %37, %cst_17 {dimension_numbers = #tpu.dot_dimension_numbers<[1], [0], [0], [1], [0, 0, 1, 1], [], []>} : vector<32x192xf32>, vector<192x16xf32>, vector<32x16xf32> -> vector<32x16xf32>
    %39 = vector.broadcast %31 : vector<32x1xf32> to vector<32x16xf32>
    %40 = arith.addf %38, %39 : vector<32x16xf32>
    %cst_18 = arith.constant 0.000000e+00 : f32
    %41 = vector.broadcast %cst_18 : f32 to vector<32x16xf32>
    %42 = arith.maximumf %40, %41 : vector<32x16xf32>
    %43 = tpu.iota {dimensions = array<i32: 0>} : vector<16x8xi32>
    %44 = tpu.iota {dimensions = array<i32: 1>} : vector<16x8xi32>
    %c2_i32_19 = arith.constant 2 : i32
    %45 = vector.broadcast %c2_i32_19 : i32 to vector<16x8xi32>
    %46 = arith.muli %45, %44 : vector<16x8xi32>
    %47 = arith.cmpi eq, %43, %46 : vector<16x8xi32>
    %c2_i32_20 = arith.constant 2 : i32
    %48 = vector.broadcast %c2_i32_20 : i32 to vector<16x8xi32>
    %49 = arith.muli %48, %44 : vector<16x8xi32>
    %c1_i32_21 = arith.constant 1 : i32
    %50 = vector.broadcast %c1_i32_21 : i32 to vector<16x8xi32>
    %51 = arith.addi %49, %50 : vector<16x8xi32>
    %52 = arith.cmpi eq, %43, %51 : vector<16x8xi32>
    %53 = arith.ori %47, %52 : vector<16x8xi1>
    %cst_22 = arith.constant 5.000000e-01 : f32
    %cst_23 = arith.constant 0.000000e+00 : f32
    %54 = vector.broadcast %cst_22 : f32 to vector<16x8xf32>
    %55 = vector.broadcast %cst_23 : f32 to vector<16x8xf32>
    %56 = arith.select %53, %54, %55 : vector<16x8xi1>, vector<16x8xf32>
    %cst_24 = arith.constant dense<0.000000e+00> : vector<32x8xf32>
    %57 = tpu.matmul %42, %56, %cst_24 {dimension_numbers = #tpu.dot_dimension_numbers<[1], [0], [0], [1], [0, 0, 1, 1], [], []>} : vector<32x16xf32>, vector<16x8xf32>, vector<32x8xf32> -> vector<32x8xf32>
    %c0_25 = arith.constant 0 : index
    %c0_26 = arith.constant 0 : index
    %58 = vector.load %arg6[%c0_25, %c0_26] : memref<4x96xf32, #tpu.memory_space<vmem>>, vector<4x96xf32>
    %c0_27 = arith.constant 0 : index
    %c0_28 = arith.constant 0 : index
    %59 = vector.load %arg7[%c0_27, %c0_28] : memref<4x1xf32, #tpu.memory_space<vmem>>, vector<4x1xf32>
    %cst_29 = arith.constant 0.000000e+00 : f32
    %60 = vector.broadcast %cst_29 : f32 to vector<32x1xf32>
    %61 = tpu.concatenate %60, %57, %60 in 1 : vector<32x1xf32>, vector<32x8xf32>, vector<32x1xf32> -> vector<32x10xf32>
    %62 = vector.extract_strided_slice %61 {offsets = [0, 0], sizes = [32, 8], strides = [1, 1]} : vector<32x10xf32> to vector<32x8xf32>
    %63 = vector.extract_strided_slice %61 {offsets = [0, 1], sizes = [32, 8], strides = [1, 1]} : vector<32x10xf32> to vector<32x8xf32>
    %64 = vector.extract_strided_slice %61 {offsets = [0, 2], sizes = [32, 8], strides = [1, 1]} : vector<32x10xf32> to vector<32x8xf32>
    %65 = tpu.concatenate %62, %63, %64 in 0 : vector<32x8xf32>, vector<32x8xf32>, vector<32x8xf32> -> vector<96x8xf32>
    %cst_30 = arith.constant dense<0.000000e+00> : vector<4x8xf32>
    %66 = tpu.matmul %58, %65, %cst_30 {dimension_numbers = #tpu.dot_dimension_numbers<[1], [0], [0], [1], [0, 0, 1, 1], [], []>} : vector<4x96xf32>, vector<96x8xf32>, vector<4x8xf32> -> vector<4x8xf32>
    %67 = vector.broadcast %59 : vector<4x1xf32> to vector<4x8xf32>
    %68 = arith.addf %66, %67 : vector<4x8xf32>
    %cst_31 = arith.constant 0.000000e+00 : f32
    %69 = vector.broadcast %cst_31 : f32 to vector<4x8xf32>
    %70 = arith.maximumf %68, %69 : vector<4x8xf32>
    %71 = tpu.iota {dimensions = array<i32: 0>} : vector<8x4xi32>
    %72 = tpu.iota {dimensions = array<i32: 1>} : vector<8x4xi32>
    %c2_i32_32 = arith.constant 2 : i32
    %73 = vector.broadcast %c2_i32_32 : i32 to vector<8x4xi32>
    %74 = arith.muli %73, %72 : vector<8x4xi32>
    %75 = arith.cmpi eq, %71, %74 : vector<8x4xi32>
    %c2_i32_33 = arith.constant 2 : i32
    %76 = vector.broadcast %c2_i32_33 : i32 to vector<8x4xi32>
    %77 = arith.muli %76, %72 : vector<8x4xi32>
    %c1_i32_34 = arith.constant 1 : i32
    %78 = vector.broadcast %c1_i32_34 : i32 to vector<8x4xi32>
    %79 = arith.addi %77, %78 : vector<8x4xi32>
    %80 = arith.cmpi eq, %71, %79 : vector<8x4xi32>
    %81 = arith.ori %75, %80 : vector<8x4xi1>
    %cst_35 = arith.constant 5.000000e-01 : f32
    %cst_36 = arith.constant 0.000000e+00 : f32
    %82 = vector.broadcast %cst_35 : f32 to vector<8x4xf32>
    %83 = vector.broadcast %cst_36 : f32 to vector<8x4xf32>
    %84 = arith.select %81, %82, %83 : vector<8x4xi1>, vector<8x4xf32>
    %cst_37 = arith.constant dense<0.000000e+00> : vector<4x4xf32>
    %85 = tpu.matmul %70, %84, %cst_37 {dimension_numbers = #tpu.dot_dimension_numbers<[1], [0], [0], [1], [0, 0, 1, 1], [], []>} : vector<4x8xf32>, vector<8x4xf32>, vector<4x4xf32> -> vector<4x4xf32>
    %c0_38 = arith.constant 0 : index
    %c0_39 = arith.constant 0 : index
    %86 = vector.load %arg8[%c0_38, %c0_39] : memref<2x12xf32, #tpu.memory_space<vmem>>, vector<2x12xf32>
    %c0_40 = arith.constant 0 : index
    %c0_41 = arith.constant 0 : index
    %87 = vector.load %arg9[%c0_40, %c0_41] : memref<2x1xf32, #tpu.memory_space<vmem>>, vector<2x1xf32>
    %cst_42 = arith.constant 0.000000e+00 : f32
    %88 = vector.broadcast %cst_42 : f32 to vector<4x1xf32>
    %89 = tpu.concatenate %88, %85, %88 in 1 : vector<4x1xf32>, vector<4x4xf32>, vector<4x1xf32> -> vector<4x6xf32>
    %90 = vector.extract_strided_slice %89 {offsets = [0, 0], sizes = [4, 4], strides = [1, 1]} : vector<4x6xf32> to vector<4x4xf32>
    %91 = vector.extract_strided_slice %89 {offsets = [0, 1], sizes = [4, 4], strides = [1, 1]} : vector<4x6xf32> to vector<4x4xf32>
    %92 = vector.extract_strided_slice %89 {offsets = [0, 2], sizes = [4, 4], strides = [1, 1]} : vector<4x6xf32> to vector<4x4xf32>
    %cst_43 = arith.constant 0.000000e+00 : f32
    %93 = vector.broadcast %cst_43 : f32 to vector<2x4xf32>
    %94 = vector.extract_strided_slice %86 {offsets = [0, 0], sizes = [2, 1], strides = [1, 1]} : vector<2x12xf32> to vector<2x1xf32>
    %95 = vector.extract_strided_slice %90 {offsets = [0, 0], sizes = [1, 4], strides = [1, 1]} : vector<4x4xf32> to vector<1x4xf32>
    %96 = vector.broadcast %94 : vector<2x1xf32> to vector<2x4xf32>
    %97 = vector.broadcast %95 : vector<1x4xf32> to vector<2x4xf32>
    %98 = arith.mulf %96, %97 : vector<2x4xf32>
    %99 = arith.addf %93, %98 : vector<2x4xf32>
    %100 = vector.extract_strided_slice %86 {offsets = [0, 1], sizes = [2, 1], strides = [1, 1]} : vector<2x12xf32> to vector<2x1xf32>
    %101 = vector.extract_strided_slice %90 {offsets = [1, 0], sizes = [1, 4], strides = [1, 1]} : vector<4x4xf32> to vector<1x4xf32>
    %102 = vector.broadcast %100 : vector<2x1xf32> to vector<2x4xf32>
    %103 = vector.broadcast %101 : vector<1x4xf32> to vector<2x4xf32>
    %104 = arith.mulf %102, %103 : vector<2x4xf32>
    %105 = arith.addf %99, %104 : vector<2x4xf32>
    %106 = vector.extract_strided_slice %86 {offsets = [0, 2], sizes = [2, 1], strides = [1, 1]} : vector<2x12xf32> to vector<2x1xf32>
    %107 = vector.extract_strided_slice %90 {offsets = [2, 0], sizes = [1, 4], strides = [1, 1]} : vector<4x4xf32> to vector<1x4xf32>
    %108 = vector.broadcast %106 : vector<2x1xf32> to vector<2x4xf32>
    %109 = vector.broadcast %107 : vector<1x4xf32> to vector<2x4xf32>
    %110 = arith.mulf %108, %109 : vector<2x4xf32>
    %111 = arith.addf %105, %110 : vector<2x4xf32>
    %112 = vector.extract_strided_slice %86 {offsets = [0, 3], sizes = [2, 1], strides = [1, 1]} : vector<2x12xf32> to vector<2x1xf32>
    %113 = vector.extract_strided_slice %90 {offsets = [3, 0], sizes = [1, 4], strides = [1, 1]} : vector<4x4xf32> to vector<1x4xf32>
    %114 = vector.broadcast %112 : vector<2x1xf32> to vector<2x4xf32>
    %115 = vector.broadcast %113 : vector<1x4xf32> to vector<2x4xf32>
    %116 = arith.mulf %114, %115 : vector<2x4xf32>
    %117 = arith.addf %111, %116 : vector<2x4xf32>
    %118 = vector.extract_strided_slice %86 {offsets = [0, 4], sizes = [2, 1], strides = [1, 1]} : vector<2x12xf32> to vector<2x1xf32>
    %119 = vector.extract_strided_slice %91 {offsets = [0, 0], sizes = [1, 4], strides = [1, 1]} : vector<4x4xf32> to vector<1x4xf32>
    %120 = vector.broadcast %118 : vector<2x1xf32> to vector<2x4xf32>
    %121 = vector.broadcast %119 : vector<1x4xf32> to vector<2x4xf32>
    %122 = arith.mulf %120, %121 : vector<2x4xf32>
    %123 = arith.addf %117, %122 : vector<2x4xf32>
    %124 = vector.extract_strided_slice %86 {offsets = [0, 5], sizes = [2, 1], strides = [1, 1]} : vector<2x12xf32> to vector<2x1xf32>
    %125 = vector.extract_strided_slice %91 {offsets = [1, 0], sizes = [1, 4], strides = [1, 1]} : vector<4x4xf32> to vector<1x4xf32>
    %126 = vector.broadcast %124 : vector<2x1xf32> to vector<2x4xf32>
    %127 = vector.broadcast %125 : vector<1x4xf32> to vector<2x4xf32>
    %128 = arith.mulf %126, %127 : vector<2x4xf32>
    %129 = arith.addf %123, %128 : vector<2x4xf32>
    %130 = vector.extract_strided_slice %86 {offsets = [0, 6], sizes = [2, 1], strides = [1, 1]} : vector<2x12xf32> to vector<2x1xf32>
    %131 = vector.extract_strided_slice %91 {offsets = [2, 0], sizes = [1, 4], strides = [1, 1]} : vector<4x4xf32> to vector<1x4xf32>
    %132 = vector.broadcast %130 : vector<2x1xf32> to vector<2x4xf32>
    %133 = vector.broadcast %131 : vector<1x4xf32> to vector<2x4xf32>
    %134 = arith.mulf %132, %133 : vector<2x4xf32>
    %135 = arith.addf %129, %134 : vector<2x4xf32>
    %136 = vector.extract_strided_slice %86 {offsets = [0, 7], sizes = [2, 1], strides = [1, 1]} : vector<2x12xf32> to vector<2x1xf32>
    %137 = vector.extract_strided_slice %91 {offsets = [3, 0], sizes = [1, 4], strides = [1, 1]} : vector<4x4xf32> to vector<1x4xf32>
    %138 = vector.broadcast %136 : vector<2x1xf32> to vector<2x4xf32>
    %139 = vector.broadcast %137 : vector<1x4xf32> to vector<2x4xf32>
    %140 = arith.mulf %138, %139 : vector<2x4xf32>
    %141 = arith.addf %135, %140 : vector<2x4xf32>
    %142 = vector.extract_strided_slice %86 {offsets = [0, 8], sizes = [2, 1], strides = [1, 1]} : vector<2x12xf32> to vector<2x1xf32>
    %143 = vector.extract_strided_slice %92 {offsets = [0, 0], sizes = [1, 4], strides = [1, 1]} : vector<4x4xf32> to vector<1x4xf32>
    %144 = vector.broadcast %142 : vector<2x1xf32> to vector<2x4xf32>
    %145 = vector.broadcast %143 : vector<1x4xf32> to vector<2x4xf32>
    %146 = arith.mulf %144, %145 : vector<2x4xf32>
    %147 = arith.addf %141, %146 : vector<2x4xf32>
    %148 = vector.extract_strided_slice %86 {offsets = [0, 9], sizes = [2, 1], strides = [1, 1]} : vector<2x12xf32> to vector<2x1xf32>
    %149 = vector.extract_strided_slice %92 {offsets = [1, 0], sizes = [1, 4], strides = [1, 1]} : vector<4x4xf32> to vector<1x4xf32>
    %150 = vector.broadcast %148 : vector<2x1xf32> to vector<2x4xf32>
    %151 = vector.broadcast %149 : vector<1x4xf32> to vector<2x4xf32>
    %152 = arith.mulf %150, %151 : vector<2x4xf32>
    %153 = arith.addf %147, %152 : vector<2x4xf32>
    %154 = vector.extract_strided_slice %86 {offsets = [0, 10], sizes = [2, 1], strides = [1, 1]} : vector<2x12xf32> to vector<2x1xf32>
    %155 = vector.extract_strided_slice %92 {offsets = [2, 0], sizes = [1, 4], strides = [1, 1]} : vector<4x4xf32> to vector<1x4xf32>
    %156 = vector.broadcast %154 : vector<2x1xf32> to vector<2x4xf32>
    %157 = vector.broadcast %155 : vector<1x4xf32> to vector<2x4xf32>
    %158 = arith.mulf %156, %157 : vector<2x4xf32>
    %159 = arith.addf %153, %158 : vector<2x4xf32>
    %160 = vector.extract_strided_slice %86 {offsets = [0, 11], sizes = [2, 1], strides = [1, 1]} : vector<2x12xf32> to vector<2x1xf32>
    %161 = vector.extract_strided_slice %92 {offsets = [3, 0], sizes = [1, 4], strides = [1, 1]} : vector<4x4xf32> to vector<1x4xf32>
    %162 = vector.broadcast %160 : vector<2x1xf32> to vector<2x4xf32>
    %163 = vector.broadcast %161 : vector<1x4xf32> to vector<2x4xf32>
    %164 = arith.mulf %162, %163 : vector<2x4xf32>
    %165 = arith.addf %159, %164 : vector<2x4xf32>
    %166 = vector.broadcast %87 : vector<2x1xf32> to vector<2x4xf32>
    %167 = arith.addf %165, %166 : vector<2x4xf32>
    %cst_44 = arith.constant 0.000000e+00 : f32
    %168 = vector.broadcast %cst_44 : f32 to vector<2x4xf32>
    %169 = arith.maximumf %167, %168 : vector<2x4xf32>
    %170 = tpu.iota {dimensions = array<i32: 0>} : vector<4x2xi32>
    %171 = tpu.iota {dimensions = array<i32: 1>} : vector<4x2xi32>
    %c2_i32_45 = arith.constant 2 : i32
    %172 = vector.broadcast %c2_i32_45 : i32 to vector<4x2xi32>
    %173 = arith.muli %172, %171 : vector<4x2xi32>
    %174 = arith.cmpi eq, %170, %173 : vector<4x2xi32>
    %c2_i32_46 = arith.constant 2 : i32
    %175 = vector.broadcast %c2_i32_46 : i32 to vector<4x2xi32>
    %176 = arith.muli %175, %171 : vector<4x2xi32>
    %c1_i32_47 = arith.constant 1 : i32
    %177 = vector.broadcast %c1_i32_47 : i32 to vector<4x2xi32>
    %178 = arith.addi %176, %177 : vector<4x2xi32>
    %179 = arith.cmpi eq, %170, %178 : vector<4x2xi32>
    %180 = arith.ori %174, %179 : vector<4x2xi1>
    %cst_48 = arith.constant 5.000000e-01 : f32
    %cst_49 = arith.constant 0.000000e+00 : f32
    %181 = vector.broadcast %cst_48 : f32 to vector<4x2xf32>
    %182 = vector.broadcast %cst_49 : f32 to vector<4x2xf32>
    %183 = arith.select %180, %181, %182 : vector<4x2xi1>, vector<4x2xf32>
    %cst_50 = arith.constant dense<0.000000e+00> : vector<2x2xf32>
    %184 = tpu.matmul %169, %183, %cst_50 {dimension_numbers = #tpu.dot_dimension_numbers<[1], [0], [0], [1], [0, 0, 1, 1], [], []>} : vector<2x4xf32>, vector<4x2xf32>, vector<2x2xf32> -> vector<2x2xf32>
    %c0_51 = arith.constant 0 : index
    %c0_52 = arith.constant 0 : index
    %185 = vector.load %arg10[%c0_51, %c0_52] : memref<2x6xf32, #tpu.memory_space<vmem>>, vector<2x6xf32>
    %c0_53 = arith.constant 0 : index
    %c0_54 = arith.constant 0 : index
    %186 = vector.load %arg11[%c0_53, %c0_54] : memref<2x1xf32, #tpu.memory_space<vmem>>, vector<2x1xf32>
    %cst_55 = arith.constant 0.000000e+00 : f32
    %187 = vector.broadcast %cst_55 : f32 to vector<2x1xf32>
    %188 = tpu.concatenate %187, %184, %187 in 1 : vector<2x1xf32>, vector<2x2xf32>, vector<2x1xf32> -> vector<2x4xf32>
    %189 = vector.extract_strided_slice %188 {offsets = [0, 0], sizes = [2, 2], strides = [1, 1]} : vector<2x4xf32> to vector<2x2xf32>
    %190 = vector.extract_strided_slice %188 {offsets = [0, 1], sizes = [2, 2], strides = [1, 1]} : vector<2x4xf32> to vector<2x2xf32>
    %191 = vector.extract_strided_slice %188 {offsets = [0, 2], sizes = [2, 2], strides = [1, 1]} : vector<2x4xf32> to vector<2x2xf32>
    %cst_56 = arith.constant 0.000000e+00 : f32
    %192 = vector.broadcast %cst_56 : f32 to vector<2x2xf32>
    %193 = vector.extract_strided_slice %185 {offsets = [0, 0], sizes = [2, 1], strides = [1, 1]} : vector<2x6xf32> to vector<2x1xf32>
    %194 = vector.extract_strided_slice %189 {offsets = [0, 0], sizes = [1, 2], strides = [1, 1]} : vector<2x2xf32> to vector<1x2xf32>
    %195 = vector.broadcast %193 : vector<2x1xf32> to vector<2x2xf32>
    %196 = vector.broadcast %194 : vector<1x2xf32> to vector<2x2xf32>
    %197 = arith.mulf %195, %196 : vector<2x2xf32>
    %198 = arith.addf %192, %197 : vector<2x2xf32>
    %199 = vector.extract_strided_slice %185 {offsets = [0, 1], sizes = [2, 1], strides = [1, 1]} : vector<2x6xf32> to vector<2x1xf32>
    %200 = vector.extract_strided_slice %189 {offsets = [1, 0], sizes = [1, 2], strides = [1, 1]} : vector<2x2xf32> to vector<1x2xf32>
    %201 = vector.broadcast %199 : vector<2x1xf32> to vector<2x2xf32>
    %202 = vector.broadcast %200 : vector<1x2xf32> to vector<2x2xf32>
    %203 = arith.mulf %201, %202 : vector<2x2xf32>
    %204 = arith.addf %198, %203 : vector<2x2xf32>
    %205 = vector.extract_strided_slice %185 {offsets = [0, 2], sizes = [2, 1], strides = [1, 1]} : vector<2x6xf32> to vector<2x1xf32>
    %206 = vector.extract_strided_slice %190 {offsets = [0, 0], sizes = [1, 2], strides = [1, 1]} : vector<2x2xf32> to vector<1x2xf32>
    %207 = vector.broadcast %205 : vector<2x1xf32> to vector<2x2xf32>
    %208 = vector.broadcast %206 : vector<1x2xf32> to vector<2x2xf32>
    %209 = arith.mulf %207, %208 : vector<2x2xf32>
    %210 = arith.addf %204, %209 : vector<2x2xf32>
    %211 = vector.extract_strided_slice %185 {offsets = [0, 3], sizes = [2, 1], strides = [1, 1]} : vector<2x6xf32> to vector<2x1xf32>
    %212 = vector.extract_strided_slice %190 {offsets = [1, 0], sizes = [1, 2], strides = [1, 1]} : vector<2x2xf32> to vector<1x2xf32>
    %213 = vector.broadcast %211 : vector<2x1xf32> to vector<2x2xf32>
    %214 = vector.broadcast %212 : vector<1x2xf32> to vector<2x2xf32>
    %215 = arith.mulf %213, %214 : vector<2x2xf32>
    %216 = arith.addf %210, %215 : vector<2x2xf32>
    %217 = vector.extract_strided_slice %185 {offsets = [0, 4], sizes = [2, 1], strides = [1, 1]} : vector<2x6xf32> to vector<2x1xf32>
    %218 = vector.extract_strided_slice %191 {offsets = [0, 0], sizes = [1, 2], strides = [1, 1]} : vector<2x2xf32> to vector<1x2xf32>
    %219 = vector.broadcast %217 : vector<2x1xf32> to vector<2x2xf32>
    %220 = vector.broadcast %218 : vector<1x2xf32> to vector<2x2xf32>
    %221 = arith.mulf %219, %220 : vector<2x2xf32>
    %222 = arith.addf %216, %221 : vector<2x2xf32>
    %223 = vector.extract_strided_slice %185 {offsets = [0, 5], sizes = [2, 1], strides = [1, 1]} : vector<2x6xf32> to vector<2x1xf32>
    %224 = vector.extract_strided_slice %191 {offsets = [1, 0], sizes = [1, 2], strides = [1, 1]} : vector<2x2xf32> to vector<1x2xf32>
    %225 = vector.broadcast %223 : vector<2x1xf32> to vector<2x2xf32>
    %226 = vector.broadcast %224 : vector<1x2xf32> to vector<2x2xf32>
    %227 = arith.mulf %225, %226 : vector<2x2xf32>
    %228 = arith.addf %222, %227 : vector<2x2xf32>
    %229 = vector.broadcast %186 : vector<2x1xf32> to vector<2x2xf32>
    %230 = arith.addf %228, %229 : vector<2x2xf32>
    %cst_57 = arith.constant 0.000000e+00 : f32
    %231 = vector.broadcast %cst_57 : f32 to vector<2x2xf32>
    %232 = arith.maximumf %230, %231 : vector<2x2xf32>
    %233 = tpu.iota {dimensions = array<i32: 0>} : vector<2x4xi32>
    %234 = tpu.iota {dimensions = array<i32: 1>} : vector<2x4xi32>
    %c2_i32_58 = arith.constant 2 : i32
    %235 = vector.broadcast %c2_i32_58 : i32 to vector<2x4xi32>
    %236 = arith.muli %235, %233 : vector<2x4xi32>
    %237 = arith.cmpi eq, %234, %236 : vector<2x4xi32>
    %c2_i32_59 = arith.constant 2 : i32
    %238 = vector.broadcast %c2_i32_59 : i32 to vector<2x4xi32>
    %239 = arith.muli %238, %233 : vector<2x4xi32>
    %c1_i32_60 = arith.constant 1 : i32
    %240 = vector.broadcast %c1_i32_60 : i32 to vector<2x4xi32>
    %241 = arith.addi %239, %240 : vector<2x4xi32>
    %242 = arith.cmpi eq, %234, %241 : vector<2x4xi32>
    %243 = arith.ori %237, %242 : vector<2x4xi1>
    %cst_61 = arith.constant 1.000000e+00 : f32
    %cst_62 = arith.constant 0.000000e+00 : f32
    %244 = vector.broadcast %cst_61 : f32 to vector<2x4xf32>
    %245 = vector.broadcast %cst_62 : f32 to vector<2x4xf32>
    %246 = arith.select %243, %244, %245 : vector<2x4xi1>, vector<2x4xf32>
    %cst_63 = arith.constant dense<0.000000e+00> : vector<2x4xf32>
    %247 = tpu.matmul %232, %246, %cst_63 {dimension_numbers = #tpu.dot_dimension_numbers<[1], [0], [0], [1], [0, 0, 1, 1], [], []>} : vector<2x2xf32>, vector<2x4xf32>, vector<2x4xf32> -> vector<2x4xf32>
    %c0_64 = arith.constant 0 : index
    %c0_65 = arith.constant 0 : index
    %248 = vector.load %arg12[%c0_64, %c0_65] : memref<4x6xf32, #tpu.memory_space<vmem>>, vector<4x6xf32>
    %c0_66 = arith.constant 0 : index
    %c0_67 = arith.constant 0 : index
    %249 = vector.load %arg13[%c0_66, %c0_67] : memref<4x1xf32, #tpu.memory_space<vmem>>, vector<4x1xf32>
    %cst_68 = arith.constant 0.000000e+00 : f32
    %250 = vector.broadcast %cst_68 : f32 to vector<2x1xf32>
    %251 = tpu.concatenate %250, %247, %250 in 1 : vector<2x1xf32>, vector<2x4xf32>, vector<2x1xf32> -> vector<2x6xf32>
    %252 = vector.extract_strided_slice %251 {offsets = [0, 0], sizes = [2, 4], strides = [1, 1]} : vector<2x6xf32> to vector<2x4xf32>
    %253 = vector.extract_strided_slice %251 {offsets = [0, 1], sizes = [2, 4], strides = [1, 1]} : vector<2x6xf32> to vector<2x4xf32>
    %254 = vector.extract_strided_slice %251 {offsets = [0, 2], sizes = [2, 4], strides = [1, 1]} : vector<2x6xf32> to vector<2x4xf32>
    %cst_69 = arith.constant 0.000000e+00 : f32
    %255 = vector.broadcast %cst_69 : f32 to vector<4x4xf32>
    %256 = vector.extract_strided_slice %248 {offsets = [0, 0], sizes = [4, 1], strides = [1, 1]} : vector<4x6xf32> to vector<4x1xf32>
    %257 = vector.extract_strided_slice %252 {offsets = [0, 0], sizes = [1, 4], strides = [1, 1]} : vector<2x4xf32> to vector<1x4xf32>
    %258 = vector.broadcast %256 : vector<4x1xf32> to vector<4x4xf32>
    %259 = vector.broadcast %257 : vector<1x4xf32> to vector<4x4xf32>
    %260 = arith.mulf %258, %259 : vector<4x4xf32>
    %261 = arith.addf %255, %260 : vector<4x4xf32>
    %262 = vector.extract_strided_slice %248 {offsets = [0, 1], sizes = [4, 1], strides = [1, 1]} : vector<4x6xf32> to vector<4x1xf32>
    %263 = vector.extract_strided_slice %252 {offsets = [1, 0], sizes = [1, 4], strides = [1, 1]} : vector<2x4xf32> to vector<1x4xf32>
    %264 = vector.broadcast %262 : vector<4x1xf32> to vector<4x4xf32>
    %265 = vector.broadcast %263 : vector<1x4xf32> to vector<4x4xf32>
    %266 = arith.mulf %264, %265 : vector<4x4xf32>
    %267 = arith.addf %261, %266 : vector<4x4xf32>
    %268 = vector.extract_strided_slice %248 {offsets = [0, 2], sizes = [4, 1], strides = [1, 1]} : vector<4x6xf32> to vector<4x1xf32>
    %269 = vector.extract_strided_slice %253 {offsets = [0, 0], sizes = [1, 4], strides = [1, 1]} : vector<2x4xf32> to vector<1x4xf32>
    %270 = vector.broadcast %268 : vector<4x1xf32> to vector<4x4xf32>
    %271 = vector.broadcast %269 : vector<1x4xf32> to vector<4x4xf32>
    %272 = arith.mulf %270, %271 : vector<4x4xf32>
    %273 = arith.addf %267, %272 : vector<4x4xf32>
    %274 = vector.extract_strided_slice %248 {offsets = [0, 3], sizes = [4, 1], strides = [1, 1]} : vector<4x6xf32> to vector<4x1xf32>
    %275 = vector.extract_strided_slice %253 {offsets = [1, 0], sizes = [1, 4], strides = [1, 1]} : vector<2x4xf32> to vector<1x4xf32>
    %276 = vector.broadcast %274 : vector<4x1xf32> to vector<4x4xf32>
    %277 = vector.broadcast %275 : vector<1x4xf32> to vector<4x4xf32>
    %278 = arith.mulf %276, %277 : vector<4x4xf32>
    %279 = arith.addf %273, %278 : vector<4x4xf32>
    %280 = vector.extract_strided_slice %248 {offsets = [0, 4], sizes = [4, 1], strides = [1, 1]} : vector<4x6xf32> to vector<4x1xf32>
    %281 = vector.extract_strided_slice %254 {offsets = [0, 0], sizes = [1, 4], strides = [1, 1]} : vector<2x4xf32> to vector<1x4xf32>
    %282 = vector.broadcast %280 : vector<4x1xf32> to vector<4x4xf32>
    %283 = vector.broadcast %281 : vector<1x4xf32> to vector<4x4xf32>
    %284 = arith.mulf %282, %283 : vector<4x4xf32>
    %285 = arith.addf %279, %284 : vector<4x4xf32>
    %286 = vector.extract_strided_slice %248 {offsets = [0, 5], sizes = [4, 1], strides = [1, 1]} : vector<4x6xf32> to vector<4x1xf32>
    %287 = vector.extract_strided_slice %254 {offsets = [1, 0], sizes = [1, 4], strides = [1, 1]} : vector<2x4xf32> to vector<1x4xf32>
    %288 = vector.broadcast %286 : vector<4x1xf32> to vector<4x4xf32>
    %289 = vector.broadcast %287 : vector<1x4xf32> to vector<4x4xf32>
    %290 = arith.mulf %288, %289 : vector<4x4xf32>
    %291 = arith.addf %285, %290 : vector<4x4xf32>
    %292 = vector.broadcast %249 : vector<4x1xf32> to vector<4x4xf32>
    %293 = arith.addf %291, %292 : vector<4x4xf32>
    %cst_70 = arith.constant 0.000000e+00 : f32
    %294 = vector.broadcast %cst_70 : f32 to vector<4x4xf32>
    %295 = arith.maximumf %293, %294 : vector<4x4xf32>
    %296 = tpu.iota {dimensions = array<i32: 0>} : vector<4x8xi32>
    %297 = tpu.iota {dimensions = array<i32: 1>} : vector<4x8xi32>
    %c2_i32_71 = arith.constant 2 : i32
    %298 = vector.broadcast %c2_i32_71 : i32 to vector<4x8xi32>
    %299 = arith.muli %298, %296 : vector<4x8xi32>
    %300 = arith.cmpi eq, %297, %299 : vector<4x8xi32>
    %c2_i32_72 = arith.constant 2 : i32
    %301 = vector.broadcast %c2_i32_72 : i32 to vector<4x8xi32>
    %302 = arith.muli %301, %296 : vector<4x8xi32>
    %c1_i32_73 = arith.constant 1 : i32
    %303 = vector.broadcast %c1_i32_73 : i32 to vector<4x8xi32>
    %304 = arith.addi %302, %303 : vector<4x8xi32>
    %305 = arith.cmpi eq, %297, %304 : vector<4x8xi32>
    %306 = arith.ori %300, %305 : vector<4x8xi1>
    %cst_74 = arith.constant 1.000000e+00 : f32
    %cst_75 = arith.constant 0.000000e+00 : f32
    %307 = vector.broadcast %cst_74 : f32 to vector<4x8xf32>
    %308 = vector.broadcast %cst_75 : f32 to vector<4x8xf32>
    %309 = arith.select %306, %307, %308 : vector<4x8xi1>, vector<4x8xf32>
    %cst_76 = arith.constant dense<0.000000e+00> : vector<4x8xf32>
    %310 = tpu.matmul %295, %309, %cst_76 {dimension_numbers = #tpu.dot_dimension_numbers<[1], [0], [0], [1], [0, 0, 1, 1], [], []>} : vector<4x4xf32>, vector<4x8xf32>, vector<4x8xf32> -> vector<4x8xf32>
    %c0_77 = arith.constant 0 : index
    %c0_78 = arith.constant 0 : index
    %311 = vector.load %arg14[%c0_77, %c0_78] : memref<32x12xf32, #tpu.memory_space<vmem>>, vector<32x12xf32>
    %c0_79 = arith.constant 0 : index
    %c0_80 = arith.constant 0 : index
    %312 = vector.load %arg15[%c0_79, %c0_80] : memref<32x1xf32, #tpu.memory_space<vmem>>, vector<32x1xf32>
    %cst_81 = arith.constant 0.000000e+00 : f32
    %313 = vector.broadcast %cst_81 : f32 to vector<4x1xf32>
    %314 = tpu.concatenate %313, %310, %313 in 1 : vector<4x1xf32>, vector<4x8xf32>, vector<4x1xf32> -> vector<4x10xf32>
    %315 = vector.extract_strided_slice %314 {offsets = [0, 0], sizes = [4, 8], strides = [1, 1]} : vector<4x10xf32> to vector<4x8xf32>
    %316 = vector.extract_strided_slice %314 {offsets = [0, 1], sizes = [4, 8], strides = [1, 1]} : vector<4x10xf32> to vector<4x8xf32>
    %317 = vector.extract_strided_slice %314 {offsets = [0, 2], sizes = [4, 8], strides = [1, 1]} : vector<4x10xf32> to vector<4x8xf32>
    %318 = tpu.concatenate %315, %316, %317 in 0 : vector<4x8xf32>, vector<4x8xf32>, vector<4x8xf32> -> vector<12x8xf32>
    %cst_82 = arith.constant dense<0.000000e+00> : vector<32x8xf32>
    %319 = tpu.matmul %311, %318, %cst_82 {dimension_numbers = #tpu.dot_dimension_numbers<[1], [0], [0], [1], [0, 0, 1, 1], [], []>} : vector<32x12xf32>, vector<12x8xf32>, vector<32x8xf32> -> vector<32x8xf32>
    %320 = vector.broadcast %312 : vector<32x1xf32> to vector<32x8xf32>
    %321 = arith.addf %319, %320 : vector<32x8xf32>
    %cst_83 = arith.constant 0.000000e+00 : f32
    %322 = vector.broadcast %cst_83 : f32 to vector<32x8xf32>
    %323 = arith.maximumf %321, %322 : vector<32x8xf32>
    %324 = tpu.iota {dimensions = array<i32: 0>} : vector<8x16xi32>
    %325 = tpu.iota {dimensions = array<i32: 1>} : vector<8x16xi32>
    %c2_i32_84 = arith.constant 2 : i32
    %326 = vector.broadcast %c2_i32_84 : i32 to vector<8x16xi32>
    %327 = arith.muli %326, %324 : vector<8x16xi32>
    %328 = arith.cmpi eq, %325, %327 : vector<8x16xi32>
    %c2_i32_85 = arith.constant 2 : i32
    %329 = vector.broadcast %c2_i32_85 : i32 to vector<8x16xi32>
    %330 = arith.muli %329, %324 : vector<8x16xi32>
    %c1_i32_86 = arith.constant 1 : i32
    %331 = vector.broadcast %c1_i32_86 : i32 to vector<8x16xi32>
    %332 = arith.addi %330, %331 : vector<8x16xi32>
    %333 = arith.cmpi eq, %325, %332 : vector<8x16xi32>
    %334 = arith.ori %328, %333 : vector<8x16xi1>
    %cst_87 = arith.constant 1.000000e+00 : f32
    %cst_88 = arith.constant 0.000000e+00 : f32
    %335 = vector.broadcast %cst_87 : f32 to vector<8x16xf32>
    %336 = vector.broadcast %cst_88 : f32 to vector<8x16xf32>
    %337 = arith.select %334, %335, %336 : vector<8x16xi1>, vector<8x16xf32>
    %cst_89 = arith.constant dense<0.000000e+00> : vector<32x16xf32>
    %338 = tpu.matmul %323, %337, %cst_89 {dimension_numbers = #tpu.dot_dimension_numbers<[1], [0], [0], [1], [0, 0, 1, 1], [], []>} : vector<32x8xf32>, vector<8x16xf32>, vector<32x16xf32> -> vector<32x16xf32>
    %c0_90 = arith.constant 0 : index
    %c0_91 = arith.constant 0 : index
    %339 = vector.load %arg16[%c0_90, %c0_91] : memref<64x96xf32, #tpu.memory_space<vmem>>, vector<64x96xf32>
    %c0_92 = arith.constant 0 : index
    %c0_93 = arith.constant 0 : index
    %340 = vector.load %arg17[%c0_92, %c0_93] : memref<64x1xf32, #tpu.memory_space<vmem>>, vector<64x1xf32>
    %cst_94 = arith.constant 0.000000e+00 : f32
    %341 = vector.broadcast %cst_94 : f32 to vector<32x1xf32>
    %342 = tpu.concatenate %341, %338, %341 in 1 : vector<32x1xf32>, vector<32x16xf32>, vector<32x1xf32> -> vector<32x18xf32>
    %343 = vector.extract_strided_slice %342 {offsets = [0, 0], sizes = [32, 16], strides = [1, 1]} : vector<32x18xf32> to vector<32x16xf32>
    %344 = vector.extract_strided_slice %342 {offsets = [0, 1], sizes = [32, 16], strides = [1, 1]} : vector<32x18xf32> to vector<32x16xf32>
    %345 = vector.extract_strided_slice %342 {offsets = [0, 2], sizes = [32, 16], strides = [1, 1]} : vector<32x18xf32> to vector<32x16xf32>
    %346 = tpu.concatenate %343, %344, %345 in 0 : vector<32x16xf32>, vector<32x16xf32>, vector<32x16xf32> -> vector<96x16xf32>
    %cst_95 = arith.constant dense<0.000000e+00> : vector<64x16xf32>
    %347 = tpu.matmul %339, %346, %cst_95 {dimension_numbers = #tpu.dot_dimension_numbers<[1], [0], [0], [1], [0, 0, 1, 1], [], []>} : vector<64x96xf32>, vector<96x16xf32>, vector<64x16xf32> -> vector<64x16xf32>
    %348 = vector.broadcast %340 : vector<64x1xf32> to vector<64x16xf32>
    %349 = arith.addf %347, %348 : vector<64x16xf32>
    %cst_96 = arith.constant 0.000000e+00 : f32
    %350 = vector.broadcast %cst_96 : f32 to vector<64x16xf32>
    %351 = arith.maximumf %349, %350 : vector<64x16xf32>
    %352 = tpu.iota {dimensions = array<i32: 0>} : vector<16x32xi32>
    %353 = tpu.iota {dimensions = array<i32: 1>} : vector<16x32xi32>
    %c2_i32_97 = arith.constant 2 : i32
    %354 = vector.broadcast %c2_i32_97 : i32 to vector<16x32xi32>
    %355 = arith.muli %354, %352 : vector<16x32xi32>
    %356 = arith.cmpi eq, %353, %355 : vector<16x32xi32>
    %c2_i32_98 = arith.constant 2 : i32
    %357 = vector.broadcast %c2_i32_98 : i32 to vector<16x32xi32>
    %358 = arith.muli %357, %352 : vector<16x32xi32>
    %c1_i32_99 = arith.constant 1 : i32
    %359 = vector.broadcast %c1_i32_99 : i32 to vector<16x32xi32>
    %360 = arith.addi %358, %359 : vector<16x32xi32>
    %361 = arith.cmpi eq, %353, %360 : vector<16x32xi32>
    %362 = arith.ori %356, %361 : vector<16x32xi1>
    %cst_100 = arith.constant 1.000000e+00 : f32
    %cst_101 = arith.constant 0.000000e+00 : f32
    %363 = vector.broadcast %cst_100 : f32 to vector<16x32xf32>
    %364 = vector.broadcast %cst_101 : f32 to vector<16x32xf32>
    %365 = arith.select %362, %363, %364 : vector<16x32xi1>, vector<16x32xf32>
    %cst_102 = arith.constant dense<0.000000e+00> : vector<64x32xf32>
    %366 = tpu.matmul %351, %365, %cst_102 {dimension_numbers = #tpu.dot_dimension_numbers<[1], [0], [0], [1], [0, 0, 1, 1], [], []>} : vector<64x16xf32>, vector<16x32xf32>, vector<64x32xf32> -> vector<64x32xf32>
    %c0_103 = arith.constant 0 : index
    %c0_104 = arith.constant 0 : index
    %367 = vector.load %arg18[%c0_103, %c0_104] : memref<2x192xf32, #tpu.memory_space<vmem>>, vector<2x192xf32>
    %c0_105 = arith.constant 0 : index
    %c0_106 = arith.constant 0 : index
    %368 = vector.load %arg19[%c0_105, %c0_106] : memref<2x1xf32, #tpu.memory_space<vmem>>, vector<2x1xf32>
    %cst_107 = arith.constant 0.000000e+00 : f32
    %369 = vector.broadcast %cst_107 : f32 to vector<64x1xf32>
    %370 = tpu.concatenate %369, %366, %369 in 1 : vector<64x1xf32>, vector<64x32xf32>, vector<64x1xf32> -> vector<64x34xf32>
    %371 = vector.extract_strided_slice %370 {offsets = [0, 0], sizes = [64, 32], strides = [1, 1]} : vector<64x34xf32> to vector<64x32xf32>
    %372 = vector.extract_strided_slice %370 {offsets = [0, 1], sizes = [64, 32], strides = [1, 1]} : vector<64x34xf32> to vector<64x32xf32>
    %373 = vector.extract_strided_slice %370 {offsets = [0, 2], sizes = [64, 32], strides = [1, 1]} : vector<64x34xf32> to vector<64x32xf32>
    %374 = tpu.concatenate %371, %372, %373 in 0 : vector<64x32xf32>, vector<64x32xf32>, vector<64x32xf32> -> vector<192x32xf32>
    %cst_108 = arith.constant dense<0.000000e+00> : vector<2x32xf32>
    %375 = tpu.matmul %367, %374, %cst_108 {dimension_numbers = #tpu.dot_dimension_numbers<[1], [0], [0], [1], [0, 0, 1, 1], [], []>} : vector<2x192xf32>, vector<192x32xf32>, vector<2x32xf32> -> vector<2x32xf32>
    %376 = vector.broadcast %368 : vector<2x1xf32> to vector<2x32xf32>
    %377 = arith.addf %375, %376 : vector<2x32xf32>
    %378 = vector.extract_strided_slice %377 {offsets = [0, 4], sizes = [2, 28], strides = [1, 1]} : vector<2x32xf32> to vector<2x28xf32>
    %c0_109 = arith.constant 0 : index
    %c0_110 = arith.constant 0 : index
    %c0_111 = arith.constant 0 : index
    %379 = vector.load %arg20[%c0_109, %c0_110, %c0_111] : memref<1x2x28xf32, #tpu.memory_space<vmem>>, vector<1x2x28xf32>
    %380 = vector.shape_cast %379 : vector<1x2x28xf32> to vector<2x28xf32>
    %381 = vector.shape_cast %378 : vector<2x28xf32> to vector<1x2x28xf32>
    tpu.vector_store %arg20[%c0_109, %c0_110, %c0_111], %381 {strides = array<i32>} : memref<1x2x28xf32, #tpu.memory_space<vmem>>, vector<1x2x28xf32>,
    return
  }
  func.func @transform_0(%arg0: i32) -> (i32, i32, i32) {
    %c0_i32 = arith.constant 0 : i32
    %c0_i32_0 = arith.constant 0 : i32
    %c0_i32_1 = arith.constant 0 : i32
    return %arg0, %c0_i32, %c0_i32_0 : i32, i32, i32
  }
  func.func @transform_1(%arg0: i32) -> (i32, i32) {
    %c0_i32 = arith.constant 0 : i32
    %c0_i32_0 = arith.constant 0 : i32
    %c0_i32_1 = arith.constant 0 : i32
    return %c0_i32, %c0_i32_0 : i32, i32
  }
  func.func @transform_2(%arg0: i32) -> (i32, i32) {
    %c0_i32 = arith.constant 0 : i32
    %c0_i32_0 = arith.constant 0 : i32
    %c0_i32_1 = arith.constant 0 : i32
    return %c0_i32, %c0_i32_0 : i32, i32
  }
  func.func @transform_3(%arg0: i32) -> (i32, i32) {
    %c0_i32 = arith.constant 0 : i32
    %c0_i32_0 = arith.constant 0 : i32
    %c0_i32_1 = arith.constant 0 : i32
    return %c0_i32, %c0_i32_0 : i32, i32
  }
  func.func @transform_4(%arg0: i32) -> (i32, i32) {
    %c0_i32 = arith.constant 0 : i32
    %c0_i32_0 = arith.constant 0 : i32
    %c0_i32_1 = arith.constant 0 : i32
    return %c0_i32, %c0_i32_0 : i32, i32
  }
  func.func @transform_5(%arg0: i32) -> (i32, i32) {
    %c0_i32 = arith.constant 0 : i32
    %c0_i32_0 = arith.constant 0 : i32
    %c0_i32_1 = arith.constant 0 : i32
    return %c0_i32, %c0_i32_0 : i32, i32
  }
  func.func @transform_6(%arg0: i32) -> (i32, i32) {
    %c0_i32 = arith.constant 0 : i32
    %c0_i32_0 = arith.constant 0 : i32
    %c0_i32_1 = arith.constant 0 : i32
    return %c0_i32, %c0_i32_0 : i32, i32
  }
  func.func @transform_7(%arg0: i32) -> (i32, i32) {
    %c0_i32 = arith.constant 0 : i32
    %c0_i32_0 = arith.constant 0 : i32
    %c0_i32_1 = arith.constant 0 : i32
    return %c0_i32, %c0_i32_0 : i32, i32
  }
  func.func @transform_8(%arg0: i32) -> (i32, i32) {
    %c0_i32 = arith.constant 0 : i32
    %c0_i32_0 = arith.constant 0 : i32
    %c0_i32_1 = arith.constant 0 : i32
    return %c0_i32, %c0_i32_0 : i32, i32
  }
  func.func @transform_9(%arg0: i32) -> (i32, i32) {
    %c0_i32 = arith.constant 0 : i32
    %c0_i32_0 = arith.constant 0 : i32
    %c0_i32_1 = arith.constant 0 : i32
    return %c0_i32, %c0_i32_0 : i32, i32
  }
  func.func @transform_10(%arg0: i32) -> (i32, i32) {
    %c0_i32 = arith.constant 0 : i32
    %c0_i32_0 = arith.constant 0 : i32
    %c0_i32_1 = arith.constant 0 : i32
    return %c0_i32, %c0_i32_0 : i32, i32
  }
  func.func @transform_11(%arg0: i32) -> (i32, i32) {
    %c0_i32 = arith.constant 0 : i32
    %c0_i32_0 = arith.constant 0 : i32
    %c0_i32_1 = arith.constant 0 : i32
    return %c0_i32, %c0_i32_0 : i32, i32
  }
  func.func @transform_12(%arg0: i32) -> (i32, i32) {
    %c0_i32 = arith.constant 0 : i32
    %c0_i32_0 = arith.constant 0 : i32
    %c0_i32_1 = arith.constant 0 : i32
    return %c0_i32, %c0_i32_0 : i32, i32
  }
  func.func @transform_13(%arg0: i32) -> (i32, i32) {
    %c0_i32 = arith.constant 0 : i32
    %c0_i32_0 = arith.constant 0 : i32
    %c0_i32_1 = arith.constant 0 : i32
    return %c0_i32, %c0_i32_0 : i32, i32
  }
  func.func @transform_14(%arg0: i32) -> (i32, i32) {
    %c0_i32 = arith.constant 0 : i32
    %c0_i32_0 = arith.constant 0 : i32
    %c0_i32_1 = arith.constant 0 : i32
    return %c0_i32, %c0_i32_0 : i32, i32
  }
  func.func @transform_15(%arg0: i32) -> (i32, i32) {
    %c0_i32 = arith.constant 0 : i32
    %c0_i32_0 = arith.constant 0 : i32
    %c0_i32_1 = arith.constant 0 : i32
    return %c0_i32, %c0_i32_0 : i32, i32
  }
  func.func @transform_16(%arg0: i32) -> (i32, i32) {
    %c0_i32 = arith.constant 0 : i32
    %c0_i32_0 = arith.constant 0 : i32
    %c0_i32_1 = arith.constant 0 : i32
    return %c0_i32, %c0_i32_0 : i32, i32
  }
  func.func @transform_17(%arg0: i32) -> (i32, i32) {
    %c0_i32 = arith.constant 0 : i32
    %c0_i32_0 = arith.constant 0 : i32
    %c0_i32_1 = arith.constant 0 : i32
    return %c0_i32, %c0_i32_0 : i32, i32
  }
  func.func @transform_18(%arg0: i32) -> (i32, i32) {
    %c0_i32 = arith.constant 0 : i32
    %c0_i32_0 = arith.constant 0 : i32
    %c0_i32_1 = arith.constant 0 : i32
    return %c0_i32, %c0_i32_0 : i32, i32
  }
  func.func @transform_19(%arg0: i32) -> (i32, i32, i32) {
    %c0_i32 = arith.constant 0 : i32
    %c0_i32_0 = arith.constant 0 : i32
    %c0_i32_1 = arith.constant 0 : i32
    return %arg0, %c0_i32, %c0_i32_0 : i32, i32, i32
  }
}

</mosaic_0001>

<llo_original>
// kernel: autoencoder_1d_forward.1
$region0: #{autoencoder_1d_forward.1}
  #allocation0 [shape = 'u32[]', space=smem, size = 0x4, offset = 0x4, fixed_abs, tag = 'smem constant byte address 0x4 - core index']
  #allocation1 [shape = 'u32[144,128]{1,0:T(1,128)}', space=vmem, size = 0x12000, scoped, tag = 'internal scratch']
  %s0 = inlined_call_operand.vmem [shape: f32[2,2,24], index: 0, kind: input, shape index: {}]
  %s1 = inlined_call_operand.vmem [shape: f32[64,6], index: 1, kind: input, shape index: {}]
  %s2 = inlined_call_operand.vmem [shape: f32[64,1], index: 2, kind: input, shape index: {}]
  %s3 = inlined_call_operand.vmem [shape: f32[32,192], index: 3, kind: input, shape index: {}]
  %s4 = inlined_call_operand.vmem [shape: f32[32,1], index: 4, kind: input, shape index: {}]
  %s5 = inlined_call_operand.vmem [shape: f32[4,96], index: 5, kind: input, shape index: {}]
  %s6 = inlined_call_operand.vmem [shape: f32[4,1], index: 6, kind: input, shape index: {}]
  %s7 = inlined_call_operand.vmem [shape: f32[2,12], index: 7, kind: input, shape index: {}]
  %s8 = inlined_call_operand.vmem [shape: f32[2,1], index: 8, kind: input, shape index: {}]
  %s9 = inlined_call_operand.vmem [shape: f32[2,6], index: 9, kind: input, shape index: {}]
  %s10 = inlined_call_operand.vmem [shape: f32[2,1], index: 10, kind: input, shape index: {}]
  %s11 = inlined_call_operand.vmem [shape: f32[4,6], index: 11, kind: input, shape index: {}]
  %s12 = inlined_call_operand.vmem [shape: f32[4,1], index: 12, kind: input, shape index: {}]
  %s13 = inlined_call_operand.vmem [shape: f32[32,12], index: 13, kind: input, shape index: {}]
  %s14 = inlined_call_operand.vmem [shape: f32[32,1], index: 14, kind: input, shape index: {}]
  %s15 = inlined_call_operand.vmem [shape: f32[64,96], index: 15, kind: input, shape index: {}]
  %s16 = inlined_call_operand.vmem [shape: f32[64,1], index: 16, kind: input, shape index: {}]
  %s17 = inlined_call_operand.vmem [shape: f32[2,192], index: 17, kind: input, shape index: {}]
  %s18 = inlined_call_operand.vmem [shape: f32[2,1], index: 18, kind: input, shape index: {}]
  %s19 = inlined_call_operand.hbm [shape: f32[2,2,28], index: 19, kind: output, shape index: {}]
  %s20 = sld [smem:[#allocation0]]
  $region109: #{autoencoder_1d_forward.1} parent=0
    _
  %s22 = ssub.s32 1, %s20
  %s23 = scalar_select 0, %s22, %s20
  $region1: #{autoencoder_1d_forward.1} parent=0
    #allocation2 [shape = 'u8[2048]{0}', space=vmem, size = 0x800, scoped, tag = 'output window, operand 0']
    #allocation3 [shape = 's32[2]{0}', space=sflag, size = 0x8, scoped, tag = 'scoped memory for autoencoder_1d_forward.1']
    %24 = vsyncpa [#allocation3], 0
    %s25 = scalar_lea.sflag [#allocation3], 1
    %26 = vsyncpa %s25, 0
    loop: start=0, step=1, limit=4
    $region2: #{autoencoder_1d_forward.1} parent=1 // loop_pre_header
      _
    $region3: #{autoencoder_1d_forward.1} parent=1 // loop_header
      %s28 = sphi 0, %s32
      %p29 = scmp.ge.s32.totalorder %s28, 4
      %s38 = sphi 0, %s40
      %s41 = sphi 0, %s38
      %s42 = sphi 0, %s41
      %s58 = sphi 0, %s42
      %s62 = sphi 0, %s62
      %s64 = sphi 0, %s62
      %s65 = sphi 0, %s64
      %s79 = sphi 0, %s65
      %s83 = sphi 0, %s83
      %s85 = sphi 0, %s83
      %s86 = sphi 0, %s85
      %s100 = sphi 0, %s86
      %s104 = sphi 0, %s104
      %s106 = sphi 0, %s104
      %s107 = sphi 0, %s106
      %s121 = sphi 0, %s107
      %s125 = sphi 0, %s125
      %s127 = sphi 0, %s125
      %s128 = sphi 0, %s127
      %s142 = sphi 0, %s128
      %s146 = sphi 0, %s146
      %s148 = sphi 0, %s146
      %s149 = sphi 0, %s148
      %s163 = sphi 0, %s149
      %s167 = sphi 0, %s167
      %s169 = sphi 0, %s167
      %s170 = sphi 0, %s169
      %s184 = sphi 0, %s170
      %s188 = sphi 0, %s188
      %s190 = sphi 0, %s188
      %s191 = sphi 0, %s190
      %s205 = sphi 0, %s191
      %s209 = sphi 0, %s209
      %s211 = sphi 0, %s209
      %s212 = sphi 0, %s211
      %s226 = sphi 0, %s212
      %s230 = sphi 0, %s230
      %s232 = sphi 0, %s230
      %s233 = sphi 0, %s232
      %s247 = sphi 0, %s233
      %s251 = sphi 0, %s251
      %s253 = sphi 0, %s251
      %s254 = sphi 0, %s253
      %s268 = sphi 0, %s254
      %s272 = sphi 0, %s272
      %s274 = sphi 0, %s272
      %s275 = sphi 0, %s274
      %s289 = sphi 0, %s275
      %s293 = sphi 0, %s293
      %s295 = sphi 0, %s293
      %s296 = sphi 0, %s295
      %s310 = sphi 0, %s296
      %s314 = sphi 0, %s314
      %s316 = sphi 0, %s314
      %s317 = sphi 0, %s316
      %s331 = sphi 0, %s317
      %s335 = sphi 0, %s335
      %s337 = sphi 0, %s335
      %s338 = sphi 0, %s337
      %s352 = sphi 0, %s338
      %s356 = sphi 0, %s356
      %s358 = sphi 0, %s356
      %s359 = sphi 0, %s358
      %s373 = sphi 0, %s359
      %s377 = sphi 0, %s377
      %s379 = sphi 0, %s377
      %s380 = sphi 0, %s379
      %s394 = sphi 0, %s380
      %s398 = sphi 0, %s398
      %s400 = sphi 0, %s398
      %s401 = sphi 0, %s400
      %s415 = sphi 0, %s401
      %s419 = sphi 0, %s419
      %s421 = sphi 0, %s419
      %s422 = sphi 0, %s421
      %s436 = sphi 0, %s422
      %s442 = sphi 0, %s444
      %s445 = sphi 0, %s442
      %s446 = sphi 0, %s445
      %s462 = sphi 0, %s446
    $region4: #{autoencoder_1d_forward.1} parent=1 // loop_header_branch
      %31 = sbr.rel (%p29) target = $region8
    $region5: #{autoencoder_1d_forward.1} parent=1 // loop_body
      %s33 = ssub.s32 %s28, 1
      %s34 = ssub.s32 %s28, 2
      %s35 = sadd.s32 %s28, 1
      %s36 = ssub.s32 %s28, %s35
      %p37 = scmp.eq.s32.totalorder %s36, 0
      %s39 = sadd.s32 %s38, 1
      %s40 = scalar_select %p37, %s38, %s39
      %p43 = pneg %p37
      %p44 = scmp.eq.s32.totalorder %s28, 1
      %p45 = por %p43, %p44
      %p46 = scmp.ne.s32.totalorder %s38, %s41
      %p47 = scmp.eq.s32.totalorder %s28, 0
      %p48 = por %p46, %p47
      %p49 = scmp.ne.s32.totalorder %s38, %s41
      %p50 = scmp.eq.s32.totalorder %s33, 1
      %p51 = por %p49, %p50
      %p52 = scmp.ne.s32.totalorder %s41, %s42
      %p53 = scmp.eq.s32.totalorder %s33, 0
      %p54 = por %p52, %p53
      %p55 = scmp.ne.s32.totalorder %s41, %s42
      %p56 = scmp.eq.s32.totalorder %s34, 1
      %p57 = por %p55, %p56
      %p59 = scmp.ne.s32.totalorder %s42, %s58
      %p60 = scmp.eq.s32.totalorder %s34, 0
      %p61 = por %p59, %p60
      %s63 = sadd.s32 %s62, 1
      %p66 = scmp.eq.s32.totalorder %s28, 1
      %p67 = scmp.ne.s32.totalorder %s62, %s64
      %p68 = scmp.eq.s32.totalorder %s28, 0
      %p69 = por %p67, %p68
      %p70 = scmp.ne.s32.totalorder %s62, %s64
      %p71 = scmp.eq.s32.totalorder %s33, 1
      %p72 = por %p70, %p71
      %p73 = scmp.ne.s32.totalorder %s64, %s65
      %p74 = scmp.eq.s32.totalorder %s33, 0
      %p75 = por %p73, %p74
      %p76 = scmp.ne.s32.totalorder %s64, %s65
      %p77 = scmp.eq.s32.totalorder %s34, 1
      %p78 = por %p76, %p77
      %p80 = scmp.ne.s32.totalorder %s65, %s79
      %p81 = scmp.eq.s32.totalorder %s34, 0
      %p82 = por %p80, %p81
      %s84 = sadd.s32 %s83, 1
      %p87 = scmp.eq.s32.totalorder %s28, 1
      %p88 = scmp.ne.s32.totalorder %s83, %s85
      %p89 = scmp.eq.s32.totalorder %s28, 0
      %p90 = por %p88, %p89
      %p91 = scmp.ne.s32.totalorder %s83, %s85
      %p92 = scmp.eq.s32.totalorder %s33, 1
      %p93 = por %p91, %p92
      %p94 = scmp.ne.s32.totalorder %s85, %s86
      %p95 = scmp.eq.s32.totalorder %s33, 0
      %p96 = por %p94, %p95
      %p97 = scmp.ne.s32.totalorder %s85, %s86
      %p98 = scmp.eq.s32.totalorder %s34, 1
      %p99 = por %p97, %p98
      %p101 = scmp.ne.s32.totalorder %s86, %s100
      %p102 = scmp.eq.s32.totalorder %s34, 0
      %p103 = por %p101, %p102
      %s105 = sadd.s32 %s104, 1
      %p108 = scmp.eq.s32.totalorder %s28, 1
      %p109 = scmp.ne.s32.totalorder %s104, %s106
      %p110 = scmp.eq.s32.totalorder %s28, 0
      %p111 = por %p109, %p110
      %p112 = scmp.ne.s32.totalorder %s104, %s106
      %p113 = scmp.eq.s32.totalorder %s33, 1
      %p114 = por %p112, %p113
      %p115 = scmp.ne.s32.totalorder %s106, %s107
      %p116 = scmp.eq.s32.totalorder %s33, 0
      %p117 = por %p115, %p116
      %p118 = scmp.ne.s32.totalorder %s106, %s107
      %p119 = scmp.eq.s32.totalorder %s34, 1
      %p120 = por %p118, %p119
      %p122 = scmp.ne.s32.totalorder %s107, %s121
      %p123 = scmp.eq.s32.totalorder %s34, 0
      %p124 = por %p122, %p123
      %s126 = sadd.s32 %s125, 1
      %p129 = scmp.eq.s32.totalorder %s28, 1
      %p130 = scmp.ne.s32.totalorder %s125, %s127
      %p131 = scmp.eq.s32.totalorder %s28, 0
      %p132 = por %p130, %p131
      %p133 = scmp.ne.s32.totalorder %s125, %s127
      %p134 = scmp.eq.s32.totalorder %s33, 1
      %p135 = por %p133, %p134
      %p136 = scmp.ne.s32.totalorder %s127, %s128
      %p137 = scmp.eq.s32.totalorder %s33, 0
      %p138 = por %p136, %p137
      %p139 = scmp.ne.s32.totalorder %s127, %s128
      %p140 = scmp.eq.s32.totalorder %s34, 1
      %p141 = por %p139, %p140
      %p143 = scmp.ne.s32.totalorder %s128, %s142
      %p144 = scmp.eq.s32.totalorder %s34, 0
      %p145 = por %p143, %p144
      %s147 = sadd.s32 %s146, 1
      %p150 = scmp.eq.s32.totalorder %s28, 1
      %p151 = scmp.ne.s32.totalorder %s146, %s148
      %p152 = scmp.eq.s32.totalorder %s28, 0
      %p153 = por %p151, %p152
      %p154 = scmp.ne.s32.totalorder %s146, %s148
      %p155 = scmp.eq.s32.totalorder %s33, 1
      %p156 = por %p154, %p155
      %p157 = scmp.ne.s32.totalorder %s148, %s149
      %p158 = scmp.eq.s32.totalorder %s33, 0
      %p159 = por %p157, %p158
      %p160 = scmp.ne.s32.totalorder %s148, %s149
      %p161 = scmp.eq.s32.totalorder %s34, 1
      %p162 = por %p160, %p161
      %p164 = scmp.ne.s32.totalorder %s149, %s163
      %p165 = scmp.eq.s32.totalorder %s34, 0
      %p166 = por %p164, %p165
      %s168 = sadd.s32 %s167, 1
      %p171 = scmp.eq.s32.totalorder %s28, 1
      %p172 = scmp.ne.s32.totalorder %s167, %s169
      %p173 = scmp.eq.s32.totalorder %s28, 0
      %p174 = por %p172, %p173
      %p175 = scmp.ne.s32.totalorder %s167, %s169
      %p176 = scmp.eq.s32.totalorder %s33, 1
      %p177 = por %p175, %p176
      %p178 = scmp.ne.s32.totalorder %s169, %s170
      %p179 = scmp.eq.s32.totalorder %s33, 0
      %p180 = por %p178, %p179
      %p181 = scmp.ne.s32.totalorder %s169, %s170
      %p182 = scmp.eq.s32.totalorder %s34, 1
      %p183 = por %p181, %p182
      %p185 = scmp.ne.s32.totalorder %s170, %s184
      %p186 = scmp.eq.s32.totalorder %s34, 0
      %p187 = por %p185, %p186
      %s189 = sadd.s32 %s188, 1
      %p192 = scmp.eq.s32.totalorder %s28, 1
      %p193 = scmp.ne.s32.totalorder %s188, %s190
      %p194 = scmp.eq.s32.totalorder %s28, 0
      %p195 = por %p193, %p194
      %p196 = scmp.ne.s32.totalorder %s188, %s190
      %p197 = scmp.eq.s32.totalorder %s33, 1
      %p198 = por %p196, %p197
      %p199 = scmp.ne.s32.totalorder %s190, %s191
      %p200 = scmp.eq.s32.totalorder %s33, 0
      %p201 = por %p199, %p200
      %p202 = scmp.ne.s32.totalorder %s190, %s191
      %p203 = scmp.eq.s32.totalorder %s34, 1
      %p204 = por %p202, %p203
      %p206 = scmp.ne.s32.totalorder %s191, %s205
      %p207 = scmp.eq.s32.totalorder %s34, 0
      %p208 = por %p206, %p207
      %s210 = sadd.s32 %s209, 1
      %p213 = scmp.eq.s32.totalorder %s28, 1
      %p214 = scmp.ne.s32.totalorder %s209, %s211
      %p215 = scmp.eq.s32.totalorder %s28, 0
      %p216 = por %p214, %p215
      %p217 = scmp.ne.s32.totalorder %s209, %s211
      %p218 = scmp.eq.s32.totalorder %s33, 1
      %p219 = por %p217, %p218
      %p220 = scmp.ne.s32.totalorder %s211, %s212
      %p221 = scmp.eq.s32.totalorder %s33, 0
      %p222 = por %p220, %p221
      %p223 = scmp.ne.s32.totalorder %s211, %s212
      %p224 = scmp.eq.s32.totalorder %s34, 1
      %p225 = por %p223, %p224
      %p227 = scmp.ne.s32.totalorder %s212, %s226
      %p228 = scmp.eq.s32.totalorder %s34, 0
      %p229 = por %p227, %p228
      %s231 = sadd.s32 %s230, 1
      %p234 = scmp.eq.s32.totalorder %s28, 1
      %p235 = scmp.ne.s32.totalorder %s230, %s232
      %p236 = scmp.eq.s32.totalorder %s28, 0
      %p237 = por %p235, %p236
      %p238 = scmp.ne.s32.totalorder %s230, %s232
      %p239 = scmp.eq.s32.totalorder %s33, 1
      %p240 = por %p238, %p239
      %p241 = scmp.ne.s32.totalorder %s232, %s233
      %p242 = scmp.eq.s32.totalorder %s33, 0
      %p243 = por %p241, %p242
      %p244 = scmp.ne.s32.totalorder %s232, %s233
      %p245 = scmp.eq.s32.totalorder %s34, 1
      %p246 = por %p244, %p245
      %p248 = scmp.ne.s32.totalorder %s233, %s247
      %p249 = scmp.eq.s32.totalorder %s34, 0
      %p250 = por %p248, %p249
      %s252 = sadd.s32 %s251, 1
      %p255 = scmp.eq.s32.totalorder %s28, 1
      %p256 = scmp.ne.s32.totalorder %s251, %s253
      %p257 = scmp.eq.s32.totalorder %s28, 0
      %p258 = por %p256, %p257
      %p259 = scmp.ne.s32.totalorder %s251, %s253
      %p260 = scmp.eq.s32.totalorder %s33, 1
      %p261 = por %p259, %p260
      %p262 = scmp.ne.s32.totalorder %s253, %s254
      %p263 = scmp.eq.s32.totalorder %s33, 0
      %p264 = por %p262, %p263
      %p265 = scmp.ne.s32.totalorder %s253, %s254
      %p266 = scmp.eq.s32.totalorder %s34, 1
      %p267 = por %p265, %p266
      %p269 = scmp.ne.s32.totalorder %s254, %s268
      %p270 = scmp.eq.s32.totalorder %s34, 0
      %p271 = por %p269, %p270
      %s273 = sadd.s32 %s272, 1
      %p276 = scmp.eq.s32.totalorder %s28, 1
      %p277 = scmp.ne.s32.totalorder %s272, %s274
      %p278 = scmp.eq.s32.totalorder %s28, 0
      %p279 = por %p277, %p278
      %p280 = scmp.ne.s32.totalorder %s272, %s274
      %p281 = scmp.eq.s32.totalorder %s33, 1
      %p282 = por %p280, %p281
      %p283 = scmp.ne.s32.totalorder %s274, %s275
      %p284 = scmp.eq.s32.totalorder %s33, 0
      %p285 = por %p283, %p284
      %p286 = scmp.ne.s32.totalorder %s274, %s275
      %p287 = scmp.eq.s32.totalorder %s34, 1
      %p288 = por %p286, %p287
      %p290 = scmp.ne.s32.totalorder %s275, %s289
      %p291 = scmp.eq.s32.totalorder %s34, 0
      %p292 = por %p290, %p291
      %s294 = sadd.s32 %s293, 1
      %p297 = scmp.eq.s32.totalorder %s28, 1
      %p298 = scmp.ne.s32.totalorder %s293, %s295
      %p299 = scmp.eq.s32.totalorder %s28, 0
      %p300 = por %p298, %p299
      %p301 = scmp.ne.s32.totalorder %s293, %s295
      %p302 = scmp.eq.s32.totalorder %s33, 1
      %p303 = por %p301, %p302
      %p304 = scmp.ne.s32.totalorder %s295, %s296
      %p305 = scmp.eq.s32.totalorder %s33, 0
      %p306 = por %p304, %p305
      %p307 = scmp.ne.s32.totalorder %s295, %s296
      %p308 = scmp.eq.s32.totalorder %s34, 1
      %p309 = por %p307, %p308
      %p311 = scmp.ne.s32.totalorder %s296, %s310
      %p312 = scmp.eq.s32.totalorder %s34, 0
      %p313 = por %p311, %p312
      %s315 = sadd.s32 %s314, 1
      %p318 = scmp.eq.s32.totalorder %s28, 1
      %p319 = scmp.ne.s32.totalorder %s314, %s316
      %p320 = scmp.eq.s32.totalorder %s28, 0
      %p321 = por %p319, %p320
      %p322 = scmp.ne.s32.totalorder %s314, %s316
      %p323 = scmp.eq.s32.totalorder %s33, 1
      %p324 = por %p322, %p323
      %p325 = scmp.ne.s32.totalorder %s316, %s317
      %p326 = scmp.eq.s32.totalorder %s33, 0
      %p327 = por %p325, %p326
      %p328 = scmp.ne.s32.totalorder %s316, %s317
      %p329 = scmp.eq.s32.totalorder %s34, 1
      %p330 = por %p328, %p329
      %p332 = scmp.ne.s32.totalorder %s317, %s331
      %p333 = scmp.eq.s32.totalorder %s34, 0
      %p334 = por %p332, %p333
      %s336 = sadd.s32 %s335, 1
      %p339 = scmp.eq.s32.totalorder %s28, 1
      %p340 = scmp.ne.s32.totalorder %s335, %s337
      %p341 = scmp.eq.s32.totalorder %s28, 0
      %p342 = por %p340, %p341
      %p343 = scmp.ne.s32.totalorder %s335, %s337
      %p344 = scmp.eq.s32.totalorder %s33, 1
      %p345 = por %p343, %p344
      %p346 = scmp.ne.s32.totalorder %s337, %s338
      %p347 = scmp.eq.s32.totalorder %s33, 0
      %p348 = por %p346, %p347
      %p349 = scmp.ne.s32.totalorder %s337, %s338
      %p350 = scmp.eq.s32.totalorder %s34, 1
      %p351 = por %p349, %p350
      %p353 = scmp.ne.s32.totalorder %s338, %s352
      %p354 = scmp.eq.s32.totalorder %s34, 0
      %p355 = por %p353, %p354
      %s357 = sadd.s32 %s356, 1
      %p360 = scmp.eq.s32.totalorder %s28, 1
      %p361 = scmp.ne.s32.totalorder %s356, %s358
      %p362 = scmp.eq.s32.totalorder %s28, 0
      %p363 = por %p361, %p362
      %p364 = scmp.ne.s32.totalorder %s356, %s358
      %p365 = scmp.eq.s32.totalorder %s33, 1
      %p366 = por %p364, %p365
      %p367 = scmp.ne.s32.totalorder %s358, %s359
      %p368 = scmp.eq.s32.totalorder %s33, 0
      %p369 = por %p367, %p368
      %p370 = scmp.ne.s32.totalorder %s358, %s359
      %p371 = scmp.eq.s32.totalorder %s34, 1
      %p372 = por %p370, %p371
      %p374 = scmp.ne.s32.totalorder %s359, %s373
      %p375 = scmp.eq.s32.totalorder %s34, 0
      %p376 = por %p374, %p375
      %s378 = sadd.s32 %s377, 1
      %p381 = scmp.eq.s32.totalorder %s28, 1
      %p382 = scmp.ne.s32.totalorder %s377, %s379
      %p383 = scmp.eq.s32.totalorder %s28, 0
      %p384 = por %p382, %p383
      %p385 = scmp.ne.s32.totalorder %s377, %s379
      %p386 = scmp.eq.s32.totalorder %s33, 1
      %p387 = por %p385, %p386
      %p388 = scmp.ne.s32.totalorder %s379, %s380
      %p389 = scmp.eq.s32.totalorder %s33, 0
      %p390 = por %p388, %p389
      %p391 = scmp.ne.s32.totalorder %s379, %s380
      %p392 = scmp.eq.s32.totalorder %s34, 1
      %p393 = por %p391, %p392
      %p395 = scmp.ne.s32.totalorder %s380, %s394
      %p396 = scmp.eq.s32.totalorder %s34, 0
      %p397 = por %p395, %p396
      %s399 = sadd.s32 %s398, 1
      %p402 = scmp.eq.s32.totalorder %s28, 1
      %p403 = scmp.ne.s32.totalorder %s398, %s400
      %p404 = scmp.eq.s32.totalorder %s28, 0
      %p405 = por %p403, %p404
      %p406 = scmp.ne.s32.totalorder %s398, %s400
      %p407 = scmp.eq.s32.totalorder %s33, 1
      %p408 = por %p406, %p407
      %p409 = scmp.ne.s32.totalorder %s400, %s401
      %p410 = scmp.eq.s32.totalorder %s33, 0
      %p411 = por %p409, %p410
      %p412 = scmp.ne.s32.totalorder %s400, %s401
      %p413 = scmp.eq.s32.totalorder %s34, 1
      %p414 = por %p412, %p413
      %p416 = scmp.ne.s32.totalorder %s401, %s415
      %p417 = scmp.eq.s32.totalorder %s34, 0
      %p418 = por %p416, %p417
      %s420 = sadd.s32 %s419, 1
      %p423 = scmp.eq.s32.totalorder %s28, 1
      %p424 = scmp.ne.s32.totalorder %s419, %s421
      %p425 = scmp.eq.s32.totalorder %s28, 0
      %p426 = por %p424, %p425
      %p427 = scmp.ne.s32.totalorder %s419, %s421
      %p428 = scmp.eq.s32.totalorder %s33, 1
      %p429 = por %p427, %p428
      %p430 = scmp.ne.s32.totalorder %s421, %s422
      %p431 = scmp.eq.s32.totalorder %s33, 0
      %p432 = por %p430, %p431
      %p433 = scmp.ne.s32.totalorder %s421, %s422
      %p434 = scmp.eq.s32.totalorder %s34, 1
      %p435 = por %p433, %p434
      %p437 = scmp.ne.s32.totalorder %s422, %s436
      %p438 = scmp.eq.s32.totalorder %s34, 0
      %p439 = por %p437, %p438
      %s440 = ssub.s32 %s28, %s35
      %p441 = scmp.eq.s32.totalorder %s440, 0
      %s443 = sadd.s32 %s442, 1
      %s444 = scalar_select %p441, %s442, %s443
      %p447 = pneg %p441
      %p448 = scmp.eq.s32.totalorder %s28, 1
      %p449 = por %p447, %p448
      %p450 = scmp.ne.s32.totalorder %s442, %s445
      %p451 = scmp.eq.s32.totalorder %s28, 0
      %p452 = por %p450, %p451
      %p453 = scmp.ne.s32.totalorder %s442, %s445
      %p454 = scmp.eq.s32.totalorder %s33, 1
      %p455 = por %p453, %p454
      %p456 = scmp.ne.s32.totalorder %s445, %s446
      %p457 = scmp.eq.s32.totalorder %s33, 0
      %p458 = por %p456, %p457
      %p459 = scmp.ne.s32.totalorder %s445, %s446
      %p460 = scmp.eq.s32.totalorder %s34, 1
      %p461 = por %p459, %p460
      %p463 = scmp.ne.s32.totalorder %s446, %s462
      %p464 = scmp.eq.s32.totalorder %s34, 0
      %p465 = por %p463, %p464
      %p466 = scmp.le.s32.totalorder 1, %s28
      %p467 = scmp.lt.s32.totalorder %s28, 3
      %p468 = pnand %p466, %p467
      %p469 = pneg %p468
      // Predicated region
      $region9: #{autoencoder_1d_forward.1} parent=5 // pred_check
        _
      $region10: #{autoencoder_1d_forward.1} parent=5 // pred_check_branch
        %471 = sbr.rel (%p468) target = $region12
      $region11: #{autoencoder_1d_forward.1} parent=5 // pred_region
        %s472 = ssub.s32 %s28, 1
        // Predicated region
        $region13: #{autoencoder_1d_forward.1} parent=11 // pred_check
          %p473 = pneg %p75
        $region14: #{autoencoder_1d_forward.1} parent=11 // pred_check_branch
          %475 = sbr.rel (%p473) target = $region16
        $region15: #{autoencoder_1d_forward.1} parent=11 // pred_region
          _
        $region16: #{autoencoder_1d_forward.1} parent=11 // pred_fallthru
          _
        // Predicated region
        $region17: #{autoencoder_1d_forward.1} parent=11 // pred_check
          %p476 = pneg %p96
        $region18: #{autoencoder_1d_forward.1} parent=11 // pred_check_branch
          %478 = sbr.rel (%p476) target = $region20
        $region19: #{autoencoder_1d_forward.1} parent=11 // pred_region
          _
        $region20: #{autoencoder_1d_forward.1} parent=11 // pred_fallthru
          _
        // Predicated region
        $region21: #{autoencoder_1d_forward.1} parent=11 // pred_check
          %p479 = pneg %p117
        $region22: #{autoencoder_1d_forward.1} parent=11 // pred_check_branch
          %481 = sbr.rel (%p479) target = $region24
        $region23: #{autoencoder_1d_forward.1} parent=11 // pred_region
          _
        $region24: #{autoencoder_1d_forward.1} parent=11 // pred_fallthru
          _
        // Predicated region
        $region25: #{autoencoder_1d_forward.1} parent=11 // pred_check
          %p482 = pneg %p138
        $region26: #{autoencoder_1d_forward.1} parent=11 // pred_check_branch
          %484 = sbr.rel (%p482) target = $region28
        $region27: #{autoencoder_1d_forward.1} parent=11 // pred_region
          _
        $region28: #{autoencoder_1d_forward.1} parent=11 // pred_fallthru
          _
        // Predicated region
        $region29: #{autoencoder_1d_forward.1} parent=11 // pred_check
          %p485 = pneg %p159
        $region30: #{autoencoder_1d_forward.1} parent=11 // pred_check_branch
          %487 = sbr.rel (%p485) target = $region32
        $region31: #{autoencoder_1d_forward.1} parent=11 // pred_region
          _
        $region32: #{autoencoder_1d_forward.1} parent=11 // pred_fallthru
          _
        // Predicated region
        $region33: #{autoencoder_1d_forward.1} parent=11 // pred_check
          %p488 = pneg %p180
        $region34: #{autoencoder_1d_forward.1} parent=11 // pred_check_branch
          %490 = sbr.rel (%p488) target = $region36
        $region35: #{autoencoder_1d_forward.1} parent=11 // pred_region
          _
        $region36: #{autoencoder_1d_forward.1} parent=11 // pred_fallthru
          _
        // Predicated region
        $region37: #{autoencoder_1d_forward.1} parent=11 // pred_check
          %p491 = pneg %p201
        $region38: #{autoencoder_1d_forward.1} parent=11 // pred_check_branch
          %493 = sbr.rel (%p491) target = $region40
        $region39: #{autoencoder_1d_forward.1} parent=11 // pred_region
          _
        $region40: #{autoencoder_1d_forward.1} parent=11 // pred_fallthru
          _
        // Predicated region
        $region41: #{autoencoder_1d_forward.1} parent=11 // pred_check
          %p494 = pneg %p222
        $region42: #{autoencoder_1d_forward.1} parent=11 // pred_check_branch
          %496 = sbr.rel (%p494) target = $region44
        $region43: #{autoencoder_1d_forward.1} parent=11 // pred_region
          _
        $region44: #{autoencoder_1d_forward.1} parent=11 // pred_fallthru
          _
        // Predicated region
        $region45: #{autoencoder_1d_forward.1} parent=11 // pred_check
          %p497 = pneg %p243
        $region46: #{autoencoder_1d_forward.1} parent=11 // pred_check_branch
          %499 = sbr.rel (%p497) target = $region48
        $region47: #{autoencoder_1d_forward.1} parent=11 // pred_region
          _
        $region48: #{autoencoder_1d_forward.1} parent=11 // pred_fallthru
          _
        // Predicated region
        $region49: #{autoencoder_1d_forward.1} parent=11 // pred_check
          %p500 = pneg %p264
        $region50: #{autoencoder_1d_forward.1} parent=11 // pred_check_branch
          %502 = sbr.rel (%p500) target = $region52
        $region51: #{autoencoder_1d_forward.1} parent=11 // pred_region
          _
        $region52: #{autoencoder_1d_forward.1} parent=11 // pred_fallthru
          _
        // Predicated region
        $region53: #{autoencoder_1d_forward.1} parent=11 // pred_check
          %p503 = pneg %p285
        $region54: #{autoencoder_1d_forward.1} parent=11 // pred_check_branch
          %505 = sbr.rel (%p503) target = $region56
        $region55: #{autoencoder_1d_forward.1} parent=11 // pred_region
          _
        $region56: #{autoencoder_1d_forward.1} parent=11 // pred_fallthru
          _
        // Predicated region
        $region57: #{autoencoder_1d_forward.1} parent=11 // pred_check
          %p506 = pneg %p306
        $region58: #{autoencoder_1d_forward.1} parent=11 // pred_check_branch
          %508 = sbr.rel (%p506) target = $region60
        $region59: #{autoencoder_1d_forward.1} parent=11 // pred_region
          _
        $region60: #{autoencoder_1d_forward.1} parent=11 // pred_fallthru
          _
        // Predicated region
        $region61: #{autoencoder_1d_forward.1} parent=11 // pred_check
          %p509 = pneg %p327
        $region62: #{autoencoder_1d_forward.1} parent=11 // pred_check_branch
          %511 = sbr.rel (%p509) target = $region64
        $region63: #{autoencoder_1d_forward.1} parent=11 // pred_region
          _
        $region64: #{autoencoder_1d_forward.1} parent=11 // pred_fallthru
          _
        // Predicated region
        $region65: #{autoencoder_1d_forward.1} parent=11 // pred_check
          %p512 = pneg %p348
        $region66: #{autoencoder_1d_forward.1} parent=11 // pred_check_branch
          %514 = sbr.rel (%p512) target = $region68
        $region67: #{autoencoder_1d_forward.1} parent=11 // pred_region
          _
        $region68: #{autoencoder_1d_forward.1} parent=11 // pred_fallthru
          _
        // Predicated region
        $region69: #{autoencoder_1d_forward.1} parent=11 // pred_check
          %p515 = pneg %p369
        $region70: #{autoencoder_1d_forward.1} parent=11 // pred_check_branch
          %517 = sbr.rel (%p515) target = $region72
        $region71: #{autoencoder_1d_forward.1} parent=11 // pred_region
          _
        $region72: #{autoencoder_1d_forward.1} parent=11 // pred_fallthru
          _
        // Predicated region
        $region73: #{autoencoder_1d_forward.1} parent=11 // pred_check
          %p518 = pneg %p390
        $region74: #{autoencoder_1d_forward.1} parent=11 // pred_check_branch
          %520 = sbr.rel (%p518) target = $region76
        $region75: #{autoencoder_1d_forward.1} parent=11 // pred_region
          _
        $region76: #{autoencoder_1d_forward.1} parent=11 // pred_fallthru
          _
        // Predicated region
        $region77: #{autoencoder_1d_forward.1} parent=11 // pred_check
          %p521 = pneg %p411
        $region78: #{autoencoder_1d_forward.1} parent=11 // pred_check_branch
          %523 = sbr.rel (%p521) target = $region80
        $region79: #{autoencoder_1d_forward.1} parent=11 // pred_region
          _
        $region80: #{autoencoder_1d_forward.1} parent=11 // pred_fallthru
          _
        // Predicated region
        $region81: #{autoencoder_1d_forward.1} parent=11 // pred_check
          %p524 = pneg %p432
        $region82: #{autoencoder_1d_forward.1} parent=11 // pred_check_branch
          %526 = sbr.rel (%p524) target = $region84
        $region83: #{autoencoder_1d_forward.1} parent=11 // pred_region
          _
        $region84: #{autoencoder_1d_forward.1} parent=11 // pred_fallthru
          _
      $region12: #{autoencoder_1d_forward.1} parent=5 // pred_fallthru
        _
      %p527 = scmp.lt.s32.totalorder %s28, 2
      // Predicated region
      $region85: #{autoencoder_1d_forward.1} parent=5 // pred_check
        %p528 = pneg %p527
      $region86: #{autoencoder_1d_forward.1} parent=5 // pred_check_branch
        %530 = sbr.rel (%p528) target = $region88
      $region87: #{autoencoder_1d_forward.1} parent=5 // pred_region
        // Predicated region
        $region89: #{autoencoder_1d_forward.1} parent=87 // pred_check
          %p531 = pneg %p48
        $region90: #{autoencoder_1d_forward.1} parent=87 // pred_check_branch
          %533 = sbr.rel (%p531) target = $region92
        $region91: #{autoencoder_1d_forward.1} parent=87 // pred_region
          %p534 = scmp.lt.s32.totalorder %s28, 1
          %s535 = scalar_select %p534, %s28, 1
          %s536 = smul.addr %s535, 2
          %s537 = scalar_lea.vmem %s0, %s536
        $region92: #{autoencoder_1d_forward.1} parent=87 // pred_fallthru
          _
      $region88: #{autoencoder_1d_forward.1} parent=5 // pred_fallthru
        _
      %p538 = scmp.le.s32.totalorder 1, %s28
      %p539 = scmp.lt.s32.totalorder %s28, 3
      %p540 = pnand %p538, %p539
      %p541 = pneg %p540
      // Predicated region
      $region93: #{autoencoder_1d_forward.1} parent=5 // pred_check
        _
      $region94: #{autoencoder_1d_forward.1} parent=5 // pred_check_branch
        %543 = sbr.rel (%p540) target = $region96
      $region95: #{autoencoder_1d_forward.1} parent=5 // pred_region
        %s544 = ssub.s32 %s28, 1
        %p545 = scmp.lt.s32.totalorder %s33, 1
        %s546 = scalar_select %p545, %s33, 1
        %s547 = smul.addr %s546, 2
        %s548 = scalar_lea.vmem %s0, %s547
        %p549 = pneg %p54
        %p550 = pneg %p51
        %p551 = pneg %p75
        %p552 = pneg %p72
        %p553 = pneg %p96
        %p554 = pneg %p93
        %p555 = pneg %p117
        %p556 = pneg %p114
        %p557 = pneg %p138
        %p558 = pneg %p135
        %p559 = pneg %p159
        %p560 = pneg %p156
        %p561 = pneg %p180
        %p562 = pneg %p177
        %p563 = pneg %p201
        %p564 = pneg %p198
        %p565 = pneg %p222
        %p566 = pneg %p219
        %p567 = pneg %p243
        %p568 = pneg %p240
        %p569 = pneg %p264
        %p570 = pneg %p261
        %p571 = pneg %p285
        %p572 = pneg %p282
        %p573 = pneg %p306
        %p574 = pneg %p303
        %p575 = pneg %p327
        %p576 = pneg %p324
        %p577 = pneg %p348
        %p578 = pneg %p345
        %p579 = pneg %p369
        %p580 = pneg %p366
        %p581 = pneg %p390
        %p582 = pneg %p387
        %p583 = pneg %p411
        %p584 = pneg %p408
        %p585 = pneg %p432
        %p586 = pneg %p429
        %p587 = pneg %p458
        %p588 = pneg %p455
        %s589 = sand.u32 %s445, 1
        %s590 = scalar_lea.sflag [#allocation3], %s589
        %s591 = sand.u32 %s445, 1
        %s592 = smul.addr %s591, 2
        %s593 = scalar_lea.vmem [#allocation2], %s592
        %p594 = scmp.lt.s32.totalorder %s33, 1
        %s595 = scalar_select %p594, %s33, 1
        %s596 = smul.addr %s595, 2
        %s597 = scalar_lea.vmem %s0, %s596
        %v598 = vld [vmem:[%s597] sm:$0x3]
        %v599 = vld [vmem:[%s1] sm:$0xff]
        %v600 = vld [vmem:[%s1 + $0x8] sm:$0xff]
        %v601 = vld [vmem:[%s1 + $0x10] sm:$0xff]
        %v602 = vld [vmem:[%s1 + $0x18] sm:$0xff]
        %v603 = vld [vmem:[%s1 + $0x20] sm:$0xff]
        %v604 = vld [vmem:[%s1 + $0x28] sm:$0xff]
        %v605 = vld [vmem:[%s1 + $0x30] sm:$0xff]
        %v606 = vld [vmem:[%s1 + $0x38] sm:$0xff]
        %v607 = vld [vmem:[%s2] sm:$0xff]
        %v608 = vld [vmem:[%s2 + $0x8] sm:$0xff]
        %v609 = vld [vmem:[%s2 + $0x10] sm:$0xff]
        %v610 = vld [vmem:[%s2 + $0x18] sm:$0xff]
        %v611 = vld [vmem:[%s2 + $0x20] sm:$0xff]
        %v612 = vld [vmem:[%s2 + $0x28] sm:$0xff]
        %v613 = vld [vmem:[%s2 + $0x30] sm:$0xff]
        %v614 = vld [vmem:[%s2 + $0x38] sm:$0xff]
        %616 = vrot.lane.b32.xlu0 %v598, 5
        %v617 = vpop.permute.xlu0 %616
        %vm619 = vcmask 39936
        %v620 = vsel %vm619, 0.0, %v617
        %vm621 = vcmask 236544
        %v622 = vsel %vm621, %v620, 0.0
        %v624 = vrot.slane %v622, 6
        %625 = vrot.lane.b32.xlu0 %v624, 127
        %v626 = vpop.permute.xlu0 %625
        %v628 = vrot.slane %v622, 4
        %629 = vrot.lane.b32.xlu0 %v628, 126
        %v630 = vpop.permute.xlu0 %629
        %vm632 = vcmask 1041408
        %v633 = vsel %vm632, %v622, %v626
        %vm634 = vcmask 1043456
        %v635 = vsel %vm634, %v633, %v630
        %637 = vset.pattern.permute.xlu0 0
        %638 = vperm.xlu0 %637, %v607
        %v639 = vpop.permute.xlu0 %638
        %642 = vset.pattern.permute.xlu0 0
        %643 = vperm.xlu0 %642, %v608
        %v644 = vpop.permute.xlu0 %643
        %647 = vset.pattern.permute.xlu0 0
        %648 = vperm.xlu0 %647, %v609
        %v649 = vpop.permute.xlu0 %648
        %652 = vset.pattern.permute.xlu0 0
        %653 = vperm.xlu0 %652, %v610
        %v654 = vpop.permute.xlu0 %653
        %657 = vset.pattern.permute.xlu0 0
        %658 = vperm.xlu0 %657, %v611
        %v659 = vpop.permute.xlu0 %658
        %662 = vset.pattern.permute.xlu0 0
        %663 = vperm.xlu0 %662, %v612
        %v664 = vpop.permute.xlu0 %663
        %667 = vset.pattern.permute.xlu0 0
        %668 = vperm.xlu0 %667, %v613
        %v669 = vpop.permute.xlu0 %668
        %672 = vset.pattern.permute.xlu0 0
        %673 = vperm.xlu0 %672, %v614
        %v674 = vpop.permute.xlu0 %673
        %vm676 = vcmask 48128
        %v678 = vsel %vm676, %v599, 0
        %v681 = vsel %vm676, %v600, 0
        %v684 = vsel %vm676, %v601, 0
        %v687 = vsel %vm676, %v602, 0
        %v690 = vsel %vm676, %v603, 0
        %v693 = vsel %vm676, %v604, 0
        %v696 = vsel %vm676, %v605, 0
        %v699 = vsel %vm676, %v606, 0
        %vm701 = vcmask 1045504
        %v703 = vsel %vm701, %v635, 0
        %705 = vmatprep.subr.mxu0 0.0
        %706 = vmatpush1.msra.mxu0 %v703
        %707 = vmatprep.subr.mxu0 0.0
        %708 = vmatpush1.msra.mxu0 0.0
        %709 = vmatprep.subr.mxu0 0.0
        %710 = vmatpush1.msra.mxu0 0.0
        %711 = vmatprep.subr.mxu0 0.0
        %712 = vmatpush1.msra.mxu0 0.0
        %713 = vmatprep.subr.mxu0 0.0
        %714 = vmatpush1.msra.mxu0 0.0
        %715 = vmatprep.subr.mxu0 0.0
        %716 = vmatpush1.msra.mxu0 0.0
        %717 = vmatprep.subr.mxu0 0.0
        %718 = vmatpush1.msra.mxu0 0.0
        %719 = vmatprep.subr.mxu0 0.0
        %720 = vmatpush1.msra.mxu0 0.0
        %721 = vmatprep.subr.mxu0 0.0
        %722 = vmatpush1.msra.mxu0 0.0
        %723 = vmatprep.subr.mxu0 0.0
        %724 = vmatpush1.msra.mxu0 0.0
        %725 = vmatprep.subr.mxu0 0.0
        %726 = vmatpush1.msra.mxu0 0.0
        %727 = vmatprep.subr.mxu0 0.0
        %728 = vmatpush1.msra.mxu0 0.0
        %729 = vmatprep.subr.mxu0 0.0
        %730 = vmatpush1.msra.mxu0 0.0
        %731 = vmatprep.subr.mxu0 0.0
        %732 = vmatpush1.msra.mxu0 0.0
        %733 = vmatprep.subr.mxu0 0.0
        %734 = vmatpush1.msra.mxu0 0.0
        %735 = vmatprep.subr.mxu0 0.0
        %736 = vmatpush1.msra.mxu0 0.0
        %737 = vmatprep.subr.mxu0 0.0
        %738 = vmatpush1.msra.mxu0 0.0
        %739 = vmatprep.subr.mxu0 0.0
        %740 = vmatpush1.msra.mxu0 0.0
        %741 = vmatprep.subr.mxu0 0.0
        %742 = vmatpush1.msra.mxu0 0.0
        %743 = vmatprep.subr.mxu0 0.0
        %744 = vmatpush1.msra.mxu0 0.0
        %745 = vmatprep.subr.mxu0 0.0
        %746 = vmatpush1.msra.mxu0 0.0
        %747 = vmatprep.subr.mxu0 0.0
        %748 = vmatpush1.msra.mxu0 0.0
        %749 = vmatprep.subr.mxu0 0.0
        %750 = vmatpush1.msra.mxu0 0.0
        %751 = vmatprep.subr.mxu0 0.0
        %752 = vmatpush1.msra.mxu0 0.0
        %753 = vmatprep.subr.mxu0 0.0
        %754 = vmatpush1.msra.mxu0 0.0
        %755 = vmatprep.subr.mxu0 0.0
        %756 = vmatpush1.msra.mxu0 0.0
        %757 = vmatprep.subr.mxu0 0.0
        %758 = vmatpush1.msra.mxu0 0.0
        %759 = vmatprep.subr.mxu0 0.0
        %760 = vmatpush1.msra.mxu0 0.0
        %761 = vmatprep.subr.mxu0 0.0
        %762 = vmatpush1.msra.mxu0 0.0
        %763 = vmatprep.subr.mxu0 0.0
        %764 = vmatpush1.msra.mxu0 0.0
        %765 = vmatprep.subr.mxu0 0.0
        %766 = vmatpush1.msra.mxu0 0.0
        %767 = vmatprep.subr.mxu0 0.0
        %768 = vmatpush1.msra.mxu0 0.0
        %769 = vmatprep.mubr.f32.mxu0 0.0
        %770 = vmatmul.mubr.f32.gmra.mrb[0].mxu0 %v678
        %v771 = vpop.f32.mrb[0].mxu0
        %v772 = vadd.f32 %v639, %v771
        %v773 = vpop.f32.mrb[0].mxu0
        %774 = vmatprep.mubr.f32.mxu0 0.0
        %775 = vmatmul.mubr.f32.gmra.mrb[0].mxu0 %v681
        %v776 = vpop.f32.mrb[0].mxu0
        %v777 = vadd.f32 %v644, %v776
        %v778 = vpop.f32.mrb[0].mxu0
        %779 = vmatprep.mubr.f32.mxu0 0.0
        %780 = vmatmul.mubr.f32.gmra.mrb[0].mxu0 %v684
        %v781 = vpop.f32.mrb[0].mxu0
        %v782 = vadd.f32 %v649, %v781
        %v783 = vpop.f32.mrb[0].mxu0
        %784 = vmatprep.mubr.f32.mxu0 0.0
        %785 = vmatmul.mubr.f32.gmra.mrb[0].mxu0 %v687
        %v786 = vpop.f32.mrb[0].mxu0
        %v787 = vadd.f32 %v654, %v786
        %v788 = vpop.f32.mrb[0].mxu0
        %789 = vmatprep.mubr.f32.mxu0 0.0
        %790 = vmatmul.mubr.f32.gmra.mrb[0].mxu0 %v690
        %v791 = vpop.f32.mrb[0].mxu0
        %v792 = vadd.f32 %v659, %v791
        %v793 = vpop.f32.mrb[0].mxu0
        %794 = vmatprep.mubr.f32.mxu0 0.0
        %795 = vmatmul.mubr.f32.gmra.mrb[0].mxu0 %v693
        %v796 = vpop.f32.mrb[0].mxu0
        %v797 = vadd.f32 %v664, %v796
        %v798 = vpop.f32.mrb[0].mxu0
        %799 = vmatprep.mubr.f32.mxu0 0.0
        %800 = vmatmul.mubr.f32.gmra.mrb[0].mxu0 %v696
        %v801 = vpop.f32.mrb[0].mxu0
        %v802 = vadd.f32 %v669, %v801
        %v803 = vpop.f32.mrb[0].mxu0
        %804 = vmatprep.mubr.f32.mxu0 0.0
        %805 = vmatmul.mubr.f32.gmra.mrb[0].mxu0 %v699
        %v806 = vpop.f32.mrb[0].mxu0
        %v807 = vadd.f32 %v674, %v806
        %v808 = vpop.f32.mrb[0].mxu0
        %809 = vdwg.mxu0
        %v810 = vmax.f32 %v772, 0.0
        %v811 = vmax.f32 %v777, 0.0
        %v812 = vmax.f32 %v782, 0.0
        %v813 = vmax.f32 %v787, 0.0
        %v814 = vmax.f32 %v792, 0.0
        %v815 = vmax.f32 %v797, 0.0
        %v816 = vmax.f32 %v802, 0.0
        %v817 = vmax.f32 %v807, 0.0
        %v818 = vlaneseq
        %v819 = vshrl.u32 %v818, 7
        %v820 = vadd.s32 %v819, 8
        %v821 = vadd.s32 %v819, 16
        %v822 = vadd.s32 %v819, 24
        %v823 = vlaneseq
        %v824 = vand.u32 %v823, 127
        %v825 = vmul.u32 %v824, 2
        %vm826 = vcmp.eq.s32.totalorder %v819, %v825
        %vm827 = vcmp.eq.s32.totalorder %v820, %v825
        %vm828 = vcmp.eq.s32.totalorder %v821, %v825
        %vm829 = vcmp.eq.s32.totalorder %v822, %v825
        %v830 = vadd.s32 %v825, 1
        %vm831 = vcmp.eq.s32.totalorder %v819, %v830
        %vm832 = vcmp.eq.s32.totalorder %v820, %v830
        %vm833 = vcmp.eq.s32.totalorder %v821, %v830
        %vm834 = vcmp.eq.s32.totalorder %v822, %v830
        %vm835 = vmor %vm826, %vm831
        %vm836 = vmor %vm827, %vm832
        %vm837 = vmor %vm828, %vm833
        %vm838 = vmor %vm829, %vm834
        %v839 = vsel %vm835, 0.5, 0.0
        %v840 = vsel %vm836, 0.5, 0.0
        %v841 = vsel %vm837, 0.5, 0.0
        %v842 = vsel %vm838, 0.5, 0.0
        %vm843 = vcmask 261120
        %v845 = vsel %vm843, %v810, 0
        %v848 = vsel %vm843, %v811, 0
        %v851 = vsel %vm843, %v812, 0
        %v854 = vsel %vm843, %v813, 0
        %v857 = vsel %vm843, %v814, 0
        %v860 = vsel %vm843, %v815, 0
        %v863 = vsel %vm843, %v816, 0
        %v866 = vsel %vm843, %v817, 0
        %868 = vmatprep.subr.mxu0 0.0
        %869 = vmatpush1.msra.mxu0 %v839
        %870 = vmatprep.subr.mxu0 0.0
        %871 = vmatpush1.msra.mxu0 %v840
        %872 = vmatprep.subr.mxu0 0.0
        %873 = vmatpush1.msra.mxu0 %v841
        %874 = vmatprep.subr.mxu0 0.0
        %875 = vmatpush1.msra.mxu0 %v842
        %876 = vmatprep.subr.mxu0 0.0
        %877 = vmatpush1.msra.mxu0 0.0
        %878 = vmatprep.subr.mxu0 0.0
        %879 = vmatpush1.msra.mxu0 0.0
        %880 = vmatprep.subr.mxu0 0.0
        %881 = vmatpush1.msra.mxu0 0.0
        %882 = vmatprep.subr.mxu0 0.0
        %883 = vmatpush1.msra.mxu0 0.0
        %884 = vmatprep.subr.mxu0 0.0
        %885 = vmatpush1.msra.mxu0 0.0
        %886 = vmatprep.subr.mxu0 0.0
        %887 = vmatpush1.msra.mxu0 0.0
        %888 = vmatprep.subr.mxu0 0.0
        %889 = vmatpush1.msra.mxu0 0.0
        %890 = vmatprep.subr.mxu0 0.0
        %891 = vmatpush1.msra.mxu0 0.0
        %892 = vmatprep.subr.mxu0 0.0
        %893 = vmatpush1.msra.mxu0 0.0
        %894 = vmatprep.subr.mxu0 0.0
        %895 = vmatpush1.msra.mxu0 0.0
        %896 = vmatprep.subr.mxu0 0.0
        %897 = vmatpush1.msra.mxu0 0.0
        %898 = vmatprep.subr.mxu0 0.0
        %899 = vmatpush1.msra.mxu0 0.0
        %900 = vmatprep.subr.mxu0 0.0
        %901 = vmatpush1.msra.mxu0 0.0
        %902 = vmatprep.subr.mxu0 0.0
        %903 = vmatpush1.msra.mxu0 0.0
        %904 = vmatprep.subr.mxu0 0.0
        %905 = vmatpush1.msra.mxu0 0.0
        %906 = vmatprep.subr.mxu0 0.0
        %907 = vmatpush1.msra.mxu0 0.0
        %908 = vmatprep.subr.mxu0 0.0
        %909 = vmatpush1.msra.mxu0 0.0
        %910 = vmatprep.subr.mxu0 0.0
        %911 = vmatpush1.msra.mxu0 0.0
        %912 = vmatprep.subr.mxu0 0.0
        %913 = vmatpush1.msra.mxu0 0.0
        %914 = vmatprep.subr.mxu0 0.0
        %915 = vmatpush1.msra.mxu0 0.0
        %916 = vmatprep.subr.mxu0 0.0
        %917 = vmatpush1.msra.mxu0 0.0
        %918 = vmatprep.subr.mxu0 0.0
        %919 = vmatpush1.msra.mxu0 0.0
        %920 = vmatprep.subr.mxu0 0.0
        %921 = vmatpush1.msra.mxu0 0.0
        %922 = vmatprep.subr.mxu0 0.0
        %923 = vmatpush1.msra.mxu0 0.0
        %924 = vmatprep.subr.mxu0 0.0
        %925 = vmatpush1.msra.mxu0 0.0
        %926 = vmatprep.subr.mxu0 0.0
        %927 = vmatpush1.msra.mxu0 0.0
        %928 = vmatprep.subr.mxu0 0.0
        %929 = vmatpush1.msra.mxu0 0.0
        %930 = vmatprep.subr.mxu0 0.0
        %931 = vmatpush1.msra.mxu0 0.0
        %932 = vmatprep.mubr.f32.mxu0 0.0
        %933 = vmatmul.mubr.f32.gmra.mrb[0].mxu0 %v845
        %v934 = vpop.f32.mrb[0].mxu0
        %v935 = vadd.f32 0.0, %v934
        %v936 = vpop.f32.mrb[0].mxu0
        %937 = vmatprep.mubr.f32.mxu0 0.0
        %938 = vmatmul.mubr.f32.gmra.mrb[0].mxu0 %v848
        %v939 = vpop.f32.mrb[0].mxu0
        %v940 = vadd.f32 0.0, %v939
        %v941 = vpop.f32.mrb[0].mxu0
        %942 = vmatprep.mubr.f32.mxu0 0.0
        %943 = vmatmul.mubr.f32.gmra.mrb[0].mxu0 %v851
        %v944 = vpop.f32.mrb[0].mxu0
        %v945 = vadd.f32 0.0, %v944
        %v946 = vpop.f32.mrb[0].mxu0
        %947 = vmatprep.mubr.f32.mxu0 0.0
        %948 = vmatmul.mubr.f32.gmra.mrb[0].mxu0 %v854
        %v949 = vpop.f32.mrb[0].mxu0
        %v950 = vadd.f32 0.0, %v949
        %v951 = vpop.f32.mrb[0].mxu0
        %952 = vmatprep.mubr.f32.mxu0 0.0
        %953 = vmatmul.mubr.f32.gmra.mrb[0].mxu0 %v857
        %v954 = vpop.f32.mrb[0].mxu0
        %v955 = vadd.f32 0.0, %v954
        %v956 = vpop.f32.mrb[0].mxu0
        %957 = vmatprep.mubr.f32.mxu0 0.0
        %958 = vmatmul.mubr.f32.gmra.mrb[0].mxu0 %v860
        %v959 = vpop.f32.mrb[0].mxu0
        %v960 = vadd.f32 0.0, %v959
        %v961 = vpop.f32.mrb[0].mxu0
        %962 = vmatprep.mubr.f32.mxu0 0.0
        %963 = vmatmul.mubr.f32.gmra.mrb[0].mxu0 %v863
        %v964 = vpop.f32.mrb[0].mxu0
        %v965 = vadd.f32 0.0, %v964
        %v966 = vpop.f32.mrb[0].mxu0
        %967 = vmatprep.mubr.f32.mxu0 0.0
        %968 = vmatmul.mubr.f32.gmra.mrb[0].mxu0 %v866
        %v969 = vpop.f32.mrb[0].mxu0
        %v970 = vadd.f32 0.0, %v969
        %v971 = vpop.f32.mrb[0].mxu0
        %972 = vdwg.mxu0
        %v973 = vld [vmem:[%s3] sm:$0xff]
        %v974 = vld [vmem:[%s3 + $0x8] sm:$0xff]
        %v975 = vld [vmem:[%s3 + $0x10] sm:$0xff]
        %v976 = vld [vmem:[%s3 + $0x18] sm:$0xff]
        %v977 = vld [vmem:[%s3 + $0x20] sm:$0xff]
        %v978 = vld [vmem:[%s3 + $0x28] sm:$0xff]
        %v979 = vld [vmem:[%s3 + $0x30] sm:$0xff]
        %v980 = vld [vmem:[%s3 + $0x38] sm:$0xff]
        %v981 = vld [vmem:[%s4] sm:$0xff]
        %v982 = vld [vmem:[%s4 + $0x8] sm:$0xff]
        %v983 = vld [vmem:[%s4 + $0x10] sm:$0xff]
        %v984 = vld [vmem:[%s4 + $0x18] sm:$0xff]
        %993 = vrot.lane.b32.xlu0 %v935, 1
        %v994 = vpop.permute.xlu0 %993
        %995 = vrot.lane.b32.xlu0 %v940, 1
        %v996 = vpop.permute.xlu0 %995
        %997 = vrot.lane.b32.xlu0 %v945, 1
        %v998 = vpop.permute.xlu0 %997
        %999 = vrot.lane.b32.xlu0 %v950, 1
        %v1000 = vpop.permute.xlu0 %999
        %1001 = vrot.lane.b32.xlu0 %v955, 1
        %v1002 = vpop.permute.xlu0 %1001
        %1003 = vrot.lane.b32.xlu0 %v960, 1
        %v1004 = vpop.permute.xlu0 %1003
        %1005 = vrot.lane.b32.xlu0 %v965, 1
        %v1006 = vpop.permute.xlu0 %1005
        %1007 = vrot.lane.b32.xlu0 %v970, 1
        %v1008 = vpop.permute.xlu0 %1007
        %vm1017 = vcmask 7168
        %v1018 = vsel %vm1017, 0.0, %v994
        %v1019 = vsel %vm1017, 0.0, %v996
        %v1020 = vsel %vm1017, 0.0, %v998
        %v1021 = vsel %vm1017, 0.0, %v1000
        %v1022 = vsel %vm1017, 0.0, %v1002
        %v1023 = vsel %vm1017, 0.0, %v1004
        %v1024 = vsel %vm1017, 0.0, %v1006
        %v1025 = vsel %vm1017, 0.0, %v1008
        %vm1026 = vcmask 138240
        %v1027 = vsel %vm1026, %v1018, 0.0
        %v1028 = vsel %vm1026, %v1019, 0.0
        %v1029 = vsel %vm1026, %v1020, 0.0
        %v1030 = vsel %vm1026, %v1021, 0.0
        %v1031 = vsel %vm1026, %v1022, 0.0
        %v1032 = vsel %vm1026, %v1023, 0.0
        %v1033 = vsel %vm1026, %v1024, 0.0
        %v1034 = vsel %vm1026, %v1025, 0.0
        %1043 = vrot.lane.b32.xlu0 %v1027, 127
        %v1044 = vpop.permute.xlu0 %1043
        %1045 = vrot.lane.b32.xlu0 %v1028, 127
        %v1046 = vpop.permute.xlu0 %1045
        %1047 = vrot.lane.b32.xlu0 %v1029, 127
        %v1048 = vpop.permute.xlu0 %1047
        %1049 = vrot.lane.b32.xlu0 %v1030, 127
        %v1050 = vpop.permute.xlu0 %1049
        %1051 = vrot.lane.b32.xlu0 %v1031, 127
        %v1052 = vpop.permute.xlu0 %1051
        %1053 = vrot.lane.b32.xlu0 %v1032, 127
        %v1054 = vpop.permute.xlu0 %1053
        %1055 = vrot.lane.b32.xlu0 %v1033, 127
        %v1056 = vpop.permute.xlu0 %1055
        %1057 = vrot.lane.b32.xlu0 %v1034, 127
        %v1058 = vpop.permute.xlu0 %1057
        %1067 = vrot.lane.b32.xlu0 %v1027, 126
        %v1068 = vpop.permute.xlu0 %1067
        %1069 = vrot.lane.b32.xlu0 %v1028, 126
        %v1070 = vpop.permute.xlu0 %1069
        %1071 = vrot.lane.b32.xlu0 %v1029, 126
        %v1072 = vpop.permute.xlu0 %1071
        %1073 = vrot.lane.b32.xlu0 %v1030, 126
        %v1074 = vpop.permute.xlu0 %1073
        %1075 = vrot.lane.b32.xlu0 %v1031, 126
        %v1076 = vpop.permute.xlu0 %1075
        %1077 = vrot.lane.b32.xlu0 %v1032, 126
        %v1078 = vpop.permute.xlu0 %1077
        %1079 = vrot.lane.b32.xlu0 %v1033, 126
        %v1080 = vpop.permute.xlu0 %1079
        %1081 = vrot.lane.b32.xlu0 %v1034, 126
        %v1082 = vpop.permute.xlu0 %1081
        %1092 = vset.pattern.permute.xlu0 0
        %1093 = vperm.xlu0 %1092, %v981
        %v1094 = vpop.permute.xlu0 %1093
        %1097 = vset.pattern.permute.xlu0 0
        %1098 = vperm.xlu0 %1097, %v982
        %v1099 = vpop.permute.xlu0 %1098
        %1102 = vset.pattern.permute.xlu0 0
        %1103 = vperm.xlu0 %1102, %v983
        %v1104 = vpop.permute.xlu0 %1103
        %1107 = vset.pattern.permute.xlu0 0
        %1108 = vperm.xlu0 %1107, %v984
        %v1109 = vpop.permute.xlu0 %1108
        %vm1111 = vcmask 523264
        %v1113 = vsel %vm1111, %v974, 0
        %v1116 = vsel %vm1111, %v976, 0
        %v1119 = vsel %vm1111, %v978, 0
        %v1122 = vsel %vm1111, %v980, 0
        %1124 = vmatprep.subr.mxu0 0.0
        %1125 = vmatpush1.msra.mxu0 %v1027
        %1126 = vmatprep.subr.mxu0 0.0
        %1127 = vmatpush1.msra.mxu0 %v1028
        %1128 = vmatprep.subr.mxu0 0.0
        %1129 = vmatpush1.msra.mxu0 %v1029
        %1130 = vmatprep.subr.mxu0 0.0
        %1131 = vmatpush1.msra.mxu0 %v1030
        %1132 = vmatprep.subr.mxu0 0.0
        %1133 = vmatpush1.msra.mxu0 %v1031
        %1134 = vmatprep.subr.mxu0 0.0
        %1135 = vmatpush1.msra.mxu0 %v1032
        %1136 = vmatprep.subr.mxu0 0.0
        %1137 = vmatpush1.msra.mxu0 %v1033
        %1138 = vmatprep.subr.mxu0 0.0
        %1139 = vmatpush1.msra.mxu0 %v1034
        %1140 = vmatprep.subr.mxu0 0.0
        %1141 = vmatpush1.msra.mxu0 %v1044
        %1142 = vmatprep.subr.mxu0 0.0
        %1143 = vmatpush1.msra.mxu0 %v1046
        %1144 = vmatprep.subr.mxu0 0.0
        %1145 = vmatpush1.msra.mxu0 %v1048
        %1146 = vmatprep.subr.mxu0 0.0
        %1147 = vmatpush1.msra.mxu0 %v1050
        %1148 = vmatprep.subr.mxu0 0.0
        %1149 = vmatpush1.msra.mxu0 %v1052
        %1150 = vmatprep.subr.mxu0 0.0
        %1151 = vmatpush1.msra.mxu0 %v1054
        %1152 = vmatprep.subr.mxu0 0.0
        %1153 = vmatpush1.msra.mxu0 %v1056
        %1154 = vmatprep.subr.mxu0 0.0
        %1155 = vmatpush1.msra.mxu0 %v1058
        %1156 = vmatprep.subr.mxu0 0.0
        %1157 = vmatpush1.msra.mxu0 %v1068
        %1158 = vmatprep.subr.mxu0 0.0
        %1159 = vmatpush1.msra.mxu0 %v1070
        %1160 = vmatprep.subr.mxu0 0.0
        %1161 = vmatpush1.msra.mxu0 %v1072
        %1162 = vmatprep.subr.mxu0 0.0
        %1163 = vmatpush1.msra.mxu0 %v1074
        %1164 = vmatprep.subr.mxu0 0.0
        %1165 = vmatpush1.msra.mxu0 %v1076
        %1166 = vmatprep.subr.mxu0 0.0
        %1167 = vmatpush1.msra.mxu0 %v1078
        %1168 = vmatprep.subr.mxu0 0.0
        %1169 = vmatpush1.msra.mxu0 %v1080
        %1170 = vmatprep.subr.mxu0 0.0
        %1171 = vmatpush1.msra.mxu0 %v1082
        %1172 = vmatprep.subr.mxu0 0.0
        %1173 = vmatpush1.msra.mxu0 0.0
        %1174 = vmatprep.subr.mxu0 0.0
        %1175 = vmatpush1.msra.mxu0 0.0
        %1176 = vmatprep.subr.mxu0 0.0
        %1177 = vmatpush1.msra.mxu0 0.0
        %1178 = vmatprep.subr.mxu0 0.0
        %1179 = vmatpush1.msra.mxu0 0.0
        %1180 = vmatprep.subr.mxu0 0.0
        %1181 = vmatpush1.msra.mxu0 0.0
        %1182 = vmatprep.subr.mxu0 0.0
        %1183 = vmatpush1.msra.mxu0 0.0
        %1184 = vmatprep.subr.mxu0 0.0
        %1185 = vmatpush1.msra.mxu0 0.0
        %1186 = vmatprep.subr.mxu0 0.0
        %1187 = vmatpush1.msra.mxu0 0.0
        %1188 = vmatprep.mubr.f32.mxu0 %v1113
        %1189 = vmatmul.mubr.f32.gmra.mrb[0].mxu0 %v973
        %v1190 = vpop.f32.mrb[0].mxu0
        %v1191 = vadd.f32 %v1094, %v1190
        %v1192 = vpop.f32.mrb[0].mxu0
        %1193 = vmatprep.mubr.f32.mxu0 %v1116
        %1194 = vmatmul.mubr.f32.gmra.mrb[0].mxu0 %v975
        %v1195 = vpop.f32.mrb[0].mxu0
        %v1196 = vadd.f32 %v1099, %v1195
        %v1197 = vpop.f32.mrb[0].mxu0
        %1198 = vmatprep.mubr.f32.mxu0 %v1119
        %1199 = vmatmul.mubr.f32.gmra.mrb[0].mxu0 %v977
        %v1200 = vpop.f32.mrb[0].mxu0
        %v1201 = vadd.f32 %v1104, %v1200
        %v1202 = vpop.f32.mrb[0].mxu0
        %1203 = vmatprep.mubr.f32.mxu0 %v1122
        %1204 = vmatmul.mubr.f32.gmra.mrb[0].mxu0 %v979
        %v1205 = vpop.f32.mrb[0].mxu0
        %v1206 = vadd.f32 %v1109, %v1205
        %v1207 = vpop.f32.mrb[0].mxu0
        %1208 = vdwg.mxu0
        %v1209 = vmax.f32 %v1191, 0.0
        %v1210 = vmax.f32 %v1196, 0.0
        %v1211 = vmax.f32 %v1201, 0.0
        %v1212 = vmax.f32 %v1206, 0.0
        %vm1213 = vcmask 130048
        %v1215 = vsel %vm1213, %v1209, 0
        %v1218 = vsel %vm1213, %v1210, 0
        %v1221 = vsel %vm1213, %v1211, 0
        %v1224 = vsel %vm1213, %v1212, 0
        %1226 = vmatprep.subr.mxu0 0.0
        %1227 = vmatpush1.msra.mxu0 %v839
        %1228 = vmatprep.subr.mxu0 0.0
        %1229 = vmatpush1.msra.mxu0 %v840
        %1230 = vmatprep.subr.mxu0 0.0
        %1231 = vmatpush1.msra.mxu0 0.0
        %1232 = vmatprep.subr.mxu0 0.0
        %1233 = vmatpush1.msra.mxu0 0.0
        %1234 = vmatprep.subr.mxu0 0.0
        %1235 = vmatpush1.msra.mxu0 0.0
        %1236 = vmatprep.subr.mxu0 0.0
        %1237 = vmatpush1.msra.mxu0 0.0
        %1238 = vmatprep.subr.mxu0 0.0
        %1239 = vmatpush1.msra.mxu0 0.0
        %1240 = vmatprep.subr.mxu0 0.0
        %1241 = vmatpush1.msra.mxu0 0.0
        %1242 = vmatprep.subr.mxu0 0.0
        %1243 = vmatpush1.msra.mxu0 0.0
        %1244 = vmatprep.subr.mxu0 0.0
        %1245 = vmatpush1.msra.mxu0 0.0
        %1246 = vmatprep.subr.mxu0 0.0
        %1247 = vmatpush1.msra.mxu0 0.0
        %1248 = vmatprep.subr.mxu0 0.0
        %1249 = vmatpush1.msra.mxu0 0.0
        %1250 = vmatprep.subr.mxu0 0.0
        %1251 = vmatpush1.msra.mxu0 0.0
        %1252 = vmatprep.subr.mxu0 0.0
        %1253 = vmatpush1.msra.mxu0 0.0
        %1254 = vmatprep.subr.mxu0 0.0
        %1255 = vmatpush1.msra.mxu0 0.0
        %1256 = vmatprep.subr.mxu0 0.0
        %1257 = vmatpush1.msra.mxu0 0.0
        %1258 = vmatprep.subr.mxu0 0.0
        %1259 = vmatpush1.msra.mxu0 0.0
        %1260 = vmatprep.subr.mxu0 0.0
        %1261 = vmatpush1.msra.mxu0 0.0
        %1262 = vmatprep.subr.mxu0 0.0
        %1263 = vmatpush1.msra.mxu0 0.0
        %1264 = vmatprep.subr.mxu0 0.0
        %1265 = vmatpush1.msra.mxu0 0.0
        %1266 = vmatprep.subr.mxu0 0.0
        %1267 = vmatpush1.msra.mxu0 0.0
        %1268 = vmatprep.subr.mxu0 0.0
        %1269 = vmatpush1.msra.mxu0 0.0
        %1270 = vmatprep.subr.mxu0 0.0
        %1271 = vmatpush1.msra.mxu0 0.0
        %1272 = vmatprep.subr.mxu0 0.0
        %1273 = vmatpush1.msra.mxu0 0.0
        %1274 = vmatprep.subr.mxu0 0.0
        %1275 = vmatpush1.msra.mxu0 0.0
        %1276 = vmatprep.subr.mxu0 0.0
        %1277 = vmatpush1.msra.mxu0 0.0
        %1278 = vmatprep.subr.mxu0 0.0
        %1279 = vmatpush1.msra.mxu0 0.0
        %1280 = vmatprep.subr.mxu0 0.0
        %1281 = vmatpush1.msra.mxu0 0.0
        %1282 = vmatprep.subr.mxu0 0.0
        %1283 = vmatpush1.msra.mxu0 0.0
        %1284 = vmatprep.subr.mxu0 0.0
        %1285 = vmatpush1.msra.mxu0 0.0
        %1286 = vmatprep.subr.mxu0 0.0
        %1287 = vmatpush1.msra.mxu0 0.0
        %1288 = vmatprep.subr.mxu0 0.0
        %1289 = vmatpush1.msra.mxu0 0.0
        %1290 = vmatprep.mubr.f32.mxu0 0.0
        %1291 = vmatmul.mubr.f32.gmra.mrb[0].mxu0 %v1215
        %v1292 = vpop.f32.mrb[0].mxu0
        %v1293 = vadd.f32 0.0, %v1292
        %v1294 = vpop.f32.mrb[0].mxu0
        %1295 = vmatprep.mubr.f32.mxu0 0.0
        %1296 = vmatmul.mubr.f32.gmra.mrb[0].mxu0 %v1218
        %v1297 = vpop.f32.mrb[0].mxu0
        %v1298 = vadd.f32 0.0, %v1297
        %v1299 = vpop.f32.mrb[0].mxu0
        %1300 = vmatprep.mubr.f32.mxu0 0.0
        %1301 = vmatmul.mubr.f32.gmra.mrb[0].mxu0 %v1221
        %v1302 = vpop.f32.mrb[0].mxu0
        %v1303 = vadd.f32 0.0, %v1302
        %v1304 = vpop.f32.mrb[0].mxu0
        %1305 = vmatprep.mubr.f32.mxu0 0.0
        %1306 = vmatmul.mubr.f32.gmra.mrb[0].mxu0 %v1224
        %v1307 = vpop.f32.mrb[0].mxu0
        %v1308 = vadd.f32 0.0, %v1307
        %v1309 = vpop.f32.mrb[0].mxu0
        %1310 = vdwg.mxu0
        %v1311 = vld [vmem:[%s5] sm:$0xf]
        %v1312 = vld [vmem:[%s6] sm:$0xf]
        %1317 = vrot.lane.b32.xlu0 %v1293, 1
        %v1318 = vpop.permute.xlu0 %1317
        %1319 = vrot.lane.b32.xlu0 %v1298, 1
        %v1320 = vpop.permute.xlu0 %1319
        %1321 = vrot.lane.b32.xlu0 %v1303, 1
        %v1322 = vpop.permute.xlu0 %1321
        %1323 = vrot.lane.b32.xlu0 %v1308, 1
        %v1324 = vpop.permute.xlu0 %1323
        %v1329 = vsel %vm1017, 0.0, %v1318
        %v1330 = vsel %vm1017, 0.0, %v1320
        %v1331 = vsel %vm1017, 0.0, %v1322
        %v1332 = vsel %vm1017, 0.0, %v1324
        %vm1333 = vcmask 72704
        %v1334 = vsel %vm1333, %v1329, 0.0
        %v1335 = vsel %vm1333, %v1330, 0.0
        %v1336 = vsel %vm1333, %v1331, 0.0
        %v1337 = vsel %vm1333, %v1332, 0.0
        %1342 = vrot.lane.b32.xlu0 %v1334, 127
        %v1343 = vpop.permute.xlu0 %1342
        %1344 = vrot.lane.b32.xlu0 %v1335, 127
        %v1345 = vpop.permute.xlu0 %1344
        %1346 = vrot.lane.b32.xlu0 %v1336, 127
        %v1347 = vpop.permute.xlu0 %1346
        %1348 = vrot.lane.b32.xlu0 %v1337, 127
        %v1349 = vpop.permute.xlu0 %1348
        %1354 = vrot.lane.b32.xlu0 %v1334, 126
        %v1355 = vpop.permute.xlu0 %1354
        %1356 = vrot.lane.b32.xlu0 %v1335, 126
        %v1357 = vpop.permute.xlu0 %1356
        %1358 = vrot.lane.b32.xlu0 %v1336, 126
        %v1359 = vpop.permute.xlu0 %1358
        %1360 = vrot.lane.b32.xlu0 %v1337, 126
        %v1361 = vpop.permute.xlu0 %1360
        %1367 = vset.pattern.permute.xlu0 0
        %1368 = vperm.xlu0 %1367, %v1312
        %v1369 = vpop.permute.xlu0 %1368
        %vm1371 = vcmask 785408
        %v1373 = vsel %vm1371, %v1311, 0
        %1375 = vmatprep.subr.mxu0 0.0
        %1376 = vmatpush1.msra.mxu0 %v1334
        %1377 = vmatprep.subr.mxu0 0.0
        %1378 = vmatpush1.msra.mxu0 %v1335
        %1379 = vmatprep.subr.mxu0 0.0
        %1380 = vmatpush1.msra.mxu0 %v1336
        %1381 = vmatprep.subr.mxu0 0.0
        %1382 = vmatpush1.msra.mxu0 %v1337
        %1383 = vmatprep.subr.mxu0 0.0
        %1384 = vmatpush1.msra.mxu0 %v1343
        %1385 = vmatprep.subr.mxu0 0.0
        %1386 = vmatpush1.msra.mxu0 %v1345
        %1387 = vmatprep.subr.mxu0 0.0
        %1388 = vmatpush1.msra.mxu0 %v1347
        %1389 = vmatprep.subr.mxu0 0.0
        %1390 = vmatpush1.msra.mxu0 %v1349
        %1391 = vmatprep.subr.mxu0 0.0
        %1392 = vmatpush1.msra.mxu0 %v1355
        %1393 = vmatprep.subr.mxu0 0.0
        %1394 = vmatpush1.msra.mxu0 %v1357
        %1395 = vmatprep.subr.mxu0 0.0
        %1396 = vmatpush1.msra.mxu0 %v1359
        %1397 = vmatprep.subr.mxu0 0.0
        %1398 = vmatpush1.msra.mxu0 %v1361
        %1399 = vmatprep.subr.mxu0 0.0
        %1400 = vmatpush1.msra.mxu0 0.0
        %1401 = vmatprep.subr.mxu0 0.0
        %1402 = vmatpush1.msra.mxu0 0.0
        %1403 = vmatprep.subr.mxu0 0.0
        %1404 = vmatpush1.msra.mxu0 0.0
        %1405 = vmatprep.subr.mxu0 0.0
        %1406 = vmatpush1.msra.mxu0 0.0
        %1407 = vmatprep.subr.mxu0 0.0
        %1408 = vmatpush1.msra.mxu0 0.0
        %1409 = vmatprep.subr.mxu0 0.0
        %1410 = vmatpush1.msra.mxu0 0.0
        %1411 = vmatprep.subr.mxu0 0.0
        %1412 = vmatpush1.msra.mxu0 0.0
        %1413 = vmatprep.subr.mxu0 0.0
        %1414 = vmatpush1.msra.mxu0 0.0
        %1415 = vmatprep.subr.mxu0 0.0
        %1416 = vmatpush1.msra.mxu0 0.0
        %1417 = vmatprep.subr.mxu0 0.0
        %1418 = vmatpush1.msra.mxu0 0.0
        %1419 = vmatprep.subr.mxu0 0.0
        %1420 = vmatpush1.msra.mxu0 0.0
        %1421 = vmatprep.subr.mxu0 0.0
        %1422 = vmatpush1.msra.mxu0 0.0
        %1423 = vmatprep.subr.mxu0 0.0
        %1424 = vmatpush1.msra.mxu0 0.0
        %1425 = vmatprep.subr.mxu0 0.0
        %1426 = vmatpush1.msra.mxu0 0.0
        %1427 = vmatprep.subr.mxu0 0.0
        %1428 = vmatpush1.msra.mxu0 0.0
        %1429 = vmatprep.subr.mxu0 0.0
        %1430 = vmatpush1.msra.mxu0 0.0
        %1431 = vmatprep.subr.mxu0 0.0
        %1432 = vmatpush1.msra.mxu0 0.0
        %1433 = vmatprep.subr.mxu0 0.0
        %1434 = vmatpush1.msra.mxu0 0.0
        %1435 = vmatprep.subr.mxu0 0.0
        %1436 = vmatpush1.msra.mxu0 0.0
        %1437 = vmatprep.subr.mxu0 0.0
        %1438 = vmatpush1.msra.mxu0 0.0
        %1439 = vmatprep.mubr.f32.mxu0 0.0
        %1440 = vmatmul.mubr.f32.gmra.mrb[0].mxu0 %v1373
        %v1441 = vpop.f32.mrb[0].mxu0
        %v1442 = vadd.f32 %v1369, %v1441
        %v1443 = vpop.f32.mrb[0].mxu0
        %1444 = vdwg.mxu0
        %v1445 = vmax.f32 %v1442, 0.0
        %vm1446 = vcmask 64512
        %v1448 = vsel %vm1446, %v1445, 0
        %1450 = vmatprep.subr.mxu0 0.0
        %1451 = vmatpush1.msra.mxu0 %v839
        %1452 = vmatprep.subr.mxu0 0.0
        %1453 = vmatpush1.msra.mxu0 0.0
        %1454 = vmatprep.subr.mxu0 0.0
        %1455 = vmatpush1.msra.mxu0 0.0
        %1456 = vmatprep.subr.mxu0 0.0
        %1457 = vmatpush1.msra.mxu0 0.0
        %1458 = vmatprep.subr.mxu0 0.0
        %1459 = vmatpush1.msra.mxu0 0.0
        %1460 = vmatprep.subr.mxu0 0.0
        %1461 = vmatpush1.msra.mxu0 0.0
        %1462 = vmatprep.subr.mxu0 0.0
        %1463 = vmatpush1.msra.mxu0 0.0
        %1464 = vmatprep.subr.mxu0 0.0
        %1465 = vmatpush1.msra.mxu0 0.0
        %1466 = vmatprep.subr.mxu0 0.0
        %1467 = vmatpush1.msra.mxu0 0.0
        %1468 = vmatprep.subr.mxu0 0.0
        %1469 = vmatpush1.msra.mxu0 0.0
        %1470 = vmatprep.subr.mxu0 0.0
        %1471 = vmatpush1.msra.mxu0 0.0
        %1472 = vmatprep.subr.mxu0 0.0
        %1473 = vmatpush1.msra.mxu0 0.0
        %1474 = vmatprep.subr.mxu0 0.0
        %1475 = vmatpush1.msra.mxu0 0.0
        %1476 = vmatprep.subr.mxu0 0.0
        %1477 = vmatpush1.msra.mxu0 0.0
        %1478 = vmatprep.subr.mxu0 0.0
        %1479 = vmatpush1.msra.mxu0 0.0
        %1480 = vmatprep.subr.mxu0 0.0
        %1481 = vmatpush1.msra.mxu0 0.0
        %1482 = vmatprep.subr.mxu0 0.0
        %1483 = vmatpush1.msra.mxu0 0.0
        %1484 = vmatprep.subr.mxu0 0.0
        %1485 = vmatpush1.msra.mxu0 0.0
        %1486 = vmatprep.subr.mxu0 0.0
        %1487 = vmatpush1.msra.mxu0 0.0
        %1488 = vmatprep.subr.mxu0 0.0
        %1489 = vmatpush1.msra.mxu0 0.0
        %1490 = vmatprep.subr.mxu0 0.0
        %1491 = vmatpush1.msra.mxu0 0.0
        %1492 = vmatprep.subr.mxu0 0.0
        %1493 = vmatpush1.msra.mxu0 0.0
        %1494 = vmatprep.subr.mxu0 0.0
        %1495 = vmatpush1.msra.mxu0 0.0
        %1496 = vmatprep.subr.mxu0 0.0
        %1497 = vmatpush1.msra.mxu0 0.0
        %1498 = vmatprep.subr.mxu0 0.0
        %1499 = vmatpush1.msra.mxu0 0.0
        %1500 = vmatprep.subr.mxu0 0.0
        %1501 = vmatpush1.msra.mxu0 0.0
        %1502 = vmatprep.subr.mxu0 0.0
        %1503 = vmatpush1.msra.mxu0 0.0
        %1504 = vmatprep.subr.mxu0 0.0
        %1505 = vmatpush1.msra.mxu0 0.0
        %1506 = vmatprep.subr.mxu0 0.0
        %1507 = vmatpush1.msra.mxu0 0.0
        %1508 = vmatprep.subr.mxu0 0.0
        %1509 = vmatpush1.msra.mxu0 0.0
        %1510 = vmatprep.subr.mxu0 0.0
        %1511 = vmatpush1.msra.mxu0 0.0
        %1512 = vmatprep.subr.mxu0 0.0
        %1513 = vmatpush1.msra.mxu0 0.0
        %1514 = vmatprep.mubr.f32.mxu0 0.0
        %1515 = vmatmul.mubr.f32.gmra.mrb[0].mxu0 %v1448
        %v1516 = vpop.f32.mrb[0].mxu0
        %v1517 = vadd.f32 0.0, %v1516
        %v1518 = vpop.f32.mrb[0].mxu0
        %1519 = vdwg.mxu0
        %v1520 = vld [vmem:[%s7] sm:$0x3]
        %v1521 = vld [vmem:[%s8] sm:$0x3]
        %1523 = vrot.lane.b32.xlu0 %v1517, 1
        %v1524 = vpop.permute.xlu0 %1523
        %v1526 = vsel %vm1017, 0.0, %v1524
        %v1527 = vsel %vm619, %v1526, 0.0
        %1529 = vset.pattern.permute.xlu0 0
        %1530 = vperm.xlu0 %1529, %v1520
        %v1531 = vpop.permute.xlu0 %1530
        %v1533 = vlaneseq
        %v1534 = vshrl.u32 %v1533, 7
        %v1535 = vsub.s32 0, %v1534
        %v1536 = vrot.slane %v1527, %v1535
        %v1537 = vmul.f32 %v1531, %v1536
        %v1538 = vadd.f32 %v1537, 0.0
        %1539 = vset.pattern.permute.xlu0 1
        %1540 = vperm.xlu0 %1539, %v1520
        %v1541 = vpop.permute.xlu0 %1540
        %v1543 = vlaneseq
        %v1544 = vshrl.u32 %v1543, 7
        %v1545 = vsub.s32 1, %v1544
        %v1546 = vrot.slane %v1527, %v1545
        %v1547 = vmul.f32 %v1541, %v1546
        %v1548 = vadd.f32 %v1538, %v1547
        %1549 = vset.pattern.permute.xlu0 2
        %1550 = vperm.xlu0 %1549, %v1520
        %v1551 = vpop.permute.xlu0 %1550
        %v1553 = vlaneseq
        %v1554 = vshrl.u32 %v1553, 7
        %v1555 = vsub.s32 2, %v1554
        %v1556 = vrot.slane %v1527, %v1555
        %v1557 = vmul.f32 %v1551, %v1556
        %v1558 = vadd.f32 %v1548, %v1557
        %1559 = vset.pattern.permute.xlu0 3
        %1560 = vperm.xlu0 %1559, %v1520
        %v1561 = vpop.permute.xlu0 %1560
        %v1563 = vlaneseq
        %v1564 = vshrl.u32 %v1563, 7
        %v1565 = vsub.s32 3, %v1564
        %v1566 = vrot.slane %v1527, %v1565
        %v1567 = vmul.f32 %v1561, %v1566
        %v1568 = vadd.f32 %v1558, %v1567
        %1569 = vset.pattern.permute.xlu0 4
        %1570 = vperm.xlu0 %1569, %v1520
        %v1571 = vpop.permute.xlu0 %1570
        %v1573 = vmul.f32 %v1571, %v1536
        %1575 = vrot.lane.b32.xlu0 %v1573, 127
        %v1576 = vpop.permute.xlu0 %1575
        %v1578 = vadd.f32 %v1568, %v1576
        %1579 = vset.pattern.permute.xlu0 5
        %1580 = vperm.xlu0 %1579, %v1520
        %v1581 = vpop.permute.xlu0 %1580
        %v1583 = vmul.f32 %v1581, %v1546
        %1585 = vrot.lane.b32.xlu0 %v1583, 127
        %v1586 = vpop.permute.xlu0 %1585
        %v1588 = vadd.f32 %v1578, %v1586
        %1589 = vset.pattern.permute.xlu0 6
        %1590 = vperm.xlu0 %1589, %v1520
        %v1591 = vpop.permute.xlu0 %1590
        %v1593 = vmul.f32 %v1591, %v1556
        %1595 = vrot.lane.b32.xlu0 %v1593, 127
        %v1596 = vpop.permute.xlu0 %1595
        %v1598 = vadd.f32 %v1588, %v1596
        %1599 = vset.pattern.permute.xlu0 7
        %1600 = vperm.xlu0 %1599, %v1520
        %v1601 = vpop.permute.xlu0 %1600
        %v1603 = vmul.f32 %v1601, %v1566
        %1605 = vrot.lane.b32.xlu0 %v1603, 127
        %v1606 = vpop.permute.xlu0 %1605
        %v1608 = vadd.f32 %v1598, %v1606
        %1609 = vset.pattern.permute.xlu0 8
        %1610 = vperm.xlu0 %1609, %v1520
        %v1611 = vpop.permute.xlu0 %1610
        %v1613 = vmul.f32 %v1611, %v1536
        %1615 = vrot.lane.b32.xlu0 %v1613, 126
        %v1616 = vpop.permute.xlu0 %1615
        %v1618 = vadd.f32 %v1608, %v1616
        %1619 = vset.pattern.permute.xlu0 9
        %1620 = vperm.xlu0 %1619, %v1520
        %v1621 = vpop.permute.xlu0 %1620
        %v1623 = vmul.f32 %v1621, %v1546
        %1625 = vrot.lane.b32.xlu0 %v1623, 126
        %v1626 = vpop.permute.xlu0 %1625
        %v1628 = vadd.f32 %v1618, %v1626
        %1629 = vset.pattern.permute.xlu0 10
        %1630 = vperm.xlu0 %1629, %v1520
        %v1631 = vpop.permute.xlu0 %1630
        %v1633 = vmul.f32 %v1631, %v1556
        %1635 = vrot.lane.b32.xlu0 %v1633, 126
        %v1636 = vpop.permute.xlu0 %1635
        %v1638 = vadd.f32 %v1628, %v1636
        %1639 = vset.pattern.permute.xlu0 11
        %1640 = vperm.xlu0 %1639, %v1520
        %v1641 = vpop.permute.xlu0 %1640
        %v1643 = vmul.f32 %v1641, %v1566
        %1645 = vrot.lane.b32.xlu0 %v1643, 126
        %v1646 = vpop.permute.xlu0 %1645
        %v1648 = vadd.f32 %v1638, %v1646
        %1650 = vset.pattern.permute.xlu0 0
        %1651 = vperm.xlu0 %1650, %v1521
        %v1652 = vpop.permute.xlu0 %1651
        %v1654 = vadd.f32 %v1648, %v1652
        %v1655 = vmax.f32 %v1654, 0.0
        %vm1656 = vcmask 31744
        %v1658 = vsel %vm1656, %v1655, 0
        %v1661 = vsel %vm634, %v839, 0
        %1663 = vmatprep.subr.mxu0 0.0
        %1664 = vmatpush1.msra.mxu0 %v1661
        %1665 = vmatprep.subr.mxu0 0.0
        %1666 = vmatpush1.msra.mxu0 0.0
        %1667 = vmatprep.subr.mxu0 0.0
        %1668 = vmatpush1.msra.mxu0 0.0
        %1669 = vmatprep.subr.mxu0 0.0
        %1670 = vmatpush1.msra.mxu0 0.0
        %1671 = vmatprep.subr.mxu0 0.0
        %1672 = vmatpush1.msra.mxu0 0.0
        %1673 = vmatprep.subr.mxu0 0.0
        %1674 = vmatpush1.msra.mxu0 0.0
        %1675 = vmatprep.subr.mxu0 0.0
        %1676 = vmatpush1.msra.mxu0 0.0
        %1677 = vmatprep.subr.mxu0 0.0
        %1678 = vmatpush1.msra.mxu0 0.0
        %1679 = vmatprep.subr.mxu0 0.0
        %1680 = vmatpush1.msra.mxu0 0.0
        %1681 = vmatprep.subr.mxu0 0.0
        %1682 = vmatpush1.msra.mxu0 0.0
        %1683 = vmatprep.subr.mxu0 0.0
        %1684 = vmatpush1.msra.mxu0 0.0
        %1685 = vmatprep.subr.mxu0 0.0
        %1686 = vmatpush1.msra.mxu0 0.0
        %1687 = vmatprep.subr.mxu0 0.0
        %1688 = vmatpush1.msra.mxu0 0.0
        %1689 = vmatprep.subr.mxu0 0.0
        %1690 = vmatpush1.msra.mxu0 0.0
        %1691 = vmatprep.subr.mxu0 0.0
        %1692 = vmatpush1.msra.mxu0 0.0
        %1693 = vmatprep.subr.mxu0 0.0
        %1694 = vmatpush1.msra.mxu0 0.0
        %1695 = vmatprep.subr.mxu0 0.0
        %1696 = vmatpush1.msra.mxu0 0.0
        %1697 = vmatprep.subr.mxu0 0.0
        %1698 = vmatpush1.msra.mxu0 0.0
        %1699 = vmatprep.subr.mxu0 0.0
        %1700 = vmatpush1.msra.mxu0 0.0
        %1701 = vmatprep.subr.mxu0 0.0
        %1702 = vmatpush1.msra.mxu0 0.0
        %1703 = vmatprep.subr.mxu0 0.0
        %1704 = vmatpush1.msra.mxu0 0.0
        %1705 = vmatprep.subr.mxu0 0.0
        %1706 = vmatpush1.msra.mxu0 0.0
        %1707 = vmatprep.subr.mxu0 0.0
        %1708 = vmatpush1.msra.mxu0 0.0
        %1709 = vmatprep.subr.mxu0 0.0
        %1710 = vmatpush1.msra.mxu0 0.0
        %1711 = vmatprep.subr.mxu0 0.0
        %1712 = vmatpush1.msra.mxu0 0.0
        %1713 = vmatprep.subr.mxu0 0.0
        %1714 = vmatpush1.msra.mxu0 0.0
        %1715 = vmatprep.subr.mxu0 0.0
        %1716 = vmatpush1.msra.mxu0 0.0
        %1717 = vmatprep.subr.mxu0 0.0
        %1718 = vmatpush1.msra.mxu0 0.0
        %1719 = vmatprep.subr.mxu0 0.0
        %1720 = vmatpush1.msra.mxu0 0.0
        %1721 = vmatprep.subr.mxu0 0.0
        %1722 = vmatpush1.msra.mxu0 0.0
        %1723 = vmatprep.subr.mxu0 0.0
        %1724 = vmatpush1.msra.mxu0 0.0
        %1725 = vmatprep.subr.mxu0 0.0
        %1726 = vmatpush1.msra.mxu0 0.0
        %1727 = vmatprep.mubr.f32.mxu0 0.0
        %1728 = vmatmul.mubr.f32.gmra.mrb[0].mxu0 %v1658
        %v1729 = vpop.f32.mrb[0].mxu0
        %v1730 = vadd.f32 0.0, %v1729
        %v1731 = vpop.f32.mrb[0].mxu0
        %1732 = vdwg.mxu0
        %v1733 = vld [vmem:[%s9] sm:$0x3]
        %v1734 = vld [vmem:[%s10] sm:$0x3]
        %1736 = vrot.lane.b32.xlu0 %v1730, 1
        %v1737 = vpop.permute.xlu0 %1736
        %v1739 = vsel %vm1017, 0.0, %v1737
        %vm1740 = vcmask 23552
        %v1741 = vsel %vm1740, %v1739, 0.0
        %1743 = vset.pattern.permute.xlu0 0
        %1744 = vperm.xlu0 %1743, %v1733
        %v1745 = vpop.permute.xlu0 %1744
        %v1747 = vlaneseq
        %v1748 = vshrl.u32 %v1747, 7
        %v1749 = vsub.s32 0, %v1748
        %v1750 = vrot.slane %v1741, %v1749
        %v1751 = vmul.f32 %v1745, %v1750
        %v1752 = vadd.f32 %v1751, 0.0
        %1753 = vset.pattern.permute.xlu0 1
        %1754 = vperm.xlu0 %1753, %v1733
        %v1755 = vpop.permute.xlu0 %1754
        %v1757 = vlaneseq
        %v1758 = vshrl.u32 %v1757, 7
        %v1759 = vsub.s32 1, %v1758
        %v1760 = vrot.slane %v1741, %v1759
        %v1761 = vmul.f32 %v1755, %v1760
        %v1762 = vadd.f32 %v1752, %v1761
        %1763 = vset.pattern.permute.xlu0 2
        %1764 = vperm.xlu0 %1763, %v1733
        %v1765 = vpop.permute.xlu0 %1764
        %v1767 = vmul.f32 %v1765, %v1750
        %1769 = vrot.lane.b32.xlu0 %v1767, 127
        %v1770 = vpop.permute.xlu0 %1769
        %v1772 = vadd.f32 %v1762, %v1770
        %1773 = vset.pattern.permute.xlu0 3
        %1774 = vperm.xlu0 %1773, %v1733
        %v1775 = vpop.permute.xlu0 %1774
        %v1777 = vmul.f32 %v1775, %v1760
        %1779 = vrot.lane.b32.xlu0 %v1777, 127
        %v1780 = vpop.permute.xlu0 %1779
        %v1782 = vadd.f32 %v1772, %v1780
        %1783 = vset.pattern.permute.xlu0 4
        %1784 = vperm.xlu0 %1783, %v1733
        %v1785 = vpop.permute.xlu0 %1784
        %v1787 = vmul.f32 %v1785, %v1750
        %1789 = vrot.lane.b32.xlu0 %v1787, 126
        %v1790 = vpop.permute.xlu0 %1789
        %v1792 = vadd.f32 %v1782, %v1790
        %1793 = vset.pattern.permute.xlu0 5
        %1794 = vperm.xlu0 %1793, %v1733
        %v1795 = vpop.permute.xlu0 %1794
        %v1797 = vmul.f32 %v1795, %v1760
        %1799 = vrot.lane.b32.xlu0 %v1797, 126
        %v1800 = vpop.permute.xlu0 %1799
        %v1802 = vadd.f32 %v1792, %v1800
        %1804 = vset.pattern.permute.xlu0 0
        %1805 = vperm.xlu0 %1804, %v1734
        %v1806 = vpop.permute.xlu0 %1805
        %v1808 = vadd.f32 %v1802, %v1806
        %v1809 = vmax.f32 %v1808, 0.0
        %v1810 = vmul.u32 %v819, 2
        %vm1811 = vcmp.eq.s32.totalorder %v824, %v1810
        %v1812 = vadd.s32 %v1810, 1
        %vm1813 = vcmp.eq.s32.totalorder %v824, %v1812
        %vm1814 = vmor %vm1811, %vm1813
        %v1815 = vsel %vm1814, 1.0, 0.0
        %vm1816 = vcmask 15360
        %v1818 = vsel %vm1816, %v1809, 0
        %v1821 = vsel %vm632, %v1815, 0
        %1823 = vmatprep.subr.mxu0 0.0
        %1824 = vmatpush1.msra.mxu0 %v1821
        %1825 = vmatprep.subr.mxu0 0.0
        %1826 = vmatpush1.msra.mxu0 0.0
        %1827 = vmatprep.subr.mxu0 0.0
        %1828 = vmatpush1.msra.mxu0 0.0
        %1829 = vmatprep.subr.mxu0 0.0
        %1830 = vmatpush1.msra.mxu0 0.0
        %1831 = vmatprep.subr.mxu0 0.0
        %1832 = vmatpush1.msra.mxu0 0.0
        %1833 = vmatprep.subr.mxu0 0.0
        %1834 = vmatpush1.msra.mxu0 0.0
        %1835 = vmatprep.subr.mxu0 0.0
        %1836 = vmatpush1.msra.mxu0 0.0
        %1837 = vmatprep.subr.mxu0 0.0
        %1838 = vmatpush1.msra.mxu0 0.0
        %1839 = vmatprep.subr.mxu0 0.0
        %1840 = vmatpush1.msra.mxu0 0.0
        %1841 = vmatprep.subr.mxu0 0.0
        %1842 = vmatpush1.msra.mxu0 0.0
        %1843 = vmatprep.subr.mxu0 0.0
        %1844 = vmatpush1.msra.mxu0 0.0
        %1845 = vmatprep.subr.mxu0 0.0
        %1846 = vmatpush1.msra.mxu0 0.0
        %1847 = vmatprep.subr.mxu0 0.0
        %1848 = vmatpush1.msra.mxu0 0.0
        %1849 = vmatprep.subr.mxu0 0.0
        %1850 = vmatpush1.msra.mxu0 0.0
        %1851 = vmatprep.subr.mxu0 0.0
        %1852 = vmatpush1.msra.mxu0 0.0
        %1853 = vmatprep.subr.mxu0 0.0
        %1854 = vmatpush1.msra.mxu0 0.0
        %1855 = vmatprep.subr.mxu0 0.0
        %1856 = vmatpush1.msra.mxu0 0.0
        %1857 = vmatprep.subr.mxu0 0.0
        %1858 = vmatpush1.msra.mxu0 0.0
        %1859 = vmatprep.subr.mxu0 0.0
        %1860 = vmatpush1.msra.mxu0 0.0
        %1861 = vmatprep.subr.mxu0 0.0
        %1862 = vmatpush1.msra.mxu0 0.0
        %1863 = vmatprep.subr.mxu0 0.0
        %1864 = vmatpush1.msra.mxu0 0.0
        %1865 = vmatprep.subr.mxu0 0.0
        %1866 = vmatpush1.msra.mxu0 0.0
        %1867 = vmatprep.subr.mxu0 0.0
        %1868 = vmatpush1.msra.mxu0 0.0
        %1869 = vmatprep.subr.mxu0 0.0
        %1870 = vmatpush1.msra.mxu0 0.0
        %1871 = vmatprep.subr.mxu0 0.0
        %1872 = vmatpush1.msra.mxu0 0.0
        %1873 = vmatprep.subr.mxu0 0.0
        %1874 = vmatpush1.msra.mxu0 0.0
        %1875 = vmatprep.subr.mxu0 0.0
        %1876 = vmatpush1.msra.mxu0 0.0
        %1877 = vmatprep.subr.mxu0 0.0
        %1878 = vmatpush1.msra.mxu0 0.0
        %1879 = vmatprep.subr.mxu0 0.0
        %1880 = vmatpush1.msra.mxu0 0.0
        %1881 = vmatprep.subr.mxu0 0.0
        %1882 = vmatpush1.msra.mxu0 0.0
        %1883 = vmatprep.subr.mxu0 0.0
        %1884 = vmatpush1.msra.mxu0 0.0
        %1885 = vmatprep.subr.mxu0 0.0
        %1886 = vmatpush1.msra.mxu0 0.0
        %1887 = vmatprep.mubr.f32.mxu0 0.0
        %1888 = vmatmul.mubr.f32.gmra.mrb[0].mxu0 %v1818
        %v1889 = vpop.f32.mrb[0].mxu0
        %v1890 = vadd.f32 0.0, %v1889
        %v1891 = vpop.f32.mrb[0].mxu0
        %1892 = vdwg.mxu0
        %v1893 = vld [vmem:[%s11] sm:$0xf]
        %v1894 = vld [vmem:[%s12] sm:$0xf]
        %1896 = vrot.lane.b32.xlu0 %v1890, 1
        %v1897 = vpop.permute.xlu0 %1896
        %v1899 = vsel %vm1017, 0.0, %v1897
        %v1900 = vsel %vm619, %v1899, 0.0
        %1902 = vset.pattern.permute.xlu0 0
        %1903 = vperm.xlu0 %1902, %v1893
        %v1904 = vpop.permute.xlu0 %1903
        %v1906 = vlaneseq
        %v1907 = vshrl.u32 %v1906, 7
        %v1908 = vsub.s32 0, %v1907
        %v1909 = vrot.slane %v1900, %v1908
        %v1910 = vmul.f32 %v1904, %v1909
        %v1911 = vadd.f32 %v1910, 0.0
        %1912 = vset.pattern.permute.xlu0 1
        %1913 = vperm.xlu0 %1912, %v1893
        %v1914 = vpop.permute.xlu0 %1913
        %v1916 = vlaneseq
        %v1917 = vshrl.u32 %v1916, 7
        %v1918 = vsub.s32 1, %v1917
        %v1919 = vrot.slane %v1900, %v1918
        %v1920 = vmul.f32 %v1914, %v1919
        %v1921 = vadd.f32 %v1911, %v1920
        %1922 = vset.pattern.permute.xlu0 2
        %1923 = vperm.xlu0 %1922, %v1893
        %v1924 = vpop.permute.xlu0 %1923
        %v1926 = vmul.f32 %v1924, %v1909
        %1928 = vrot.lane.b32.xlu0 %v1926, 127
        %v1929 = vpop.permute.xlu0 %1928
        %v1931 = vadd.f32 %v1921, %v1929
        %1932 = vset.pattern.permute.xlu0 3
        %1933 = vperm.xlu0 %1932, %v1893
        %v1934 = vpop.permute.xlu0 %1933
        %v1936 = vmul.f32 %v1934, %v1919
        %1938 = vrot.lane.b32.xlu0 %v1936, 127
        %v1939 = vpop.permute.xlu0 %1938
        %v1941 = vadd.f32 %v1931, %v1939
        %1942 = vset.pattern.permute.xlu0 4
        %1943 = vperm.xlu0 %1942, %v1893
        %v1944 = vpop.permute.xlu0 %1943
        %v1946 = vmul.f32 %v1944, %v1909
        %1948 = vrot.lane.b32.xlu0 %v1946, 126
        %v1949 = vpop.permute.xlu0 %1948
        %v1951 = vadd.f32 %v1941, %v1949
        %1952 = vset.pattern.permute.xlu0 5
        %1953 = vperm.xlu0 %1952, %v1893
        %v1954 = vpop.permute.xlu0 %1953
        %v1956 = vmul.f32 %v1954, %v1919
        %1958 = vrot.lane.b32.xlu0 %v1956, 126
        %v1959 = vpop.permute.xlu0 %1958
        %v1961 = vadd.f32 %v1951, %v1959
        %1963 = vset.pattern.permute.xlu0 0
        %1964 = vperm.xlu0 %1963, %v1894
        %v1965 = vpop.permute.xlu0 %1964
        %v1967 = vadd.f32 %v1961, %v1965
        %v1968 = vmax.f32 %v1967, 0.0
        %v1970 = vsel %vm1656, %v1968, 0
        %v1972 = vsel %vm634, %v1815, 0
        %1974 = vmatprep.subr.mxu0 0.0
        %1975 = vmatpush1.msra.mxu0 %v1972
        %1976 = vmatprep.subr.mxu0 0.0
        %1977 = vmatpush1.msra.mxu0 0.0
        %1978 = vmatprep.subr.mxu0 0.0
        %1979 = vmatpush1.msra.mxu0 0.0
        %1980 = vmatprep.subr.mxu0 0.0
        %1981 = vmatpush1.msra.mxu0 0.0
        %1982 = vmatprep.subr.mxu0 0.0
        %1983 = vmatpush1.msra.mxu0 0.0
        %1984 = vmatprep.subr.mxu0 0.0
        %1985 = vmatpush1.msra.mxu0 0.0
        %1986 = vmatprep.subr.mxu0 0.0
        %1987 = vmatpush1.msra.mxu0 0.0
        %1988 = vmatprep.subr.mxu0 0.0
        %1989 = vmatpush1.msra.mxu0 0.0
        %1990 = vmatprep.subr.mxu0 0.0
        %1991 = vmatpush1.msra.mxu0 0.0
        %1992 = vmatprep.subr.mxu0 0.0
        %1993 = vmatpush1.msra.mxu0 0.0
        %1994 = vmatprep.subr.mxu0 0.0
        %1995 = vmatpush1.msra.mxu0 0.0
        %1996 = vmatprep.subr.mxu0 0.0
        %1997 = vmatpush1.msra.mxu0 0.0
        %1998 = vmatprep.subr.mxu0 0.0
        %1999 = vmatpush1.msra.mxu0 0.0
        %2000 = vmatprep.subr.mxu0 0.0
        %2001 = vmatpush1.msra.mxu0 0.0
        %2002 = vmatprep.subr.mxu0 0.0
        %2003 = vmatpush1.msra.mxu0 0.0
        %2004 = vmatprep.subr.mxu0 0.0
        %2005 = vmatpush1.msra.mxu0 0.0
        %2006 = vmatprep.subr.mxu0 0.0
        %2007 = vmatpush1.msra.mxu0 0.0
        %2008 = vmatprep.subr.mxu0 0.0
        %2009 = vmatpush1.msra.mxu0 0.0
        %2010 = vmatprep.subr.mxu0 0.0
        %2011 = vmatpush1.msra.mxu0 0.0
        %2012 = vmatprep.subr.mxu0 0.0
        %2013 = vmatpush1.msra.mxu0 0.0
        %2014 = vmatprep.subr.mxu0 0.0
        %2015 = vmatpush1.msra.mxu0 0.0
        %2016 = vmatprep.subr.mxu0 0.0
        %2017 = vmatpush1.msra.mxu0 0.0
        %2018 = vmatprep.subr.mxu0 0.0
        %2019 = vmatpush1.msra.mxu0 0.0
        %2020 = vmatprep.subr.mxu0 0.0
        %2021 = vmatpush1.msra.mxu0 0.0
        %2022 = vmatprep.subr.mxu0 0.0
        %2023 = vmatpush1.msra.mxu0 0.0
        %2024 = vmatprep.subr.mxu0 0.0
        %2025 = vmatpush1.msra.mxu0 0.0
        %2026 = vmatprep.subr.mxu0 0.0
        %2027 = vmatpush1.msra.mxu0 0.0
        %2028 = vmatprep.subr.mxu0 0.0
        %2029 = vmatpush1.msra.mxu0 0.0
        %2030 = vmatprep.subr.mxu0 0.0
        %2031 = vmatpush1.msra.mxu0 0.0
        %2032 = vmatprep.subr.mxu0 0.0
        %2033 = vmatpush1.msra.mxu0 0.0
        %2034 = vmatprep.subr.mxu0 0.0
        %2035 = vmatpush1.msra.mxu0 0.0
        %2036 = vmatprep.subr.mxu0 0.0
        %2037 = vmatpush1.msra.mxu0 0.0
        %2038 = vmatprep.mubr.f32.mxu0 0.0
        %2039 = vmatmul.mubr.f32.gmra.mrb[0].mxu0 %v1970
        %v2040 = vpop.f32.mrb[0].mxu0
        %v2041 = vadd.f32 0.0, %v2040
        %v2042 = vpop.f32.mrb[0].mxu0
        %2043 = vdwg.mxu0
        %v2044 = vld [vmem:[%s13] sm:$0xff]
        %v2045 = vld [vmem:[%s13 + $0x8] sm:$0xff]
        %v2046 = vld [vmem:[%s13 + $0x10] sm:$0xff]
        %v2047 = vld [vmem:[%s13 + $0x18] sm:$0xff]
        %v2048 = vld [vmem:[%s14] sm:$0xff]
        %v2049 = vld [vmem:[%s14 + $0x8] sm:$0xff]
        %v2050 = vld [vmem:[%s14 + $0x10] sm:$0xff]
        %v2051 = vld [vmem:[%s14 + $0x18] sm:$0xff]
        %2053 = vrot.lane.b32.xlu0 %v2041, 1
        %v2054 = vpop.permute.xlu0 %2053
        %v2056 = vsel %vm1017, 0.0, %v2054
        %v2057 = vsel %vm1333, %v2056, 0.0
        %v2059 = vrot.slane %v2057, 4
        %2060 = vrot.lane.b32.xlu0 %v2059, 127
        %v2061 = vpop.permute.xlu0 %2060
        %2063 = vrot.lane.b32.xlu0 %v2057, 126
        %v2064 = vpop.permute.xlu0 %2063
        %v2065 = vsel %vm634, %v2057, %v2061
        %2067 = vset.pattern.permute.xlu0 0
        %2068 = vperm.xlu0 %2067, %v2048
        %v2069 = vpop.permute.xlu0 %2068
        %2072 = vset.pattern.permute.xlu0 0
        %2073 = vperm.xlu0 %2072, %v2049
        %v2074 = vpop.permute.xlu0 %2073
        %2077 = vset.pattern.permute.xlu0 0
        %2078 = vperm.xlu0 %2077, %v2050
        %v2079 = vpop.permute.xlu0 %2078
        %2082 = vset.pattern.permute.xlu0 0
        %2083 = vperm.xlu0 %2082, %v2051
        %v2084 = vpop.permute.xlu0 %2083
        %vm2086 = vcmask 97280
        %v2088 = vsel %vm2086, %v2044, 0
        %v2091 = vsel %vm2086, %v2045, 0
        %v2094 = vsel %vm2086, %v2046, 0
        %v2097 = vsel %vm2086, %v2047, 0
        %v2099 = vsel %vm634, %v2064, 0
        %2101 = vmatprep.subr.mxu0 0.0
        %2102 = vmatpush1.msra.mxu0 %v2065
        %2103 = vmatprep.subr.mxu0 0.0
        %2104 = vmatpush1.msra.mxu0 %v2099
        %2105 = vmatprep.subr.mxu0 0.0
        %2106 = vmatpush1.msra.mxu0 0.0
        %2107 = vmatprep.subr.mxu0 0.0
        %2108 = vmatpush1.msra.mxu0 0.0
        %2109 = vmatprep.subr.mxu0 0.0
        %2110 = vmatpush1.msra.mxu0 0.0
        %2111 = vmatprep.subr.mxu0 0.0
        %2112 = vmatpush1.msra.mxu0 0.0
        %2113 = vmatprep.subr.mxu0 0.0
        %2114 = vmatpush1.msra.mxu0 0.0
        %2115 = vmatprep.subr.mxu0 0.0
        %2116 = vmatpush1.msra.mxu0 0.0
        %2117 = vmatprep.subr.mxu0 0.0
        %2118 = vmatpush1.msra.mxu0 0.0
        %2119 = vmatprep.subr.mxu0 0.0
        %2120 = vmatpush1.msra.mxu0 0.0
        %2121 = vmatprep.subr.mxu0 0.0
        %2122 = vmatpush1.msra.mxu0 0.0
        %2123 = vmatprep.subr.mxu0 0.0
        %2124 = vmatpush1.msra.mxu0 0.0
        %2125 = vmatprep.subr.mxu0 0.0
        %2126 = vmatpush1.msra.mxu0 0.0
        %2127 = vmatprep.subr.mxu0 0.0
        %2128 = vmatpush1.msra.mxu0 0.0
        %2129 = vmatprep.subr.mxu0 0.0
        %2130 = vmatpush1.msra.mxu0 0.0
        %2131 = vmatprep.subr.mxu0 0.0
        %2132 = vmatpush1.msra.mxu0 0.0
        %2133 = vmatprep.subr.mxu0 0.0
        %2134 = vmatpush1.msra.mxu0 0.0
        %2135 = vmatprep.subr.mxu0 0.0
        %2136 = vmatpush1.msra.mxu0 0.0
        %2137 = vmatprep.subr.mxu0 0.0
        %2138 = vmatpush1.msra.mxu0 0.0
        %2139 = vmatprep.subr.mxu0 0.0
        %2140 = vmatpush1.msra.mxu0 0.0
        %2141 = vmatprep.subr.mxu0 0.0
        %2142 = vmatpush1.msra.mxu0 0.0
        %2143 = vmatprep.subr.mxu0 0.0
        %2144 = vmatpush1.msra.mxu0 0.0
        %2145 = vmatprep.subr.mxu0 0.0
        %2146 = vmatpush1.msra.mxu0 0.0
        %2147 = vmatprep.subr.mxu0 0.0
        %2148 = vmatpush1.msra.mxu0 0.0
        %2149 = vmatprep.subr.mxu0 0.0
        %2150 = vmatpush1.msra.mxu0 0.0
        %2151 = vmatprep.subr.mxu0 0.0
        %2152 = vmatpush1.msra.mxu0 0.0
        %2153 = vmatprep.subr.mxu0 0.0
        %2154 = vmatpush1.msra.mxu0 0.0
        %2155 = vmatprep.subr.mxu0 0.0
        %2156 = vmatpush1.msra.mxu0 0.0
        %2157 = vmatprep.subr.mxu0 0.0
        %2158 = vmatpush1.msra.mxu0 0.0
        %2159 = vmatprep.subr.mxu0 0.0
        %2160 = vmatpush1.msra.mxu0 0.0
        %2161 = vmatprep.subr.mxu0 0.0
        %2162 = vmatpush1.msra.mxu0 0.0
        %2163 = vmatprep.subr.mxu0 0.0
        %2164 = vmatpush1.msra.mxu0 0.0
        %2165 = vmatprep.mubr.f32.mxu0 0.0
        %2166 = vmatmul.mubr.f32.gmra.mrb[0].mxu0 %v2088
        %v2167 = vpop.f32.mrb[0].mxu0
        %v2168 = vadd.f32 %v2069, %v2167
        %v2169 = vpop.f32.mrb[0].mxu0
        %2170 = vmatprep.mubr.f32.mxu0 0.0
        %2171 = vmatmul.mubr.f32.gmra.mrb[0].mxu0 %v2091
        %v2172 = vpop.f32.mrb[0].mxu0
        %v2173 = vadd.f32 %v2074, %v2172
        %v2174 = vpop.f32.mrb[0].mxu0
        %2175 = vmatprep.mubr.f32.mxu0 0.0
        %2176 = vmatmul.mubr.f32.gmra.mrb[0].mxu0 %v2094
        %v2177 = vpop.f32.mrb[0].mxu0
        %v2178 = vadd.f32 %v2079, %v2177
        %v2179 = vpop.f32.mrb[0].mxu0
        %2180 = vmatprep.mubr.f32.mxu0 0.0
        %2181 = vmatmul.mubr.f32.gmra.mrb[0].mxu0 %v2097
        %v2182 = vpop.f32.mrb[0].mxu0
        %v2183 = vadd.f32 %v2084, %v2182
        %v2184 = vpop.f32.mrb[0].mxu0
        %2185 = vdwg.mxu0
        %v2186 = vmax.f32 %v2168, 0.0
        %v2187 = vmax.f32 %v2173, 0.0
        %v2188 = vmax.f32 %v2178, 0.0
        %v2189 = vmax.f32 %v2183, 0.0
        %v2191 = vsel %vm1446, %v2186, 0
        %v2194 = vsel %vm1446, %v2187, 0
        %v2197 = vsel %vm1446, %v2188, 0
        %v2200 = vsel %vm1446, %v2189, 0
        %2202 = vmatprep.subr.mxu0 0.0
        %2203 = vmatpush1.msra.mxu0 %v1815
        %2204 = vmatprep.subr.mxu0 0.0
        %2205 = vmatpush1.msra.mxu0 0.0
        %2206 = vmatprep.subr.mxu0 0.0
        %2207 = vmatpush1.msra.mxu0 0.0
        %2208 = vmatprep.subr.mxu0 0.0
        %2209 = vmatpush1.msra.mxu0 0.0
        %2210 = vmatprep.subr.mxu0 0.0
        %2211 = vmatpush1.msra.mxu0 0.0
        %2212 = vmatprep.subr.mxu0 0.0
        %2213 = vmatpush1.msra.mxu0 0.0
        %2214 = vmatprep.subr.mxu0 0.0
        %2215 = vmatpush1.msra.mxu0 0.0
        %2216 = vmatprep.subr.mxu0 0.0
        %2217 = vmatpush1.msra.mxu0 0.0
        %2218 = vmatprep.subr.mxu0 0.0
        %2219 = vmatpush1.msra.mxu0 0.0
        %2220 = vmatprep.subr.mxu0 0.0
        %2221 = vmatpush1.msra.mxu0 0.0
        %2222 = vmatprep.subr.mxu0 0.0
        %2223 = vmatpush1.msra.mxu0 0.0
        %2224 = vmatprep.subr.mxu0 0.0
        %2225 = vmatpush1.msra.mxu0 0.0
        %2226 = vmatprep.subr.mxu0 0.0
        %2227 = vmatpush1.msra.mxu0 0.0
        %2228 = vmatprep.subr.mxu0 0.0
        %2229 = vmatpush1.msra.mxu0 0.0
        %2230 = vmatprep.subr.mxu0 0.0
        %2231 = vmatpush1.msra.mxu0 0.0
        %2232 = vmatprep.subr.mxu0 0.0
        %2233 = vmatpush1.msra.mxu0 0.0
        %2234 = vmatprep.subr.mxu0 0.0
        %2235 = vmatpush1.msra.mxu0 0.0
        %2236 = vmatprep.subr.mxu0 0.0
        %2237 = vmatpush1.msra.mxu0 0.0
        %2238 = vmatprep.subr.mxu0 0.0
        %2239 = vmatpush1.msra.mxu0 0.0
        %2240 = vmatprep.subr.mxu0 0.0
        %2241 = vmatpush1.msra.mxu0 0.0
        %2242 = vmatprep.subr.mxu0 0.0
        %2243 = vmatpush1.msra.mxu0 0.0
        %2244 = vmatprep.subr.mxu0 0.0
        %2245 = vmatpush1.msra.mxu0 0.0
        %2246 = vmatprep.subr.mxu0 0.0
        %2247 = vmatpush1.msra.mxu0 0.0
        %2248 = vmatprep.subr.mxu0 0.0
        %2249 = vmatpush1.msra.mxu0 0.0
        %2250 = vmatprep.subr.mxu0 0.0
        %2251 = vmatpush1.msra.mxu0 0.0
        %2252 = vmatprep.subr.mxu0 0.0
        %2253 = vmatpush1.msra.mxu0 0.0
        %2254 = vmatprep.subr.mxu0 0.0
        %2255 = vmatpush1.msra.mxu0 0.0
        %2256 = vmatprep.subr.mxu0 0.0
        %2257 = vmatpush1.msra.mxu0 0.0
        %2258 = vmatprep.subr.mxu0 0.0
        %2259 = vmatpush1.msra.mxu0 0.0
        %2260 = vmatprep.subr.mxu0 0.0
        %2261 = vmatpush1.msra.mxu0 0.0
        %2262 = vmatprep.subr.mxu0 0.0
        %2263 = vmatpush1.msra.mxu0 0.0
        %2264 = vmatprep.subr.mxu0 0.0
        %2265 = vmatpush1.msra.mxu0 0.0
        %2266 = vmatprep.mubr.f32.mxu0 0.0
        %2267 = vmatmul.mubr.f32.gmra.mrb[0].mxu0 %v2191
        %v2268 = vpop.f32.mrb[0].mxu0
        %v2269 = vadd.f32 0.0, %v2268
        %v2270 = vpop.f32.mrb[0].mxu0
        %2271 = vmatprep.mubr.f32.mxu0 0.0
        %2272 = vmatmul.mubr.f32.gmra.mrb[0].mxu0 %v2194
        %v2273 = vpop.f32.mrb[0].mxu0
        %v2274 = vadd.f32 0.0, %v2273
        %v2275 = vpop.f32.mrb[0].mxu0
        %2276 = vmatprep.mubr.f32.mxu0 0.0
        %2277 = vmatmul.mubr.f32.gmra.mrb[0].mxu0 %v2197
        %v2278 = vpop.f32.mrb[0].mxu0
        %v2279 = vadd.f32 0.0, %v2278
        %v2280 = vpop.f32.mrb[0].mxu0
        %2281 = vmatprep.mubr.f32.mxu0 0.0
        %2282 = vmatmul.mubr.f32.gmra.mrb[0].mxu0 %v2200
        %v2283 = vpop.f32.mrb[0].mxu0
        %v2284 = vadd.f32 0.0, %v2283
        %v2285 = vpop.f32.mrb[0].mxu0
        %2286 = vdwg.mxu0
        %v2287 = vld [vmem:[%s15] sm:$0xff]
        %v2288 = vld [vmem:[%s15 + $0x8] sm:$0xff]
        %v2289 = vld [vmem:[%s15 + $0x10] sm:$0xff]
        %v2290 = vld [vmem:[%s15 + $0x18] sm:$0xff]
        %v2291 = vld [vmem:[%s15 + $0x20] sm:$0xff]
        %v2292 = vld [vmem:[%s15 + $0x28] sm:$0xff]
        %v2293 = vld [vmem:[%s15 + $0x30] sm:$0xff]
        %v2294 = vld [vmem:[%s15 + $0x38] sm:$0xff]
        %v2295 = vld [vmem:[%s16] sm:$0xff]
        %v2296 = vld [vmem:[%s16 + $0x8] sm:$0xff]
        %v2297 = vld [vmem:[%s16 + $0x10] sm:$0xff]
        %v2298 = vld [vmem:[%s16 + $0x18] sm:$0xff]
        %v2299 = vld [vmem:[%s16 + $0x20] sm:$0xff]
        %v2300 = vld [vmem:[%s16 + $0x28] sm:$0xff]
        %v2301 = vld [vmem:[%s16 + $0x30] sm:$0xff]
        %v2302 = vld [vmem:[%s16 + $0x38] sm:$0xff]
        %2307 = vrot.lane.b32.xlu0 %v2269, 1
        %v2308 = vpop.permute.xlu0 %2307
        %2309 = vrot.lane.b32.xlu0 %v2274, 1
        %v2310 = vpop.permute.xlu0 %2309
        %2311 = vrot.lane.b32.xlu0 %v2279, 1
        %v2312 = vpop.permute.xlu0 %2311
        %2313 = vrot.lane.b32.xlu0 %v2284, 1
        %v2314 = vpop.permute.xlu0 %2313
        %v2319 = vsel %vm1017, 0.0, %v2308
        %v2320 = vsel %vm1017, 0.0, %v2310
        %v2321 = vsel %vm1017, 0.0, %v2312
        %v2322 = vsel %vm1017, 0.0, %v2314
        %v2323 = vsel %vm1026, %v2319, 0.0
        %v2324 = vsel %vm1026, %v2320, 0.0
        %v2325 = vsel %vm1026, %v2321, 0.0
        %v2326 = vsel %vm1026, %v2322, 0.0
        %2331 = vrot.lane.b32.xlu0 %v2323, 127
        %v2332 = vpop.permute.xlu0 %2331
        %2333 = vrot.lane.b32.xlu0 %v2324, 127
        %v2334 = vpop.permute.xlu0 %2333
        %2335 = vrot.lane.b32.xlu0 %v2325, 127
        %v2336 = vpop.permute.xlu0 %2335
        %2337 = vrot.lane.b32.xlu0 %v2326, 127
        %v2338 = vpop.permute.xlu0 %2337
        %2343 = vrot.lane.b32.xlu0 %v2323, 126
        %v2344 = vpop.permute.xlu0 %2343
        %2345 = vrot.lane.b32.xlu0 %v2324, 126
        %v2346 = vpop.permute.xlu0 %2345
        %2347 = vrot.lane.b32.xlu0 %v2325, 126
        %v2348 = vpop.permute.xlu0 %2347
        %2349 = vrot.lane.b32.xlu0 %v2326, 126
        %v2350 = vpop.permute.xlu0 %2349
        %2356 = vset.pattern.permute.xlu0 0
        %2357 = vperm.xlu0 %2356, %v2295
        %v2358 = vpop.permute.xlu0 %2357
        %2361 = vset.pattern.permute.xlu0 0
        %2362 = vperm.xlu0 %2361, %v2296
        %v2363 = vpop.permute.xlu0 %2362
        %2366 = vset.pattern.permute.xlu0 0
        %2367 = vperm.xlu0 %2366, %v2297
        %v2368 = vpop.permute.xlu0 %2367
        %2371 = vset.pattern.permute.xlu0 0
        %2372 = vperm.xlu0 %2371, %v2298
        %v2373 = vpop.permute.xlu0 %2372
        %2376 = vset.pattern.permute.xlu0 0
        %2377 = vperm.xlu0 %2376, %v2299
        %v2378 = vpop.permute.xlu0 %2377
        %2381 = vset.pattern.permute.xlu0 0
        %2382 = vperm.xlu0 %2381, %v2300
        %v2383 = vpop.permute.xlu0 %2382
        %2386 = vset.pattern.permute.xlu0 0
        %2387 = vperm.xlu0 %2386, %v2301
        %v2388 = vpop.permute.xlu0 %2387
        %2391 = vset.pattern.permute.xlu0 0
        %2392 = vperm.xlu0 %2391, %v2302
        %v2393 = vpop.permute.xlu0 %2392
        %v2396 = vsel %vm1371, %v2287, 0
        %v2399 = vsel %vm1371, %v2288, 0
        %v2402 = vsel %vm1371, %v2289, 0
        %v2405 = vsel %vm1371, %v2290, 0
        %v2408 = vsel %vm1371, %v2291, 0
        %v2411 = vsel %vm1371, %v2292, 0
        %v2414 = vsel %vm1371, %v2293, 0
        %v2417 = vsel %vm1371, %v2294, 0
        %2419 = vmatprep.subr.mxu0 0.0
        %2420 = vmatpush1.msra.mxu0 %v2323
        %2421 = vmatprep.subr.mxu0 0.0
        %2422 = vmatpush1.msra.mxu0 %v2324
        %2423 = vmatprep.subr.mxu0 0.0
        %2424 = vmatpush1.msra.mxu0 %v2325
        %2425 = vmatprep.subr.mxu0 0.0
        %2426 = vmatpush1.msra.mxu0 %v2326
        %2427 = vmatprep.subr.mxu0 0.0
        %2428 = vmatpush1.msra.mxu0 %v2332
        %2429 = vmatprep.subr.mxu0 0.0
        %2430 = vmatpush1.msra.mxu0 %v2334
        %2431 = vmatprep.subr.mxu0 0.0
        %2432 = vmatpush1.msra.mxu0 %v2336
        %2433 = vmatprep.subr.mxu0 0.0
        %2434 = vmatpush1.msra.mxu0 %v2338
        %2435 = vmatprep.subr.mxu0 0.0
        %2436 = vmatpush1.msra.mxu0 %v2344
        %2437 = vmatprep.subr.mxu0 0.0
        %2438 = vmatpush1.msra.mxu0 %v2346
        %2439 = vmatprep.subr.mxu0 0.0
        %2440 = vmatpush1.msra.mxu0 %v2348
        %2441 = vmatprep.subr.mxu0 0.0
        %2442 = vmatpush1.msra.mxu0 %v2350
        %2443 = vmatprep.subr.mxu0 0.0
        %2444 = vmatpush1.msra.mxu0 0.0
        %2445 = vmatprep.subr.mxu0 0.0
        %2446 = vmatpush1.msra.mxu0 0.0
        %2447 = vmatprep.subr.mxu0 0.0
        %2448 = vmatpush1.msra.mxu0 0.0
        %2449 = vmatprep.subr.mxu0 0.0
        %2450 = vmatpush1.msra.mxu0 0.0
        %2451 = vmatprep.subr.mxu0 0.0
        %2452 = vmatpush1.msra.mxu0 0.0
        %2453 = vmatprep.subr.mxu0 0.0
        %2454 = vmatpush1.msra.mxu0 0.0
        %2455 = vmatprep.subr.mxu0 0.0
        %2456 = vmatpush1.msra.mxu0 0.0
        %2457 = vmatprep.subr.mxu0 0.0
        %2458 = vmatpush1.msra.mxu0 0.0
        %2459 = vmatprep.subr.mxu0 0.0
        %2460 = vmatpush1.msra.mxu0 0.0
        %2461 = vmatprep.subr.mxu0 0.0
        %2462 = vmatpush1.msra.mxu0 0.0
        %2463 = vmatprep.subr.mxu0 0.0
        %2464 = vmatpush1.msra.mxu0 0.0
        %2465 = vmatprep.subr.mxu0 0.0
        %2466 = vmatpush1.msra.mxu0 0.0
        %2467 = vmatprep.subr.mxu0 0.0
        %2468 = vmatpush1.msra.mxu0 0.0
        %2469 = vmatprep.subr.mxu0 0.0
        %2470 = vmatpush1.msra.mxu0 0.0
        %2471 = vmatprep.subr.mxu0 0.0
        %2472 = vmatpush1.msra.mxu0 0.0
        %2473 = vmatprep.subr.mxu0 0.0
        %2474 = vmatpush1.msra.mxu0 0.0
        %2475 = vmatprep.subr.mxu0 0.0
        %2476 = vmatpush1.msra.mxu0 0.0
        %2477 = vmatprep.subr.mxu0 0.0
        %2478 = vmatpush1.msra.mxu0 0.0
        %2479 = vmatprep.subr.mxu0 0.0
        %2480 = vmatpush1.msra.mxu0 0.0
        %2481 = vmatprep.subr.mxu0 0.0
        %2482 = vmatpush1.msra.mxu0 0.0
        %2483 = vmatprep.mubr.f32.mxu0 0.0
        %2484 = vmatmul.mubr.f32.gmra.mrb[0].mxu0 %v2396
        %v2485 = vpop.f32.mrb[0].mxu0
        %v2486 = vadd.f32 %v2358, %v2485
        %v2487 = vpop.f32.mrb[0].mxu0
        %2488 = vmatprep.mubr.f32.mxu0 0.0
        %2489 = vmatmul.mubr.f32.gmra.mrb[0].mxu0 %v2399
        %v2490 = vpop.f32.mrb[0].mxu0
        %v2491 = vadd.f32 %v2363, %v2490
        %v2492 = vpop.f32.mrb[0].mxu0
        %2493 = vmatprep.mubr.f32.mxu0 0.0
        %2494 = vmatmul.mubr.f32.gmra.mrb[0].mxu0 %v2402
        %v2495 = vpop.f32.mrb[0].mxu0
        %v2496 = vadd.f32 %v2368, %v2495
        %v2497 = vpop.f32.mrb[0].mxu0
        %2498 = vmatprep.mubr.f32.mxu0 0.0
        %2499 = vmatmul.mubr.f32.gmra.mrb[0].mxu0 %v2405
        %v2500 = vpop.f32.mrb[0].mxu0
        %v2501 = vadd.f32 %v2373, %v2500
        %v2502 = vpop.f32.mrb[0].mxu0
        %2503 = vmatprep.mubr.f32.mxu0 0.0
        %2504 = vmatmul.mubr.f32.gmra.mrb[0].mxu0 %v2408
        %v2505 = vpop.f32.mrb[0].mxu0
        %v2506 = vadd.f32 %v2378, %v2505
        %v2507 = vpop.f32.mrb[0].mxu0
        %2508 = vmatprep.mubr.f32.mxu0 0.0
        %2509 = vmatmul.mubr.f32.gmra.mrb[0].mxu0 %v2411
        %v2510 = vpop.f32.mrb[0].mxu0
        %v2511 = vadd.f32 %v2383, %v2510
        %v2512 = vpop.f32.mrb[0].mxu0
        %2513 = vmatprep.mubr.f32.mxu0 0.0
        %2514 = vmatmul.mubr.f32.gmra.mrb[0].mxu0 %v2414
        %v2515 = vpop.f32.mrb[0].mxu0
        %v2516 = vadd.f32 %v2388, %v2515
        %v2517 = vpop.f32.mrb[0].mxu0
        %2518 = vmatprep.mubr.f32.mxu0 0.0
        %2519 = vmatmul.mubr.f32.gmra.mrb[0].mxu0 %v2417
        %v2520 = vpop.f32.mrb[0].mxu0
        %v2521 = vadd.f32 %v2393, %v2520
        %v2522 = vpop.f32.mrb[0].mxu0
        %2523 = vdwg.mxu0
        %v2524 = vmax.f32 %v2486, 0.0
        %v2525 = vmax.f32 %v2491, 0.0
        %v2526 = vmax.f32 %v2496, 0.0
        %v2527 = vmax.f32 %v2501, 0.0
        %v2528 = vmax.f32 %v2506, 0.0
        %v2529 = vmax.f32 %v2511, 0.0
        %v2530 = vmax.f32 %v2516, 0.0
        %v2531 = vmax.f32 %v2521, 0.0
        %v2532 = vmul.u32 %v820, 2
        %vm2533 = vcmp.eq.s32.totalorder %v824, %v2532
        %v2534 = vadd.s32 %v2532, 1
        %vm2535 = vcmp.eq.s32.totalorder %v824, %v2534
        %vm2536 = vmor %vm2533, %vm2535
        %v2537 = vsel %vm2536, 1.0, 0.0
        %v2539 = vsel %vm1213, %v2524, 0
        %v2542 = vsel %vm1213, %v2525, 0
        %v2545 = vsel %vm1213, %v2526, 0
        %v2548 = vsel %vm1213, %v2527, 0
        %v2551 = vsel %vm1213, %v2528, 0
        %v2554 = vsel %vm1213, %v2529, 0
        %v2557 = vsel %vm1213, %v2530, 0
        %v2560 = vsel %vm1213, %v2531, 0
        %2562 = vmatprep.subr.mxu0 0.0
        %2563 = vmatpush1.msra.mxu0 %v1815
        %2564 = vmatprep.subr.mxu0 0.0
        %2565 = vmatpush1.msra.mxu0 %v2537
        %2566 = vmatprep.subr.mxu0 0.0
        %2567 = vmatpush1.msra.mxu0 0.0
        %2568 = vmatprep.subr.mxu0 0.0
        %2569 = vmatpush1.msra.mxu0 0.0
        %2570 = vmatprep.subr.mxu0 0.0
        %2571 = vmatpush1.msra.mxu0 0.0
        %2572 = vmatprep.subr.mxu0 0.0
        %2573 = vmatpush1.msra.mxu0 0.0
        %2574 = vmatprep.subr.mxu0 0.0
        %2575 = vmatpush1.msra.mxu0 0.0
        %2576 = vmatprep.subr.mxu0 0.0
        %2577 = vmatpush1.msra.mxu0 0.0
        %2578 = vmatprep.subr.mxu0 0.0
        %2579 = vmatpush1.msra.mxu0 0.0
        %2580 = vmatprep.subr.mxu0 0.0
        %2581 = vmatpush1.msra.mxu0 0.0
        %2582 = vmatprep.subr.mxu0 0.0
        %2583 = vmatpush1.msra.mxu0 0.0
        %2584 = vmatprep.subr.mxu0 0.0
        %2585 = vmatpush1.msra.mxu0 0.0
        %2586 = vmatprep.subr.mxu0 0.0
        %2587 = vmatpush1.msra.mxu0 0.0
        %2588 = vmatprep.subr.mxu0 0.0
        %2589 = vmatpush1.msra.mxu0 0.0
        %2590 = vmatprep.subr.mxu0 0.0
        %2591 = vmatpush1.msra.mxu0 0.0
        %2592 = vmatprep.subr.mxu0 0.0
        %2593 = vmatpush1.msra.mxu0 0.0
        %2594 = vmatprep.subr.mxu0 0.0
        %2595 = vmatpush1.msra.mxu0 0.0
        %2596 = vmatprep.subr.mxu0 0.0
        %2597 = vmatpush1.msra.mxu0 0.0
        %2598 = vmatprep.subr.mxu0 0.0
        %2599 = vmatpush1.msra.mxu0 0.0
        %2600 = vmatprep.subr.mxu0 0.0
        %2601 = vmatpush1.msra.mxu0 0.0
        %2602 = vmatprep.subr.mxu0 0.0
        %2603 = vmatpush1.msra.mxu0 0.0
        %2604 = vmatprep.subr.mxu0 0.0
        %2605 = vmatpush1.msra.mxu0 0.0
        %2606 = vmatprep.subr.mxu0 0.0
        %2607 = vmatpush1.msra.mxu0 0.0
        %2608 = vmatprep.subr.mxu0 0.0
        %2609 = vmatpush1.msra.mxu0 0.0
        %2610 = vmatprep.subr.mxu0 0.0
        %2611 = vmatpush1.msra.mxu0 0.0
        %2612 = vmatprep.subr.mxu0 0.0
        %2613 = vmatpush1.msra.mxu0 0.0
        %2614 = vmatprep.subr.mxu0 0.0
        %2615 = vmatpush1.msra.mxu0 0.0
        %2616 = vmatprep.subr.mxu0 0.0
        %2617 = vmatpush1.msra.mxu0 0.0
        %2618 = vmatprep.subr.mxu0 0.0
        %2619 = vmatpush1.msra.mxu0 0.0
        %2620 = vmatprep.subr.mxu0 0.0
        %2621 = vmatpush1.msra.mxu0 0.0
        %2622 = vmatprep.subr.mxu0 0.0
        %2623 = vmatpush1.msra.mxu0 0.0
        %2624 = vmatprep.subr.mxu0 0.0
        %2625 = vmatpush1.msra.mxu0 0.0
        %2626 = vmatprep.mubr.f32.mxu0 0.0
        %2627 = vmatmul.mubr.f32.gmra.mrb[0].mxu0 %v2539
        %v2628 = vpop.f32.mrb[0].mxu0
        %v2629 = vadd.f32 0.0, %v2628
        %v2630 = vpop.f32.mrb[0].mxu0
        %2631 = vmatprep.mubr.f32.mxu0 0.0
        %2632 = vmatmul.mubr.f32.gmra.mrb[0].mxu0 %v2542
        %v2633 = vpop.f32.mrb[0].mxu0
        %v2634 = vadd.f32 0.0, %v2633
        %v2635 = vpop.f32.mrb[0].mxu0
        %2636 = vmatprep.mubr.f32.mxu0 0.0
        %2637 = vmatmul.mubr.f32.gmra.mrb[0].mxu0 %v2545
        %v2638 = vpop.f32.mrb[0].mxu0
        %v2639 = vadd.f32 0.0, %v2638
        %v2640 = vpop.f32.mrb[0].mxu0
        %2641 = vmatprep.mubr.f32.mxu0 0.0
        %2642 = vmatmul.mubr.f32.gmra.mrb[0].mxu0 %v2548
        %v2643 = vpop.f32.mrb[0].mxu0
        %v2644 = vadd.f32 0.0, %v2643
        %v2645 = vpop.f32.mrb[0].mxu0
        %2646 = vmatprep.mubr.f32.mxu0 0.0
        %2647 = vmatmul.mubr.f32.gmra.mrb[0].mxu0 %v2551
        %v2648 = vpop.f32.mrb[0].mxu0
        %v2649 = vadd.f32 0.0, %v2648
        %v2650 = vpop.f32.mrb[0].mxu0
        %2651 = vmatprep.mubr.f32.mxu0 0.0
        %2652 = vmatmul.mubr.f32.gmra.mrb[0].mxu0 %v2554
        %v2653 = vpop.f32.mrb[0].mxu0
        %v2654 = vadd.f32 0.0, %v2653
        %v2655 = vpop.f32.mrb[0].mxu0
        %2656 = vmatprep.mubr.f32.mxu0 0.0
        %2657 = vmatmul.mubr.f32.gmra.mrb[0].mxu0 %v2557
        %v2658 = vpop.f32.mrb[0].mxu0
        %v2659 = vadd.f32 0.0, %v2658
        %v2660 = vpop.f32.mrb[0].mxu0
        %2661 = vmatprep.mubr.f32.mxu0 0.0
        %2662 = vmatmul.mubr.f32.gmra.mrb[0].mxu0 %v2560
        %v2663 = vpop.f32.mrb[0].mxu0
        %v2664 = vadd.f32 0.0, %v2663
        %v2665 = vpop.f32.mrb[0].mxu0
        %2666 = vdwg.mxu0
        %v2667 = vld [vmem:[%s17] sm:$0xf]
        %v2668 = vld [vmem:[%s18] sm:$0x3]
        %2677 = vrot.lane.b32.xlu0 %v2629, 1
        %v2678 = vpop.permute.xlu0 %2677
        %2679 = vrot.lane.b32.xlu0 %v2634, 1
        %v2680 = vpop.permute.xlu0 %2679
        %2681 = vrot.lane.b32.xlu0 %v2639, 1
        %v2682 = vpop.permute.xlu0 %2681
        %2683 = vrot.lane.b32.xlu0 %v2644, 1
        %v2684 = vpop.permute.xlu0 %2683
        %2685 = vrot.lane.b32.xlu0 %v2649, 1
        %v2686 = vpop.permute.xlu0 %2685
        %2687 = vrot.lane.b32.xlu0 %v2654, 1
        %v2688 = vpop.permute.xlu0 %2687
        %2689 = vrot.lane.b32.xlu0 %v2659, 1
        %v2690 = vpop.permute.xlu0 %2689
        %2691 = vrot.lane.b32.xlu0 %v2664, 1
        %v2692 = vpop.permute.xlu0 %2691
        %v2701 = vsel %vm1017, 0.0, %v2678
        %v2702 = vsel %vm1017, 0.0, %v2680
        %v2703 = vsel %vm1017, 0.0, %v2682
        %v2704 = vsel %vm1017, 0.0, %v2684
        %v2705 = vsel %vm1017, 0.0, %v2686
        %v2706 = vsel %vm1017, 0.0, %v2688
        %v2707 = vsel %vm1017, 0.0, %v2690
        %v2708 = vsel %vm1017, 0.0, %v2692
        %vm2709 = vcmask 269312
        %v2710 = vsel %vm2709, %v2701, 0.0
        %v2711 = vsel %vm2709, %v2702, 0.0
        %v2712 = vsel %vm2709, %v2703, 0.0
        %v2713 = vsel %vm2709, %v2704, 0.0
        %v2714 = vsel %vm2709, %v2705, 0.0
        %v2715 = vsel %vm2709, %v2706, 0.0
        %v2716 = vsel %vm2709, %v2707, 0.0
        %v2717 = vsel %vm2709, %v2708, 0.0
        %2726 = vrot.lane.b32.xlu0 %v2710, 127
        %v2727 = vpop.permute.xlu0 %2726
        %2728 = vrot.lane.b32.xlu0 %v2711, 127
        %v2729 = vpop.permute.xlu0 %2728
        %2730 = vrot.lane.b32.xlu0 %v2712, 127
        %v2731 = vpop.permute.xlu0 %2730
        %2732 = vrot.lane.b32.xlu0 %v2713, 127
        %v2733 = vpop.permute.xlu0 %2732
        %2734 = vrot.lane.b32.xlu0 %v2714, 127
        %v2735 = vpop.permute.xlu0 %2734
        %2736 = vrot.lane.b32.xlu0 %v2715, 127
        %v2737 = vpop.permute.xlu0 %2736
        %2738 = vrot.lane.b32.xlu0 %v2716, 127
        %v2739 = vpop.permute.xlu0 %2738
        %2740 = vrot.lane.b32.xlu0 %v2717, 127
        %v2741 = vpop.permute.xlu0 %2740
        %2750 = vrot.lane.b32.xlu0 %v2710, 126
        %v2751 = vpop.permute.xlu0 %2750
        %2752 = vrot.lane.b32.xlu0 %v2711, 126
        %v2753 = vpop.permute.xlu0 %2752
        %2754 = vrot.lane.b32.xlu0 %v2712, 126
        %v2755 = vpop.permute.xlu0 %2754
        %2756 = vrot.lane.b32.xlu0 %v2713, 126
        %v2757 = vpop.permute.xlu0 %2756
        %2758 = vrot.lane.b32.xlu0 %v2714, 126
        %v2759 = vpop.permute.xlu0 %2758
        %2760 = vrot.lane.b32.xlu0 %v2715, 126
        %v2761 = vpop.permute.xlu0 %2760
        %2762 = vrot.lane.b32.xlu0 %v2716, 126
        %v2763 = vpop.permute.xlu0 %2762
        %2764 = vrot.lane.b32.xlu0 %v2717, 126
        %v2765 = vpop.permute.xlu0 %2764
        %2775 = vset.pattern.permute.xlu0 0
        %2776 = vperm.xlu0 %2775, %v2668
        %v2777 = vpop.permute.xlu0 %2776
        %v2781 = vunpack.c.l.s4 1983009808
        %v2782 = vunpack.c.0.s8 %v2781
        %v2783 = vlaneseq
        %v2784 = vshrl.u32 %v2783, 7
        %v2785 = vsub.s32 %v2782, %v2784
        %v2786 = vrot.slane %v2667, %v2785
        %v2787 = vcombine.high %v2786, %v2786
        %v2789 = vsel %vm1111, %v2787, 0
        %2791 = vmatprep.subr.mxu0 0.0
        %2792 = vmatpush1.msra.mxu0 %v2710
        %2793 = vmatprep.subr.mxu0 0.0
        %2794 = vmatpush1.msra.mxu0 %v2711
        %2795 = vmatprep.subr.mxu0 0.0
        %2796 = vmatpush1.msra.mxu0 %v2712
        %2797 = vmatprep.subr.mxu0 0.0
        %2798 = vmatpush1.msra.mxu0 %v2713
        %2799 = vmatprep.subr.mxu0 0.0
        %2800 = vmatpush1.msra.mxu0 %v2714
        %2801 = vmatprep.subr.mxu0 0.0
        %2802 = vmatpush1.msra.mxu0 %v2715
        %2803 = vmatprep.subr.mxu0 0.0
        %2804 = vmatpush1.msra.mxu0 %v2716
        %2805 = vmatprep.subr.mxu0 0.0
        %2806 = vmatpush1.msra.mxu0 %v2717
        %2807 = vmatprep.subr.mxu0 0.0
        %2808 = vmatpush1.msra.mxu0 %v2727
        %2809 = vmatprep.subr.mxu0 0.0
        %2810 = vmatpush1.msra.mxu0 %v2729
        %2811 = vmatprep.subr.mxu0 0.0
        %2812 = vmatpush1.msra.mxu0 %v2731
        %2813 = vmatprep.subr.mxu0 0.0
        %2814 = vmatpush1.msra.mxu0 %v2733
        %2815 = vmatprep.subr.mxu0 0.0
        %2816 = vmatpush1.msra.mxu0 %v2735
        %2817 = vmatprep.subr.mxu0 0.0
        %2818 = vmatpush1.msra.mxu0 %v2737
        %2819 = vmatprep.subr.mxu0 0.0
        %2820 = vmatpush1.msra.mxu0 %v2739
        %2821 = vmatprep.subr.mxu0 0.0
        %2822 = vmatpush1.msra.mxu0 %v2741
        %2823 = vmatprep.subr.mxu0 0.0
        %2824 = vmatpush1.msra.mxu0 %v2751
        %2825 = vmatprep.subr.mxu0 0.0
        %2826 = vmatpush1.msra.mxu0 %v2753
        %2827 = vmatprep.subr.mxu0 0.0
        %2828 = vmatpush1.msra.mxu0 %v2755
        %2829 = vmatprep.subr.mxu0 0.0
        %2830 = vmatpush1.msra.mxu0 %v2757
        %2831 = vmatprep.subr.mxu0 0.0
        %2832 = vmatpush1.msra.mxu0 %v2759
        %2833 = vmatprep.subr.mxu0 0.0
        %2834 = vmatpush1.msra.mxu0 %v2761
        %2835 = vmatprep.subr.mxu0 0.0
        %2836 = vmatpush1.msra.mxu0 %v2763
        %2837 = vmatprep.subr.mxu0 0.0
        %2838 = vmatpush1.msra.mxu0 %v2765
        %2839 = vmatprep.subr.mxu0 0.0
        %2840 = vmatpush1.msra.mxu0 0.0
        %2841 = vmatprep.subr.mxu0 0.0
        %2842 = vmatpush1.msra.mxu0 0.0
        %2843 = vmatprep.subr.mxu0 0.0
        %2844 = vmatpush1.msra.mxu0 0.0
        %2845 = vmatprep.subr.mxu0 0.0
        %2846 = vmatpush1.msra.mxu0 0.0
        %2847 = vmatprep.subr.mxu0 0.0
        %2848 = vmatpush1.msra.mxu0 0.0
        %2849 = vmatprep.subr.mxu0 0.0
        %2850 = vmatpush1.msra.mxu0 0.0
        %2851 = vmatprep.subr.mxu0 0.0
        %2852 = vmatpush1.msra.mxu0 0.0
        %2853 = vmatprep.subr.mxu0 0.0
        %2854 = vmatpush1.msra.mxu0 0.0
        %2855 = vmatprep.mubr.f32.mxu0 %v2789
        %2856 = vmatmul.mubr.f32.gmra.mrb[0].mxu0 %v2786
        %v2857 = vpop.f32.mrb[0].mxu0
        %v2858 = vadd.f32 %v2777, %v2857
        %v2859 = vpop.f32.mrb[0].mxu0
        %2860 = vdwg.mxu0
        %2862 = vrot.lane.b32.xlu0 %v2858, 124
        %v2863 = vpop.permute.xlu0 %2862
        %vm2865 = vcmask 222208
        %2866 = vst.msk [vmem:[%s593] sm:$0x3] %vm2865, %v2863
        %s2867 = sand.u32 %s445, 1
        %s2868 = scalar_lea.sflag [#allocation3], %s2867
        %s2869 = sand.u32 %s445, 1
        %s2870 = smul.addr %s2869, 2
        %s2871 = scalar_lea.vmem [#allocation2], %s2870
        // Predicated region
        $region97: #{autoencoder_1d_forward.1} parent=95 // pred_check
          %p2872 = pneg %p455
        $region98: #{autoencoder_1d_forward.1} parent=95 // pred_check_branch
          %2874 = sbr.rel (%p2872) target = $region100
        $region99: #{autoencoder_1d_forward.1} parent=95 // pred_region
          %s2876 = ssub.s32 32, 32
          %2877 = vsyncadd %s2868, %s2876
          %s2878 = smul.addr %s33, 32
          %s2879 = scalar_lea.hbm %s19, %s2878
          %s2881 = sshll.u32 %s2871, 4
          %s2882 = int_to_ptr.vmem [resolvable:$true] %s2881
          %2884 = dma.vmem_to_hbm [thread:$0]  %s2882, 32, %s2879, %s2868
        $region100: #{autoencoder_1d_forward.1} parent=95 // pred_fallthru
          _
      $region96: #{autoencoder_1d_forward.1} parent=5 // pred_fallthru
        _
      %p2885 = scmp.le.s32.totalorder 2, %s28
      // Predicated region
      $region101: #{autoencoder_1d_forward.1} parent=5 // pred_check
        %p2886 = pneg %p2885
      $region102: #{autoencoder_1d_forward.1} parent=5 // pred_check_branch
        %2888 = sbr.rel (%p2886) target = $region104
      $region103: #{autoencoder_1d_forward.1} parent=5 // pred_region
        %s2889 = ssub.s32 %s28, 2
        // Predicated region
        $region105: #{autoencoder_1d_forward.1} parent=103 // pred_check
          %p2890 = pneg %p461
        $region106: #{autoencoder_1d_forward.1} parent=103 // pred_check_branch
          %2892 = sbr.rel (%p2890) target = $region108
        $region107: #{autoencoder_1d_forward.1} parent=103 // pred_region
          %s2893 = sand.u32 %s446, 1
          %s2894 = scalar_lea.sflag [#allocation3], %s2893
          %s2895 = sand.u32 %s446, 1
          %s2896 = smul.addr %s2895, 2
          %s2897 = scalar_lea.vmem [#allocation2], %s2896
          %2898 = dma.done %s2894, 32
        $region108: #{autoencoder_1d_forward.1} parent=103 // pred_fallthru
          _
      $region104: #{autoencoder_1d_forward.1} parent=5 // pred_fallthru
        _
    $region6: #{autoencoder_1d_forward.1} parent=1 // loop_footer
      %s32 = sadd.s32 1, %s28
    $region7: #{autoencoder_1d_forward.1} parent=1 // loop_footer_branch
      %27 = sbr.rel target = $region3
    $region8: #{autoencoder_1d_forward.1} parent=1 // loop_exit
      _
    %2899 = vsyncpa [#allocation3], 1
    %s2900 = scalar_lea.sflag [#allocation3], 1
    %2901 = vsyncpa %s2900, 1

</llo_original>
